<compile_context>
chip_gen: v7x
topology: tpu7x:2x2x1
jax: 0.10.0
libtpu: 0.0.40
codegen_flags: <defaults>
</compile_context>

<pallas_src>
from functools import partial

import jax
import jax.numpy as jnp
from jax.experimental import pallas as pl
from jax.experimental.pallas import tpu as pltpu

VTH = 0.2    # LIF firing threshold (STBP-tdBN default)
TAU = 0.25   # LIF leak factor      (STBP-tdBN default)

D_IN = 2312               # 2 * 34 * 34 NMNIST event-frame features
D_IN_PAD = 2432           # 19 * 128 -> lane-dense input / w1 rows
H_TRUE, H_PAD = 400, 512
O_TRUE, O_PAD = 10, 128


def _lif_scan_to_scratch(cur, spk_ref, T, Bb):
    """Sequential LIF over T on precomputed currents; spikes -> VMEM scratch.

    cur: (T*Bb, D) f32, rows ordered t-major / b-minor. The loop is unrolled
    (T is small for NMNIST) so every slice is static.
    """
    d = cur.shape[-1]
    u = jnp.zeros((Bb, d), jnp.float32)
    o = jnp.zeros((Bb, d), jnp.float32)
    for t in range(T):
        cur_t = cur[t * Bb:(t + 1) * Bb, :]
        u = TAU * u * (1.0 - o) + cur_t
        o = (u > VTH).astype(jnp.float32)
        spk_ref[t * Bb:(t + 1) * Bb, :] = o
    # TODO(synk): for very large T, switch the unrolled loop to lax.fori_loop
    # with pl.ds(t * Bb, Bb) slices to bound code size.


def _lif_scan_mean(cur, T, Bb):
    """Sequential LIF over T; returns mean spike rate over time, shape (Bb, D)."""
    d = cur.shape[-1]
    u = jnp.zeros((Bb, d), jnp.float32)
    o = jnp.zeros((Bb, d), jnp.float32)
    acc = jnp.zeros((Bb, d), jnp.float32)
    for t in range(T):
        cur_t = cur[t * Bb:(t + 1) * Bb, :]
        u = TAU * u * (1.0 - o) + cur_t
        o = (u > VTH).astype(jnp.float32)
        acc = acc + o
    return acc * (1.0 / T)


def _snn_mlp_kernel(x_ref, w1_ref, b1_ref, w2_ref, b2_ref, w3_ref, b3_ref,
                    out_ref, spk1_ref, spk2_ref, *, T, Bb):
    """One batch block: 3 x (hoisted matmul with M=T*Bb  +  LIF scan over T)."""
    # ---- layer 1: fc1_s + LIFSpike ------------------------------------
    cur1 = jnp.dot(x_ref[...], w1_ref[...],
                   preferred_element_type=jnp.float32) + b1_ref[...]
    _lif_scan_to_scratch(cur1, spk1_ref, T, Bb)                 # (T*Bb, 512)

    # ---- layer 2: fc2_s + LIFSpike ------------------------------------
    cur2 = jnp.dot(spk1_ref[...].astype(jnp.bfloat16), w2_ref[...],
                   preferred_element_type=jnp.float32) + b2_ref[...]
    _lif_scan_to_scratch(cur2, spk2_ref, T, Bb)                 # (T*Bb, 512)

    # ---- layer 3: fc3_s + LIFSpike + mean over time ---------------------
    cur3 = jnp.dot(spk2_ref[...].astype(jnp.bfloat16), w3_ref[...],
                   preferred_element_type=jnp.float32) + b3_ref[...]
    out_ref[...] = _lif_scan_mean(cur3, T, Bb)                  # (Bb, 128)


def init_params(key):
    """PyTorch-Linear-style init U(-1/sqrt(fan_in), 1/sqrt(fan_in)),
    zero-padded to lane-dense widths; weights stored bf16, biases f32."""
    keys = jax.random.split(key, 6)

    def linear(kw, kb, fan_in, fan_out, fan_in_pad, fan_out_pad):
        bound = 1.0 / (fan_in ** 0.5)
        w = jax.random.uniform(kw, (fan_in, fan_out), jnp.float32, -bound, bound)
        b = jax.random.uniform(kb, (1, fan_out), jnp.float32, -bound, bound)
        w_pad = jnp.zeros((fan_in_pad, fan_out_pad), jnp.float32)
        w_pad = w_pad.at[:fan_in, :fan_out].set(w)
        b_pad = jnp.zeros((1, fan_out_pad), jnp.float32).at[:, :fan_out].set(b)
        return w_pad.astype(jnp.bfloat16), b_pad

    w1, b1 = linear(keys[0], keys[1], D_IN,   H_TRUE, D_IN_PAD, H_PAD)
    w2, b2 = linear(keys[2], keys[3], H_TRUE, H_TRUE, H_PAD,    H_PAD)
    w3, b3 = linear(keys[4], keys[5], H_TRUE, O_TRUE, H_PAD,    O_PAD)
    return (w1, b1, w2, b2, w3, b3)


def _pick_batch_block(B, T, max_rows=512):
    """Largest divisor Bb of B with T*Bb <= max_rows (single block if it fits).

    Small problems stay as one block (healthy matmul M, no grid overhead);
    large batches are split so each block's input + spike scratch fits VMEM
    comfortably and blocks pipeline / shard across cores.
    """
    if T * B <= max_rows:
        return B
    bb = 1
    for d in range(1, B + 1):
        if B % d == 0 and T * d <= max_rows:
            bb = d
    return bb


@jax.jit
def nmnist_mlp_forward(x, params):
    """x: (B, C, H, W, T) with C*H*W == 2312, matching the PyTorch module."""
    w1, b1, w2, b2, w3, b3 = params
    B = x.shape[0]
    T = x.shape[-1]
    x = x.reshape(B, -1, T).astype(jnp.float32)      # == torch x.view(B,-1,T)
    Din = x.shape[1]
    assert Din == D_IN, f"expected {D_IN} features, got {Din}"

    # (T, B, Din) with zero-padded, lane-dense feature dim, in bf16 (the kernel
    # consumes bf16; NMNIST frames are 0/1 so the cast is lossless).
    x = jnp.transpose(x, (2, 0, 1))                              # (T, B, Din)
    x = jnp.pad(x, ((0, 0), (0, 0), (0, D_IN_PAD - Din)))        # (T, B, 2432)
    x = x.astype(jnp.bfloat16)

    # Batch-block grid axis ("parallel"): LIF state is per-sample so splitting
    # the batch is exact.  Rows are ordered t-major / b-minor inside a block.
    Bb = _pick_batch_block(B, T)
    n_blk = B // Bb
    x = x.reshape(T, n_blk, Bb, D_IN_PAD)
    x = jnp.transpose(x, (1, 0, 2, 3)).reshape(n_blk, T * Bb, D_IN_PAD)

    out = pl.pallas_call(
        partial(_snn_mlp_kernel, T=T, Bb=Bb),
        out_shape=jax.ShapeDtypeStruct((n_blk, Bb, O_PAD), jnp.float32),
        grid=(n_blk,),
        in_specs=[
            pl.BlockSpec((None, T * Bb, D_IN_PAD), lambda i: (i, 0, 0)),
            pl.BlockSpec(w1.shape, lambda i: (0, 0)),   # weights/biases are
            pl.BlockSpec(b1.shape, lambda i: (0, 0)),   # grid-invariant and
            pl.BlockSpec(w2.shape, lambda i: (0, 0)),   # stay VMEM-resident
            pl.BlockSpec(b2.shape, lambda i: (0, 0)),
            pl.BlockSpec(w3.shape, lambda i: (0, 0)),
            pl.BlockSpec(b3.shape, lambda i: (0, 0)),
        ],
        out_specs=pl.BlockSpec((None, Bb, O_PAD), lambda i: (i, 0, 0)),
        scratch_shapes=[
            pltpu.VMEM((T * Bb, H_PAD), jnp.float32),   # layer-1 spikes
            pltpu.VMEM((T * Bb, H_PAD), jnp.float32),   # layer-2 spikes
        ],
        compiler_params=pltpu.CompilerParams(
            dimension_semantics=("parallel",)),
    )(x, w1, b1, w2, b2, w3, b3)

    # (n_blk, Bb, 128) -> (B, 128) in original batch order, drop padded logits.
    return out.reshape(B, O_PAD)[:, :O_TRUE]


if __name__ == "__main__":
    key = jax.random.PRNGKey(0)
    kx, kp = jax.random.split(key)

    # NMNIST event frames: B=2, C=2, H=W=34 (2*34*34 = 2312 features), T=4 steps.
    B, C, H, W, T = 2, 2, 34, 34, 4
    x = (jax.random.uniform(kx, (B, C, H, W, T)) < 0.3).astype(jnp.float32)

    params = init_params(kp)
    out = nmnist_mlp_forward(x, params)
    out = jax.block_until_ready(out)

    assert out.shape == (B, 10), out.shape
    assert bool(jnp.all(jnp.isfinite(out)))
    # Output is a mean of binary spikes over T steps -> values in [0, 1] and
    # exact multiples of 1/T (robust sanity check, independent of numerics).
    assert bool(jnp.all((out >= 0.0) & (out <= 1.0)))
    assert bool(jnp.all(jnp.abs(out * T - jnp.round(out * T)) < 1e-4))
    print("KERNEL_OK")
</pallas_src>

<mosaic_0001>
module attributes {stable_mosaic.version = 11 : i64} {
  func.func @_snn_mlp_kernel(%arg0: i32, %arg1: memref<1x8x2432xbf16, #tpu.memory_space<vmem>>, %arg2: memref<2432x512xbf16, #tpu.memory_space<vmem>>, %arg3: memref<1x512xf32, #tpu.memory_space<vmem>>, %arg4: memref<512x512xbf16, #tpu.memory_space<vmem>>, %arg5: memref<1x512xf32, #tpu.memory_space<vmem>>, %arg6: memref<512x128xbf16, #tpu.memory_space<vmem>>, %arg7: memref<1x128xf32, #tpu.memory_space<vmem>>, %arg8: memref<1x2x128xf32, #tpu.memory_space<vmem>>, %arg9: memref<8x512xf32, #tpu.memory_space<vmem>>, %arg10: memref<8x512xf32, #tpu.memory_space<vmem>>) attributes {dimension_semantics = [#tpu.dimension_semantics<parallel>], iteration_bounds = array<i64: 1>, scalar_prefetch = 0 : i64, scratch_operands = 2 : i64, tpu.core_type = #tpu.core_type<tc>, window_params = [{transform_indices = @transform_0, window_bounds = array<i64: 1, 8, 2432>}, {pipeline_mode = #tpu.pipeline_mode<synchronous>, transform_indices = @transform_1, window_bounds = array<i64: 2432, 512>}, {pipeline_mode = #tpu.pipeline_mode<synchronous>, transform_indices = @transform_2, window_bounds = array<i64: 1, 512>}, {pipeline_mode = #tpu.pipeline_mode<synchronous>, transform_indices = @transform_3, window_bounds = array<i64: 512, 512>}, {pipeline_mode = #tpu.pipeline_mode<synchronous>, transform_indices = @transform_4, window_bounds = array<i64: 1, 512>}, {pipeline_mode = #tpu.pipeline_mode<synchronous>, transform_indices = @transform_5, window_bounds = array<i64: 512, 128>}, {pipeline_mode = #tpu.pipeline_mode<synchronous>, transform_indices = @transform_6, window_bounds = array<i64: 1, 128>}, {transform_indices = @transform_7, window_bounds = array<i64: 1, 2, 128>}]} {
    %c0 = arith.constant 0 : index
    %c0_0 = arith.constant 0 : index
    %c0_1 = arith.constant 0 : index
    %0 = vector.load %arg1[%c0, %c0_0, %c0_1] : memref<1x8x2432xbf16, #tpu.memory_space<vmem>>, vector<1x8x2432xbf16>
    %1 = vector.shape_cast %0 : vector<1x8x2432xbf16> to vector<8x2432xbf16>
    %c0_2 = arith.constant 0 : index
    %c0_3 = arith.constant 0 : index
    %2 = vector.load %arg2[%c0_2, %c0_3] : memref<2432x512xbf16, #tpu.memory_space<vmem>>, vector<2432x512xbf16>
    %cst = arith.constant dense<0.000000e+00> : vector<8x512xf32>
    %3 = tpu.matmul %1, %2, %cst {dimension_numbers = #tpu.dot_dimension_numbers<[1], [0], [0], [1], [0, 0, 1, 1], [], []>} : vector<8x2432xbf16>, vector<2432x512xbf16>, vector<8x512xf32> -> vector<8x512xf32>
    %c0_4 = arith.constant 0 : index
    %c0_5 = arith.constant 0 : index
    %4 = vector.load %arg3[%c0_4, %c0_5] : memref<1x512xf32, #tpu.memory_space<vmem>>, vector<1x512xf32>
    %5 = vector.broadcast %4 : vector<1x512xf32> to vector<8x512xf32>
    %6 = arith.addf %3, %5 : vector<8x512xf32>
    %cst_6 = arith.constant 0.000000e+00 : f32
    %7 = vector.broadcast %cst_6 : f32 to vector<2x512xf32>
    %cst_7 = arith.constant 0.000000e+00 : f32
    %8 = vector.broadcast %cst_7 : f32 to vector<2x512xf32>
    %9 = vector.extract_strided_slice %6 {offsets = [0, 0], sizes = [2, 512], strides = [1, 1]} : vector<8x512xf32> to vector<2x512xf32>
    %cst_8 = arith.constant 2.500000e-01 : f32
    %10 = vector.broadcast %cst_8 : f32 to vector<2x512xf32>
    %11 = arith.mulf %10, %7 : vector<2x512xf32>
    %cst_9 = arith.constant 1.000000e+00 : f32
    %12 = vector.broadcast %cst_9 : f32 to vector<2x512xf32>
    %13 = arith.subf %12, %8 : vector<2x512xf32>
    %14 = arith.mulf %11, %13 : vector<2x512xf32>
    %15 = arith.addf %14, %9 : vector<2x512xf32>
    %cst_10 = arith.constant 2.000000e-01 : f32
    %16 = vector.broadcast %cst_10 : f32 to vector<2x512xf32>
    %17 = arith.cmpf ogt, %15, %16 : vector<2x512xf32>
    %18 = arith.extui %17 : vector<2x512xi1> to vector<2x512xi32>
    %19 = arith.sitofp %18 : vector<2x512xi32> to vector<2x512xf32>
    %c0_11 = arith.constant 0 : index
    %c0_12 = arith.constant 0 : index
    %20 = vector.load %arg9[%c0_11, %c0_12] : memref<8x512xf32, #tpu.memory_space<vmem>>, vector<2x512xf32>
    tpu.vector_store %arg9[%c0_11, %c0_12], %19 {strides = array<i32>} : memref<8x512xf32, #tpu.memory_space<vmem>>, vector<2x512xf32>,
    %21 = vector.extract_strided_slice %6 {offsets = [2, 0], sizes = [2, 512], strides = [1, 1]} : vector<8x512xf32> to vector<2x512xf32>
    %cst_13 = arith.constant 2.500000e-01 : f32
    %22 = vector.broadcast %cst_13 : f32 to vector<2x512xf32>
    %23 = arith.mulf %22, %15 : vector<2x512xf32>
    %cst_14 = arith.constant 1.000000e+00 : f32
    %24 = vector.broadcast %cst_14 : f32 to vector<2x512xf32>
    %25 = arith.subf %24, %19 : vector<2x512xf32>
    %26 = arith.mulf %23, %25 : vector<2x512xf32>
    %27 = arith.addf %26, %21 : vector<2x512xf32>
    %cst_15 = arith.constant 2.000000e-01 : f32
    %28 = vector.broadcast %cst_15 : f32 to vector<2x512xf32>
    %29 = arith.cmpf ogt, %27, %28 : vector<2x512xf32>
    %30 = arith.extui %29 : vector<2x512xi1> to vector<2x512xi32>
    %31 = arith.sitofp %30 : vector<2x512xi32> to vector<2x512xf32>
    %c2 = arith.constant 2 : index
    %c0_16 = arith.constant 0 : index
    %32 = vector.load %arg9[%c2, %c0_16] : memref<8x512xf32, #tpu.memory_space<vmem>>, vector<2x512xf32>
    tpu.vector_store %arg9[%c2, %c0_16], %31 {strides = array<i32>} : memref<8x512xf32, #tpu.memory_space<vmem>>, vector<2x512xf32>,
    %33 = vector.extract_strided_slice %6 {offsets = [4, 0], sizes = [2, 512], strides = [1, 1]} : vector<8x512xf32> to vector<2x512xf32>
    %cst_17 = arith.constant 2.500000e-01 : f32
    %34 = vector.broadcast %cst_17 : f32 to vector<2x512xf32>
    %35 = arith.mulf %34, %27 : vector<2x512xf32>
    %cst_18 = arith.constant 1.000000e+00 : f32
    %36 = vector.broadcast %cst_18 : f32 to vector<2x512xf32>
    %37 = arith.subf %36, %31 : vector<2x512xf32>
    %38 = arith.mulf %35, %37 : vector<2x512xf32>
    %39 = arith.addf %38, %33 : vector<2x512xf32>
    %cst_19 = arith.constant 2.000000e-01 : f32
    %40 = vector.broadcast %cst_19 : f32 to vector<2x512xf32>
    %41 = arith.cmpf ogt, %39, %40 : vector<2x512xf32>
    %42 = arith.extui %41 : vector<2x512xi1> to vector<2x512xi32>
    %43 = arith.sitofp %42 : vector<2x512xi32> to vector<2x512xf32>
    %c4 = arith.constant 4 : index
    %c0_20 = arith.constant 0 : index
    %44 = vector.load %arg9[%c4, %c0_20] : memref<8x512xf32, #tpu.memory_space<vmem>>, vector<2x512xf32>
    tpu.vector_store %arg9[%c4, %c0_20], %43 {strides = array<i32>} : memref<8x512xf32, #tpu.memory_space<vmem>>, vector<2x512xf32>,
    %45 = vector.extract_strided_slice %6 {offsets = [6, 0], sizes = [2, 512], strides = [1, 1]} : vector<8x512xf32> to vector<2x512xf32>
    %cst_21 = arith.constant 2.500000e-01 : f32
    %46 = vector.broadcast %cst_21 : f32 to vector<2x512xf32>
    %47 = arith.mulf %46, %39 : vector<2x512xf32>
    %cst_22 = arith.constant 1.000000e+00 : f32
    %48 = vector.broadcast %cst_22 : f32 to vector<2x512xf32>
    %49 = arith.subf %48, %43 : vector<2x512xf32>
    %50 = arith.mulf %47, %49 : vector<2x512xf32>
    %51 = arith.addf %50, %45 : vector<2x512xf32>
    %cst_23 = arith.constant 2.000000e-01 : f32
    %52 = vector.broadcast %cst_23 : f32 to vector<2x512xf32>
    %53 = arith.cmpf ogt, %51, %52 : vector<2x512xf32>
    %54 = arith.extui %53 : vector<2x512xi1> to vector<2x512xi32>
    %55 = arith.sitofp %54 : vector<2x512xi32> to vector<2x512xf32>
    %c6 = arith.constant 6 : index
    %c0_24 = arith.constant 0 : index
    %56 = vector.load %arg9[%c6, %c0_24] : memref<8x512xf32, #tpu.memory_space<vmem>>, vector<2x512xf32>
    tpu.vector_store %arg9[%c6, %c0_24], %55 {strides = array<i32>} : memref<8x512xf32, #tpu.memory_space<vmem>>, vector<2x512xf32>,
    %c0_25 = arith.constant 0 : index
    %c0_26 = arith.constant 0 : index
    %57 = vector.load %arg9[%c0_25, %c0_26] : memref<8x512xf32, #tpu.memory_space<vmem>>, vector<8x512xf32>
    %58 = arith.truncf %57 : vector<8x512xf32> to vector<8x512xbf16>
    %c0_27 = arith.constant 0 : index
    %c0_28 = arith.constant 0 : index
    %59 = vector.load %arg4[%c0_27, %c0_28] : memref<512x512xbf16, #tpu.memory_space<vmem>>, vector<512x512xbf16>
    %cst_29 = arith.constant dense<0.000000e+00> : vector<8x512xf32>
    %60 = tpu.matmul %58, %59, %cst_29 {dimension_numbers = #tpu.dot_dimension_numbers<[1], [0], [0], [1], [0, 0, 1, 1], [], []>} : vector<8x512xbf16>, vector<512x512xbf16>, vector<8x512xf32> -> vector<8x512xf32>
    %c0_30 = arith.constant 0 : index
    %c0_31 = arith.constant 0 : index
    %61 = vector.load %arg5[%c0_30, %c0_31] : memref<1x512xf32, #tpu.memory_space<vmem>>, vector<1x512xf32>
    %62 = vector.broadcast %61 : vector<1x512xf32> to vector<8x512xf32>
    %63 = arith.addf %60, %62 : vector<8x512xf32>
    %cst_32 = arith.constant 0.000000e+00 : f32
    %64 = vector.broadcast %cst_32 : f32 to vector<2x512xf32>
    %cst_33 = arith.constant 0.000000e+00 : f32
    %65 = vector.broadcast %cst_33 : f32 to vector<2x512xf32>
    %66 = vector.extract_strided_slice %63 {offsets = [0, 0], sizes = [2, 512], strides = [1, 1]} : vector<8x512xf32> to vector<2x512xf32>
    %cst_34 = arith.constant 2.500000e-01 : f32
    %67 = vector.broadcast %cst_34 : f32 to vector<2x512xf32>
    %68 = arith.mulf %67, %64 : vector<2x512xf32>
    %cst_35 = arith.constant 1.000000e+00 : f32
    %69 = vector.broadcast %cst_35 : f32 to vector<2x512xf32>
    %70 = arith.subf %69, %65 : vector<2x512xf32>
    %71 = arith.mulf %68, %70 : vector<2x512xf32>
    %72 = arith.addf %71, %66 : vector<2x512xf32>
    %cst_36 = arith.constant 2.000000e-01 : f32
    %73 = vector.broadcast %cst_36 : f32 to vector<2x512xf32>
    %74 = arith.cmpf ogt, %72, %73 : vector<2x512xf32>
    %75 = arith.extui %74 : vector<2x512xi1> to vector<2x512xi32>
    %76 = arith.sitofp %75 : vector<2x512xi32> to vector<2x512xf32>
    %c0_37 = arith.constant 0 : index
    %c0_38 = arith.constant 0 : index
    %77 = vector.load %arg10[%c0_37, %c0_38] : memref<8x512xf32, #tpu.memory_space<vmem>>, vector<2x512xf32>
    tpu.vector_store %arg10[%c0_37, %c0_38], %76 {strides = array<i32>} : memref<8x512xf32, #tpu.memory_space<vmem>>, vector<2x512xf32>,
    %78 = vector.extract_strided_slice %63 {offsets = [2, 0], sizes = [2, 512], strides = [1, 1]} : vector<8x512xf32> to vector<2x512xf32>
    %cst_39 = arith.constant 2.500000e-01 : f32
    %79 = vector.broadcast %cst_39 : f32 to vector<2x512xf32>
    %80 = arith.mulf %79, %72 : vector<2x512xf32>
    %cst_40 = arith.constant 1.000000e+00 : f32
    %81 = vector.broadcast %cst_40 : f32 to vector<2x512xf32>
    %82 = arith.subf %81, %76 : vector<2x512xf32>
    %83 = arith.mulf %80, %82 : vector<2x512xf32>
    %84 = arith.addf %83, %78 : vector<2x512xf32>
    %cst_41 = arith.constant 2.000000e-01 : f32
    %85 = vector.broadcast %cst_41 : f32 to vector<2x512xf32>
    %86 = arith.cmpf ogt, %84, %85 : vector<2x512xf32>
    %87 = arith.extui %86 : vector<2x512xi1> to vector<2x512xi32>
    %88 = arith.sitofp %87 : vector<2x512xi32> to vector<2x512xf32>
    %c2_42 = arith.constant 2 : index
    %c0_43 = arith.constant 0 : index
    %89 = vector.load %arg10[%c2_42, %c0_43] : memref<8x512xf32, #tpu.memory_space<vmem>>, vector<2x512xf32>
    tpu.vector_store %arg10[%c2_42, %c0_43], %88 {strides = array<i32>} : memref<8x512xf32, #tpu.memory_space<vmem>>, vector<2x512xf32>,
    %90 = vector.extract_strided_slice %63 {offsets = [4, 0], sizes = [2, 512], strides = [1, 1]} : vector<8x512xf32> to vector<2x512xf32>
    %cst_44 = arith.constant 2.500000e-01 : f32
    %91 = vector.broadcast %cst_44 : f32 to vector<2x512xf32>
    %92 = arith.mulf %91, %84 : vector<2x512xf32>
    %cst_45 = arith.constant 1.000000e+00 : f32
    %93 = vector.broadcast %cst_45 : f32 to vector<2x512xf32>
    %94 = arith.subf %93, %88 : vector<2x512xf32>
    %95 = arith.mulf %92, %94 : vector<2x512xf32>
    %96 = arith.addf %95, %90 : vector<2x512xf32>
    %cst_46 = arith.constant 2.000000e-01 : f32
    %97 = vector.broadcast %cst_46 : f32 to vector<2x512xf32>
    %98 = arith.cmpf ogt, %96, %97 : vector<2x512xf32>
    %99 = arith.extui %98 : vector<2x512xi1> to vector<2x512xi32>
    %100 = arith.sitofp %99 : vector<2x512xi32> to vector<2x512xf32>
    %c4_47 = arith.constant 4 : index
    %c0_48 = arith.constant 0 : index
    %101 = vector.load %arg10[%c4_47, %c0_48] : memref<8x512xf32, #tpu.memory_space<vmem>>, vector<2x512xf32>
    tpu.vector_store %arg10[%c4_47, %c0_48], %100 {strides = array<i32>} : memref<8x512xf32, #tpu.memory_space<vmem>>, vector<2x512xf32>,
    %102 = vector.extract_strided_slice %63 {offsets = [6, 0], sizes = [2, 512], strides = [1, 1]} : vector<8x512xf32> to vector<2x512xf32>
    %cst_49 = arith.constant 2.500000e-01 : f32
    %103 = vector.broadcast %cst_49 : f32 to vector<2x512xf32>
    %104 = arith.mulf %103, %96 : vector<2x512xf32>
    %cst_50 = arith.constant 1.000000e+00 : f32
    %105 = vector.broadcast %cst_50 : f32 to vector<2x512xf32>
    %106 = arith.subf %105, %100 : vector<2x512xf32>
    %107 = arith.mulf %104, %106 : vector<2x512xf32>
    %108 = arith.addf %107, %102 : vector<2x512xf32>
    %cst_51 = arith.constant 2.000000e-01 : f32
    %109 = vector.broadcast %cst_51 : f32 to vector<2x512xf32>
    %110 = arith.cmpf ogt, %108, %109 : vector<2x512xf32>
    %111 = arith.extui %110 : vector<2x512xi1> to vector<2x512xi32>
    %112 = arith.sitofp %111 : vector<2x512xi32> to vector<2x512xf32>
    %c6_52 = arith.constant 6 : index
    %c0_53 = arith.constant 0 : index
    %113 = vector.load %arg10[%c6_52, %c0_53] : memref<8x512xf32, #tpu.memory_space<vmem>>, vector<2x512xf32>
    tpu.vector_store %arg10[%c6_52, %c0_53], %112 {strides = array<i32>} : memref<8x512xf32, #tpu.memory_space<vmem>>, vector<2x512xf32>,
    %c0_54 = arith.constant 0 : index
    %c0_55 = arith.constant 0 : index
    %114 = vector.load %arg10[%c0_54, %c0_55] : memref<8x512xf32, #tpu.memory_space<vmem>>, vector<8x512xf32>
    %115 = arith.truncf %114 : vector<8x512xf32> to vector<8x512xbf16>
    %c0_56 = arith.constant 0 : index
    %c0_57 = arith.constant 0 : index
    %116 = vector.load %arg6[%c0_56, %c0_57] : memref<512x128xbf16, #tpu.memory_space<vmem>>, vector<512x128xbf16>
    %cst_58 = arith.constant dense<0.000000e+00> : vector<8x128xf32>
    %117 = tpu.matmul %115, %116, %cst_58 {dimension_numbers = #tpu.dot_dimension_numbers<[1], [0], [0], [1], [0, 0, 1, 1], [], []>} : vector<8x512xbf16>, vector<512x128xbf16>, vector<8x128xf32> -> vector<8x128xf32>
    %c0_59 = arith.constant 0 : index
    %c0_60 = arith.constant 0 : index
    %118 = vector.load %arg7[%c0_59, %c0_60] : memref<1x128xf32, #tpu.memory_space<vmem>>, vector<1x128xf32>
    %119 = vector.broadcast %118 : vector<1x128xf32> to vector<8x128xf32>
    %120 = arith.addf %117, %119 : vector<8x128xf32>
    %cst_61 = arith.constant 0.000000e+00 : f32
    %121 = vector.broadcast %cst_61 : f32 to vector<2x128xf32>
    %cst_62 = arith.constant 0.000000e+00 : f32
    %122 = vector.broadcast %cst_62 : f32 to vector<2x128xf32>
    %cst_63 = arith.constant 0.000000e+00 : f32
    %123 = vector.broadcast %cst_63 : f32 to vector<2x128xf32>
    %124 = vector.extract_strided_slice %120 {offsets = [0, 0], sizes = [2, 128], strides = [1, 1]} : vector<8x128xf32> to vector<2x128xf32>
    %cst_64 = arith.constant 2.500000e-01 : f32
    %125 = vector.broadcast %cst_64 : f32 to vector<2x128xf32>
    %126 = arith.mulf %125, %121 : vector<2x128xf32>
    %cst_65 = arith.constant 1.000000e+00 : f32
    %127 = vector.broadcast %cst_65 : f32 to vector<2x128xf32>
    %128 = arith.subf %127, %122 : vector<2x128xf32>
    %129 = arith.mulf %126, %128 : vector<2x128xf32>
    %130 = arith.addf %129, %124 : vector<2x128xf32>
    %cst_66 = arith.constant 2.000000e-01 : f32
    %131 = vector.broadcast %cst_66 : f32 to vector<2x128xf32>
    %132 = arith.cmpf ogt, %130, %131 : vector<2x128xf32>
    %133 = arith.extui %132 : vector<2x128xi1> to vector<2x128xi32>
    %134 = arith.sitofp %133 : vector<2x128xi32> to vector<2x128xf32>
    %135 = arith.addf %123, %134 : vector<2x128xf32>
    %136 = vector.extract_strided_slice %120 {offsets = [2, 0], sizes = [2, 128], strides = [1, 1]} : vector<8x128xf32> to vector<2x128xf32>
    %cst_67 = arith.constant 2.500000e-01 : f32
    %137 = vector.broadcast %cst_67 : f32 to vector<2x128xf32>
    %138 = arith.mulf %137, %130 : vector<2x128xf32>
    %cst_68 = arith.constant 1.000000e+00 : f32
    %139 = vector.broadcast %cst_68 : f32 to vector<2x128xf32>
    %140 = arith.subf %139, %134 : vector<2x128xf32>
    %141 = arith.mulf %138, %140 : vector<2x128xf32>
    %142 = arith.addf %141, %136 : vector<2x128xf32>
    %cst_69 = arith.constant 2.000000e-01 : f32
    %143 = vector.broadcast %cst_69 : f32 to vector<2x128xf32>
    %144 = arith.cmpf ogt, %142, %143 : vector<2x128xf32>
    %145 = arith.extui %144 : vector<2x128xi1> to vector<2x128xi32>
    %146 = arith.sitofp %145 : vector<2x128xi32> to vector<2x128xf32>
    %147 = arith.addf %135, %146 : vector<2x128xf32>
    %148 = vector.extract_strided_slice %120 {offsets = [4, 0], sizes = [2, 128], strides = [1, 1]} : vector<8x128xf32> to vector<2x128xf32>
    %cst_70 = arith.constant 2.500000e-01 : f32
    %149 = vector.broadcast %cst_70 : f32 to vector<2x128xf32>
    %150 = arith.mulf %149, %142 : vector<2x128xf32>
    %cst_71 = arith.constant 1.000000e+00 : f32
    %151 = vector.broadcast %cst_71 : f32 to vector<2x128xf32>
    %152 = arith.subf %151, %146 : vector<2x128xf32>
    %153 = arith.mulf %150, %152 : vector<2x128xf32>
    %154 = arith.addf %153, %148 : vector<2x128xf32>
    %cst_72 = arith.constant 2.000000e-01 : f32
    %155 = vector.broadcast %cst_72 : f32 to vector<2x128xf32>
    %156 = arith.cmpf ogt, %154, %155 : vector<2x128xf32>
    %157 = arith.extui %156 : vector<2x128xi1> to vector<2x128xi32>
    %158 = arith.sitofp %157 : vector<2x128xi32> to vector<2x128xf32>
    %159 = arith.addf %147, %158 : vector<2x128xf32>
    %160 = vector.extract_strided_slice %120 {offsets = [6, 0], sizes = [2, 128], strides = [1, 1]} : vector<8x128xf32> to vector<2x128xf32>
    %cst_73 = arith.constant 2.500000e-01 : f32
    %161 = vector.broadcast %cst_73 : f32 to vector<2x128xf32>
    %162 = arith.mulf %161, %154 : vector<2x128xf32>
    %cst_74 = arith.constant 1.000000e+00 : f32
    %163 = vector.broadcast %cst_74 : f32 to vector<2x128xf32>
    %164 = arith.subf %163, %158 : vector<2x128xf32>
    %165 = arith.mulf %162, %164 : vector<2x128xf32>
    %166 = arith.addf %165, %160 : vector<2x128xf32>
    %cst_75 = arith.constant 2.000000e-01 : f32
    %167 = vector.broadcast %cst_75 : f32 to vector<2x128xf32>
    %168 = arith.cmpf ogt, %166, %167 : vector<2x128xf32>
    %169 = arith.extui %168 : vector<2x128xi1> to vector<2x128xi32>
    %170 = arith.sitofp %169 : vector<2x128xi32> to vector<2x128xf32>
    %171 = arith.addf %159, %170 : vector<2x128xf32>
    %cst_76 = arith.constant 2.500000e-01 : f32
    %172 = vector.broadcast %cst_76 : f32 to vector<2x128xf32>
    %173 = arith.mulf %171, %172 : vector<2x128xf32>
    %c0_77 = arith.constant 0 : index
    %c0_78 = arith.constant 0 : index
    %c0_79 = arith.constant 0 : index
    %174 = vector.load %arg8[%c0_77, %c0_78, %c0_79] : memref<1x2x128xf32, #tpu.memory_space<vmem>>, vector<1x2x128xf32>
    %175 = vector.shape_cast %174 : vector<1x2x128xf32> to vector<2x128xf32>
    %176 = vector.shape_cast %173 : vector<2x128xf32> to vector<1x2x128xf32>
    tpu.vector_store %arg8[%c0_77, %c0_78, %c0_79], %176 {strides = array<i32>} : memref<1x2x128xf32, #tpu.memory_space<vmem>>, vector<1x2x128xf32>,
    return
  }
  func.func @transform_0(%arg0: i32) -> (i32, i32, i32) {
    %c0_i32 = arith.constant 0 : i32
    %c0_i32_0 = arith.constant 0 : i32
    %c0_i32_1 = arith.constant 0 : i32
    return %arg0, %c0_i32, %c0_i32_0 : i32, i32, i32
  }
  func.func @transform_1(%arg0: i32) -> (i32, i32) {
    %c0_i32 = arith.constant 0 : i32
    %c0_i32_0 = arith.constant 0 : i32
    %c0_i32_1 = arith.constant 0 : i32
    return %c0_i32, %c0_i32_0 : i32, i32
  }
  func.func @transform_2(%arg0: i32) -> (i32, i32) {
    %c0_i32 = arith.constant 0 : i32
    %c0_i32_0 = arith.constant 0 : i32
    %c0_i32_1 = arith.constant 0 : i32
    return %c0_i32, %c0_i32_0 : i32, i32
  }
  func.func @transform_3(%arg0: i32) -> (i32, i32) {
    %c0_i32 = arith.constant 0 : i32
    %c0_i32_0 = arith.constant 0 : i32
    %c0_i32_1 = arith.constant 0 : i32
    return %c0_i32, %c0_i32_0 : i32, i32
  }
  func.func @transform_4(%arg0: i32) -> (i32, i32) {
    %c0_i32 = arith.constant 0 : i32
    %c0_i32_0 = arith.constant 0 : i32
    %c0_i32_1 = arith.constant 0 : i32
    return %c0_i32, %c0_i32_0 : i32, i32
  }
  func.func @transform_5(%arg0: i32) -> (i32, i32) {
    %c0_i32 = arith.constant 0 : i32
    %c0_i32_0 = arith.constant 0 : i32
    %c0_i32_1 = arith.constant 0 : i32
    return %c0_i32, %c0_i32_0 : i32, i32
  }
  func.func @transform_6(%arg0: i32) -> (i32, i32) {
    %c0_i32 = arith.constant 0 : i32
    %c0_i32_0 = arith.constant 0 : i32
    %c0_i32_1 = arith.constant 0 : i32
    return %c0_i32, %c0_i32_0 : i32, i32
  }
  func.func @transform_7(%arg0: i32) -> (i32, i32, i32) {
    %c0_i32 = arith.constant 0 : i32
    %c0_i32_0 = arith.constant 0 : i32
    %c0_i32_1 = arith.constant 0 : i32
    return %arg0, %c0_i32, %c0_i32_0 : i32, i32, i32
  }
}

</mosaic_0001>

<llo_original>
// kernel: nmnist_mlp_forward.1
$region0: #{nmnist_mlp_forward.1}
  #allocation0 [shape = 'u32[]', space=smem, size = 0x4, offset = 0x4, fixed_abs, tag = 'smem constant byte address 0x4 - core index']
  #allocation1 [shape = 'u32[144,128]{1,0:T(1,128)}', space=vmem, size = 0x12000, scoped, tag = 'internal scratch']
  #allocation2 [shape = 'f32[8,512]{1,0:T(8,128)}', space=vmem, size = 0x4000, scoped, tag = 'scratch operand']
  #allocation3 [shape = 'f32[8,512]{1,0:T(8,128)}', space=vmem, size = 0x4000, scoped, tag = 'scratch operand']
  %s0 = inlined_call_operand.vmem [shape: bf16[1,8,2432], index: 0, kind: input, shape index: {}]
  %s1 = inlined_call_operand.hbm [shape: bf16[2432,512], index: 1, kind: input, shape index: {}]
  %s2 = inlined_call_operand.hbm [shape: f32[1,512], index: 2, kind: input, shape index: {}]
  %s3 = inlined_call_operand.hbm [shape: bf16[512,512], index: 3, kind: input, shape index: {}]
  %s4 = inlined_call_operand.hbm [shape: f32[1,512], index: 4, kind: input, shape index: {}]
  %s5 = inlined_call_operand.hbm [shape: bf16[512,128], index: 5, kind: input, shape index: {}]
  %s6 = inlined_call_operand.hbm [shape: f32[1,128], index: 6, kind: input, shape index: {}]
  %s7 = inlined_call_operand.hbm [shape: f32[1,2,128], index: 7, kind: output, shape index: {}]
  %s8 = sld [smem:[#allocation0]]
  $region62: #{nmnist_mlp_forward.1} parent=0
    _
  %s10 = ssub.s32 1, %s8
  %s11 = scalar_select 0, %s10, %s8
  $region1: #{nmnist_mlp_forward.1} parent=0
    #allocation4 [shape = 'u8[2490368]{0}', space=vmem, size = 0x260000, scoped, tag = 'input window, operand 1, single buffered']
    #allocation5 [shape = 's32[1]{0}', space=sflag, size = 0x4, scoped, tag = 'scoped memory for nmnist_mlp_forward.1']
    #allocation6 [shape = 's32[1]{0}', space=sflag, size = 0x4, scoped, tag = 'scoped memory for nmnist_mlp_forward.1']
    #allocation7 [shape = 'u8[2048]{0}', space=vmem, size = 0x800, scoped, tag = 'input window, operand 2, single buffered']
    #allocation8 [shape = 's32[1]{0}', space=sflag, size = 0x4, scoped, tag = 'scoped memory for nmnist_mlp_forward.1']
    #allocation9 [shape = 'u8[524288]{0}', space=vmem, size = 0x80000, scoped, tag = 'input window, operand 3, single buffered']
    #allocation10 [shape = 'u8[2048]{0}', space=vmem, size = 0x800, scoped, tag = 'input window, operand 4, single buffered']
    #allocation11 [shape = 's32[1]{0}', space=sflag, size = 0x4, scoped, tag = 'scoped memory for nmnist_mlp_forward.1']
    #allocation12 [shape = 'u8[131072]{0}', space=vmem, size = 0x20000, scoped, tag = 'input window, operand 5, single buffered']
    #allocation13 [shape = 'u8[512]{0}', space=vmem, size = 0x400, scoped, tag = 'input window, operand 6, single buffered']
    #allocation14 [shape = 's32[1]{0}', space=sflag, size = 0x4, scoped, tag = 'scoped memory for nmnist_mlp_forward.1']
    #allocation15 [shape = 'u8[1024]{0}', space=vmem, size = 0x400, scoped, tag = 'output window, operand 0, single buffered']
    %12 = vsyncpa [#allocation5], 0
    %13 = vsyncpa [#allocation8], 0
    %14 = vsyncpa [#allocation11], 0
    %15 = vsyncpa [#allocation14], 0
    %16 = vsyncpa [#allocation6], 0
    // Predicated region
    $region2: #{nmnist_mlp_forward.1} parent=1 // pred_check
      _
    $region3: #{nmnist_mlp_forward.1} parent=1 // pred_check_branch
      %18 = sbr.rel (0) target = $region5
    $region4: #{nmnist_mlp_forward.1} parent=1 // pred_region
      _
    $region5: #{nmnist_mlp_forward.1} parent=1 // pred_fallthru
      _
    // Predicated region
    $region6: #{nmnist_mlp_forward.1} parent=1 // pred_check
      _
    $region7: #{nmnist_mlp_forward.1} parent=1 // pred_check_branch
      %20 = sbr.rel (0) target = $region9
    $region8: #{nmnist_mlp_forward.1} parent=1 // pred_region
      %s22 = ssub.s32 77824, 77824
      %23 = vsyncadd [#allocation5], %s22
      %s24 = sshll.u32 [#allocation4], 4
      %s25 = int_to_ptr.vmem [resolvable:$true] %s24
      %30 = dma.hbm_to_vmem [thread:$0]  %s1, 77824, %s25, [#allocation5], 256, 256, 16
    $region9: #{nmnist_mlp_forward.1} parent=1 // pred_fallthru
      _
    // Predicated region
    $region10: #{nmnist_mlp_forward.1} parent=1 // pred_check
      _
    $region11: #{nmnist_mlp_forward.1} parent=1 // pred_check_branch
      %32 = sbr.rel (0) target = $region13
    $region12: #{nmnist_mlp_forward.1} parent=1 // pred_region
      %s34 = ssub.s32 64, 64
      %35 = vsyncadd [#allocation8], %s34
      %s37 = sshll.u32 [#allocation7], 4
      %s38 = int_to_ptr.vmem [resolvable:$true] %s37
      %40 = dma.hbm_to_vmem [thread:$0]  %s2, 64, %s38, [#allocation8]
    $region13: #{nmnist_mlp_forward.1} parent=1 // pred_fallthru
      _
    // Predicated region
    $region14: #{nmnist_mlp_forward.1} parent=1 // pred_check
      _
    $region15: #{nmnist_mlp_forward.1} parent=1 // pred_check_branch
      %42 = sbr.rel (0) target = $region17
    $region16: #{nmnist_mlp_forward.1} parent=1 // pred_region
      %s44 = ssub.s32 16384, 16384
      %45 = vsyncadd [#allocation8], %s44
      %s46 = sshll.u32 [#allocation9], 4
      %s47 = int_to_ptr.vmem [resolvable:$true] %s46
      %52 = dma.hbm_to_vmem [thread:$0]  %s3, 16384, %s47, [#allocation8], 256, 256, 16
    $region17: #{nmnist_mlp_forward.1} parent=1 // pred_fallthru
      _
    // Predicated region
    $region18: #{nmnist_mlp_forward.1} parent=1 // pred_check
      _
    $region19: #{nmnist_mlp_forward.1} parent=1 // pred_check_branch
      %54 = sbr.rel (0) target = $region21
    $region20: #{nmnist_mlp_forward.1} parent=1 // pred_region
      %s56 = ssub.s32 64, 64
      %57 = vsyncadd [#allocation11], %s56
      %s59 = sshll.u32 [#allocation10], 4
      %s60 = int_to_ptr.vmem [resolvable:$true] %s59
      %62 = dma.hbm_to_vmem [thread:$0]  %s4, 64, %s60, [#allocation11]
    $region21: #{nmnist_mlp_forward.1} parent=1 // pred_fallthru
      _
    // Predicated region
    $region22: #{nmnist_mlp_forward.1} parent=1 // pred_check
      _
    $region23: #{nmnist_mlp_forward.1} parent=1 // pred_check_branch
      %64 = sbr.rel (0) target = $region25
    $region24: #{nmnist_mlp_forward.1} parent=1 // pred_region
      %s66 = ssub.s32 4096, 4096
      %67 = vsyncadd [#allocation11], %s66
      %s68 = sshll.u32 [#allocation12], 4
      %s69 = int_to_ptr.vmem [resolvable:$true] %s68
      %74 = dma.hbm_to_vmem [thread:$0]  %s5, 4096, %s69, [#allocation11], 64, 64, 4
    $region25: #{nmnist_mlp_forward.1} parent=1 // pred_fallthru
      _
    // Predicated region
    $region26: #{nmnist_mlp_forward.1} parent=1 // pred_check
      _
    $region27: #{nmnist_mlp_forward.1} parent=1 // pred_check_branch
      %76 = sbr.rel (0) target = $region29
    $region28: #{nmnist_mlp_forward.1} parent=1 // pred_region
      %s78 = ssub.s32 16, 16
      %79 = vsyncadd [#allocation14], %s78
      %s81 = sshll.u32 [#allocation13], 4
      %s82 = int_to_ptr.vmem [resolvable:$true] %s81
      %84 = dma.hbm_to_vmem [thread:$0]  %s6, 16, %s82, [#allocation14]
    $region29: #{nmnist_mlp_forward.1} parent=1 // pred_fallthru
      _
    // Predicated region
    $region30: #{nmnist_mlp_forward.1} parent=1 // pred_check
      _
    $region31: #{nmnist_mlp_forward.1} parent=1 // pred_check_branch
      %86 = sbr.rel (0) target = $region33
    $region32: #{nmnist_mlp_forward.1} parent=1 // pred_region
      %87 = dma.done [#allocation5], 77824
    $region33: #{nmnist_mlp_forward.1} parent=1 // pred_fallthru
      _
    // Predicated region
    $region34: #{nmnist_mlp_forward.1} parent=1 // pred_check
      _
    $region35: #{nmnist_mlp_forward.1} parent=1 // pred_check_branch
      %89 = sbr.rel (0) target = $region37
    $region36: #{nmnist_mlp_forward.1} parent=1 // pred_region
      %90 = dma.done [#allocation8], 64
    $region37: #{nmnist_mlp_forward.1} parent=1 // pred_fallthru
      _
    // Predicated region
    $region38: #{nmnist_mlp_forward.1} parent=1 // pred_check
      _
    $region39: #{nmnist_mlp_forward.1} parent=1 // pred_check_branch
      %92 = sbr.rel (0) target = $region41
    $region40: #{nmnist_mlp_forward.1} parent=1 // pred_region
      %93 = dma.done [#allocation8], 16384
    $region41: #{nmnist_mlp_forward.1} parent=1 // pred_fallthru
      _
    // Predicated region
    $region42: #{nmnist_mlp_forward.1} parent=1 // pred_check
      _
    $region43: #{nmnist_mlp_forward.1} parent=1 // pred_check_branch
      %95 = sbr.rel (0) target = $region45
    $region44: #{nmnist_mlp_forward.1} parent=1 // pred_region
      %96 = dma.done [#allocation11], 64
    $region45: #{nmnist_mlp_forward.1} parent=1 // pred_fallthru
      _
    // Predicated region
    $region46: #{nmnist_mlp_forward.1} parent=1 // pred_check
      _
    $region47: #{nmnist_mlp_forward.1} parent=1 // pred_check_branch
      %98 = sbr.rel (0) target = $region49
    $region48: #{nmnist_mlp_forward.1} parent=1 // pred_region
      %99 = dma.done [#allocation11], 4096
    $region49: #{nmnist_mlp_forward.1} parent=1 // pred_fallthru
      _
    // Predicated region
    $region50: #{nmnist_mlp_forward.1} parent=1 // pred_check
      _
    $region51: #{nmnist_mlp_forward.1} parent=1 // pred_check_branch
      %101 = sbr.rel (0) target = $region53
    $region52: #{nmnist_mlp_forward.1} parent=1 // pred_region
      %102 = dma.done [#allocation14], 16
    $region53: #{nmnist_mlp_forward.1} parent=1 // pred_fallthru
      _
    %v104 = vld [vmem:[%s0] sm:$0xff]
    %v105 = vld [vmem:[%s0 + $0x8] sm:$0xff]
    %v106 = vld [vmem:[%s0 + $0x10] sm:$0xff]
    %v107 = vld [vmem:[%s0 + $0x18] sm:$0xff]
    %v108 = vld [vmem:[%s0 + $0x20] sm:$0xff]
    %v109 = vld [vmem:[%s0 + $0x28] sm:$0xff]
    %v110 = vld [vmem:[%s0 + $0x30] sm:$0xff]
    %v111 = vld [vmem:[%s0 + $0x38] sm:$0xff]
    %v112 = vld [vmem:[%s0 + $0x40] sm:$0xff]
    %v113 = vld [vmem:[%s0 + $0x48] sm:$0xf]
    %v114 = vld [vmem:[#allocation4] sm:$0xff]
    %v115 = vld [vmem:[#allocation4 + $0x8] sm:$0xff]
    %v116 = vld [vmem:[#allocation4 + $0x10] sm:$0xff]
    %v117 = vld [vmem:[#allocation4 + $0x18] sm:$0xff]
    %v118 = vld [vmem:[#allocation4 + $0x20] sm:$0xff]
    %v119 = vld [vmem:[#allocation4 + $0x28] sm:$0xff]
    %v120 = vld [vmem:[#allocation4 + $0x30] sm:$0xff]
    %v121 = vld [vmem:[#allocation4 + $0x38] sm:$0xff]
    %v122 = vld [vmem:[#allocation4 + $0x40] sm:$0xff]
    %v123 = vld [vmem:[#allocation4 + $0x48] sm:$0xff]
    %v124 = vld [vmem:[#allocation4 + $0x50] sm:$0xff]
    %v125 = vld [vmem:[#allocation4 + $0x58] sm:$0xff]
    %v126 = vld [vmem:[#allocation4 + $0x60] sm:$0xff]
    %v127 = vld [vmem:[#allocation4 + $0x68] sm:$0xff]
    %v128 = vld [vmem:[#allocation4 + $0x70] sm:$0xff]
    %v129 = vld [vmem:[#allocation4 + $0x78] sm:$0xff]
    %v130 = vld [vmem:[#allocation4 + $0x80] sm:$0xff]
    %v131 = vld [vmem:[#allocation4 + $0x88] sm:$0xff]
    %v132 = vld [vmem:[#allocation4 + $0x90] sm:$0xff]
    %v133 = vld [vmem:[#allocation4 + $0x98] sm:$0xff]
    %v134 = vld [vmem:[#allocation4 + $0xa0] sm:$0xff]
    %v135 = vld [vmem:[#allocation4 + $0xa8] sm:$0xff]
    %v136 = vld [vmem:[#allocation4 + $0xb0] sm:$0xff]
    %v137 = vld [vmem:[#allocation4 + $0xb8] sm:$0xff]
    %v138 = vld [vmem:[#allocation4 + $0xc0] sm:$0xff]
    %v139 = vld [vmem:[#allocation4 + $0xc8] sm:$0xff]
    %v140 = vld [vmem:[#allocation4 + $0xd0] sm:$0xff]
    %v141 = vld [vmem:[#allocation4 + $0xd8] sm:$0xff]
    %v142 = vld [vmem:[#allocation4 + $0xe0] sm:$0xff]
    %v143 = vld [vmem:[#allocation4 + $0xe8] sm:$0xff]
    %v144 = vld [vmem:[#allocation4 + $0xf0] sm:$0xff]
    %v145 = vld [vmem:[#allocation4 + $0xf8] sm:$0xff]
    %v146 = vld [vmem:[#allocation4 + $0x100] sm:$0xff]
    %v147 = vld [vmem:[#allocation4 + $0x108] sm:$0xff]
    %v148 = vld [vmem:[#allocation4 + $0x110] sm:$0xff]
    %v149 = vld [vmem:[#allocation4 + $0x118] sm:$0xff]
    %v150 = vld [vmem:[#allocation4 + $0x120] sm:$0xff]
    %v151 = vld [vmem:[#allocation4 + $0x128] sm:$0xff]
    %v152 = vld [vmem:[#allocation4 + $0x130] sm:$0xff]
    %v153 = vld [vmem:[#allocation4 + $0x138] sm:$0xff]
    %v154 = vld [vmem:[#allocation4 + $0x140] sm:$0xff]
    %v155 = vld [vmem:[#allocation4 + $0x148] sm:$0xff]
    %v156 = vld [vmem:[#allocation4 + $0x150] sm:$0xff]
    %v157 = vld [vmem:[#allocation4 + $0x158] sm:$0xff]
    %v158 = vld [vmem:[#allocation4 + $0x160] sm:$0xff]
    %v159 = vld [vmem:[#allocation4 + $0x168] sm:$0xff]
    %v160 = vld [vmem:[#allocation4 + $0x170] sm:$0xff]
    %v161 = vld [vmem:[#allocation4 + $0x178] sm:$0xff]
    %v162 = vld [vmem:[#allocation4 + $0x180] sm:$0xff]
    %v163 = vld [vmem:[#allocation4 + $0x188] sm:$0xff]
    %v164 = vld [vmem:[#allocation4 + $0x190] sm:$0xff]
    %v165 = vld [vmem:[#allocation4 + $0x198] sm:$0xff]
    %v166 = vld [vmem:[#allocation4 + $0x1a0] sm:$0xff]
    %v167 = vld [vmem:[#allocation4 + $0x1a8] sm:$0xff]
    %v168 = vld [vmem:[#allocation4 + $0x1b0] sm:$0xff]
    %v169 = vld [vmem:[#allocation4 + $0x1b8] sm:$0xff]
    %v170 = vld [vmem:[#allocation4 + $0x1c0] sm:$0xff]
    %v171 = vld [vmem:[#allocation4 + $0x1c8] sm:$0xff]
    %v172 = vld [vmem:[#allocation4 + $0x1d0] sm:$0xff]
    %v173 = vld [vmem:[#allocation4 + $0x1d8] sm:$0xff]
    %v174 = vld [vmem:[#allocation4 + $0x1e0] sm:$0xff]
    %v175 = vld [vmem:[#allocation4 + $0x1e8] sm:$0xff]
    %v176 = vld [vmem:[#allocation4 + $0x1f0] sm:$0xff]
    %v177 = vld [vmem:[#allocation4 + $0x1f8] sm:$0xff]
    %v178 = vld [vmem:[#allocation4 + $0x200] sm:$0xff]
    %v179 = vld [vmem:[#allocation4 + $0x208] sm:$0xff]
    %v180 = vld [vmem:[#allocation4 + $0x210] sm:$0xff]
    %v181 = vld [vmem:[#allocation4 + $0x218] sm:$0xff]
    %v182 = vld [vmem:[#allocation4 + $0x220] sm:$0xff]
    %v183 = vld [vmem:[#allocation4 + $0x228] sm:$0xff]
    %v184 = vld [vmem:[#allocation4 + $0x230] sm:$0xff]
    %v185 = vld [vmem:[#allocation4 + $0x238] sm:$0xff]
    %v186 = vld [vmem:[#allocation4 + $0x240] sm:$0xff]
    %v187 = vld [vmem:[#allocation4 + $0x248] sm:$0xff]
    %v188 = vld [vmem:[#allocation4 + $0x250] sm:$0xff]
    %v189 = vld [vmem:[#allocation4 + $0x258] sm:$0xff]
    %v190 = vld [vmem:[#allocation4 + $0x260] sm:$0xff]
    %v191 = vld [vmem:[#allocation4 + $0x268] sm:$0xff]
    %v192 = vld [vmem:[#allocation4 + $0x270] sm:$0xff]
    %v193 = vld [vmem:[#allocation4 + $0x278] sm:$0xff]
    %v194 = vld [vmem:[#allocation4 + $0x280] sm:$0xff]
    %v195 = vld [vmem:[#allocation4 + $0x288] sm:$0xff]
    %v196 = vld [vmem:[#allocation4 + $0x290] sm:$0xff]
    %v197 = vld [vmem:[#allocation4 + $0x298] sm:$0xff]
    %v198 = vld [vmem:[#allocation4 + $0x2a0] sm:$0xff]
    %v199 = vld [vmem:[#allocation4 + $0x2a8] sm:$0xff]
    %v200 = vld [vmem:[#allocation4 + $0x2b0] sm:$0xff]
    %v201 = vld [vmem:[#allocation4 + $0x2b8] sm:$0xff]
    %v202 = vld [vmem:[#allocation4 + $0x2c0] sm:$0xff]
    %v203 = vld [vmem:[#allocation4 + $0x2c8] sm:$0xff]
    %v204 = vld [vmem:[#allocation4 + $0x2d0] sm:$0xff]
    %v205 = vld [vmem:[#allocation4 + $0x2d8] sm:$0xff]
    %v206 = vld [vmem:[#allocation4 + $0x2e0] sm:$0xff]
    %v207 = vld [vmem:[#allocation4 + $0x2e8] sm:$0xff]
    %v208 = vld [vmem:[#allocation4 + $0x2f0] sm:$0xff]
    %v209 = vld [vmem:[#allocation4 + $0x2f8] sm:$0xff]
    %v210 = vld [vmem:[#allocation4 + $0x300] sm:$0xff]
    %v211 = vld [vmem:[#allocation4 + $0x308] sm:$0xff]
    %v212 = vld [vmem:[#allocation4 + $0x310] sm:$0xff]
    %v213 = vld [vmem:[#allocation4 + $0x318] sm:$0xff]
    %v214 = vld [vmem:[#allocation4 + $0x320] sm:$0xff]
    %v215 = vld [vmem:[#allocation4 + $0x328] sm:$0xff]
    %v216 = vld [vmem:[#allocation4 + $0x330] sm:$0xff]
    %v217 = vld [vmem:[#allocation4 + $0x338] sm:$0xff]
    %v218 = vld [vmem:[#allocation4 + $0x340] sm:$0xff]
    %v219 = vld [vmem:[#allocation4 + $0x348] sm:$0xff]
    %v220 = vld [vmem:[#allocation4 + $0x350] sm:$0xff]
    %v221 = vld [vmem:[#allocation4 + $0x358] sm:$0xff]
    %v222 = vld [vmem:[#allocation4 + $0x360] sm:$0xff]
    %v223 = vld [vmem:[#allocation4 + $0x368] sm:$0xff]
    %v224 = vld [vmem:[#allocation4 + $0x370] sm:$0xff]
    %v225 = vld [vmem:[#allocation4 + $0x378] sm:$0xff]
    %v226 = vld [vmem:[#allocation4 + $0x380] sm:$0xff]
    %v227 = vld [vmem:[#allocation4 + $0x388] sm:$0xff]
    %v228 = vld [vmem:[#allocation4 + $0x390] sm:$0xff]
    %v229 = vld [vmem:[#allocation4 + $0x398] sm:$0xff]
    %v230 = vld [vmem:[#allocation4 + $0x3a0] sm:$0xff]
    %v231 = vld [vmem:[#allocation4 + $0x3a8] sm:$0xff]
    %v232 = vld [vmem:[#allocation4 + $0x3b0] sm:$0xff]
    %v233 = vld [vmem:[#allocation4 + $0x3b8] sm:$0xff]
    %v234 = vld [vmem:[#allocation4 + $0x3c0] sm:$0xff]
    %v235 = vld [vmem:[#allocation4 + $0x3c8] sm:$0xff]
    %v236 = vld [vmem:[#allocation4 + $0x3d0] sm:$0xff]
    %v237 = vld [vmem:[#allocation4 + $0x3d8] sm:$0xff]
    %v238 = vld [vmem:[#allocation4 + $0x3e0] sm:$0xff]
    %v239 = vld [vmem:[#allocation4 + $0x3e8] sm:$0xff]
    %v240 = vld [vmem:[#allocation4 + $0x3f0] sm:$0xff]
    %v241 = vld [vmem:[#allocation4 + $0x3f8] sm:$0xff]
    %v242 = vld [vmem:[#allocation4 + $0x400] sm:$0xff]
    %v243 = vld [vmem:[#allocation4 + $0x408] sm:$0xff]
    %v244 = vld [vmem:[#allocation4 + $0x410] sm:$0xff]
    %v245 = vld [vmem:[#allocation4 + $0x418] sm:$0xff]
    %v246 = vld [vmem:[#allocation4 + $0x420] sm:$0xff]
    %v247 = vld [vmem:[#allocation4 + $0x428] sm:$0xff]
    %v248 = vld [vmem:[#allocation4 + $0x430] sm:$0xff]
    %v249 = vld [vmem:[#allocation4 + $0x438] sm:$0xff]
    %v250 = vld [vmem:[#allocation4 + $0x440] sm:$0xff]
    %v251 = vld [vmem:[#allocation4 + $0x448] sm:$0xff]
    %v252 = vld [vmem:[#allocation4 + $0x450] sm:$0xff]
    %v253 = vld [vmem:[#allocation4 + $0x458] sm:$0xff]
    %v254 = vld [vmem:[#allocation4 + $0x460] sm:$0xff]
    %v255 = vld [vmem:[#allocation4 + $0x468] sm:$0xff]
    %v256 = vld [vmem:[#allocation4 + $0x470] sm:$0xff]
    %v257 = vld [vmem:[#allocation4 + $0x478] sm:$0xff]
    %v258 = vld [vmem:[#allocation4 + $0x480] sm:$0xff]
    %v259 = vld [vmem:[#allocation4 + $0x488] sm:$0xff]
    %v260 = vld [vmem:[#allocation4 + $0x490] sm:$0xff]
    %v261 = vld [vmem:[#allocation4 + $0x498] sm:$0xff]
    %v262 = vld [vmem:[#allocation4 + $0x4a0] sm:$0xff]
    %v263 = vld [vmem:[#allocation4 + $0x4a8] sm:$0xff]
    %v264 = vld [vmem:[#allocation4 + $0x4b0] sm:$0xff]
    %v265 = vld [vmem:[#allocation4 + $0x4b8] sm:$0xff]
    %v266 = vld [vmem:[#allocation4 + $0x4c0] sm:$0xff]
    %v267 = vld [vmem:[#allocation4 + $0x4c8] sm:$0xff]
    %v268 = vld [vmem:[#allocation4 + $0x4d0] sm:$0xff]
    %v269 = vld [vmem:[#allocation4 + $0x4d8] sm:$0xff]
    %v270 = vld [vmem:[#allocation4 + $0x4e0] sm:$0xff]
    %v271 = vld [vmem:[#allocation4 + $0x4e8] sm:$0xff]
    %v272 = vld [vmem:[#allocation4 + $0x4f0] sm:$0xff]
    %v273 = vld [vmem:[#allocation4 + $0x4f8] sm:$0xff]
    %v274 = vld [vmem:[#allocation4 + $0x500] sm:$0xff]
    %v275 = vld [vmem:[#allocation4 + $0x508] sm:$0xff]
    %v276 = vld [vmem:[#allocation4 + $0x510] sm:$0xff]
    %v277 = vld [vmem:[#allocation4 + $0x518] sm:$0xff]
    %v278 = vld [vmem:[#allocation4 + $0x520] sm:$0xff]
    %v279 = vld [vmem:[#allocation4 + $0x528] sm:$0xff]
    %v280 = vld [vmem:[#allocation4 + $0x530] sm:$0xff]
    %v281 = vld [vmem:[#allocation4 + $0x538] sm:$0xff]
    %v282 = vld [vmem:[#allocation4 + $0x540] sm:$0xff]
    %v283 = vld [vmem:[#allocation4 + $0x548] sm:$0xff]
    %v284 = vld [vmem:[#allocation4 + $0x550] sm:$0xff]
    %v285 = vld [vmem:[#allocation4 + $0x558] sm:$0xff]
    %v286 = vld [vmem:[#allocation4 + $0x560] sm:$0xff]
    %v287 = vld [vmem:[#allocation4 + $0x568] sm:$0xff]
    %v288 = vld [vmem:[#allocation4 + $0x570] sm:$0xff]
    %v289 = vld [vmem:[#allocation4 + $0x578] sm:$0xff]
    %v290 = vld [vmem:[#allocation4 + $0x580] sm:$0xff]
    %v291 = vld [vmem:[#allocation4 + $0x588] sm:$0xff]
    %v292 = vld [vmem:[#allocation4 + $0x590] sm:$0xff]
    %v293 = vld [vmem:[#allocation4 + $0x598] sm:$0xff]
    %v294 = vld [vmem:[#allocation4 + $0x5a0] sm:$0xff]
    %v295 = vld [vmem:[#allocation4 + $0x5a8] sm:$0xff]
    %v296 = vld [vmem:[#allocation4 + $0x5b0] sm:$0xff]
    %v297 = vld [vmem:[#allocation4 + $0x5b8] sm:$0xff]
    %v298 = vld [vmem:[#allocation4 + $0x5c0] sm:$0xff]
    %v299 = vld [vmem:[#allocation4 + $0x5c8] sm:$0xff]
    %v300 = vld [vmem:[#allocation4 + $0x5d0] sm:$0xff]
    %v301 = vld [vmem:[#allocation4 + $0x5d8] sm:$0xff]
    %v302 = vld [vmem:[#allocation4 + $0x5e0] sm:$0xff]
    %v303 = vld [vmem:[#allocation4 + $0x5e8] sm:$0xff]
    %v304 = vld [vmem:[#allocation4 + $0x5f0] sm:$0xff]
    %v305 = vld [vmem:[#allocation4 + $0x5f8] sm:$0xff]
    %v306 = vld [vmem:[#allocation4 + $0x600] sm:$0xff]
    %v307 = vld [vmem:[#allocation4 + $0x608] sm:$0xff]
    %v308 = vld [vmem:[#allocation4 + $0x610] sm:$0xff]
    %v309 = vld [vmem:[#allocation4 + $0x618] sm:$0xff]
    %v310 = vld [vmem:[#allocation4 + $0x620] sm:$0xff]
    %v311 = vld [vmem:[#allocation4 + $0x628] sm:$0xff]
    %v312 = vld [vmem:[#allocation4 + $0x630] sm:$0xff]
    %v313 = vld [vmem:[#allocation4 + $0x638] sm:$0xff]
    %v314 = vld [vmem:[#allocation4 + $0x640] sm:$0xff]
    %v315 = vld [vmem:[#allocation4 + $0x648] sm:$0xff]
    %v316 = vld [vmem:[#allocation4 + $0x650] sm:$0xff]
    %v317 = vld [vmem:[#allocation4 + $0x658] sm:$0xff]
    %v318 = vld [vmem:[#allocation4 + $0x660] sm:$0xff]
    %v319 = vld [vmem:[#allocation4 + $0x668] sm:$0xff]
    %v320 = vld [vmem:[#allocation4 + $0x670] sm:$0xff]
    %v321 = vld [vmem:[#allocation4 + $0x678] sm:$0xff]
    %v322 = vld [vmem:[#allocation4 + $0x680] sm:$0xff]
    %v323 = vld [vmem:[#allocation4 + $0x688] sm:$0xff]
    %v324 = vld [vmem:[#allocation4 + $0x690] sm:$0xff]
    %v325 = vld [vmem:[#allocation4 + $0x698] sm:$0xff]
    %v326 = vld [vmem:[#allocation4 + $0x6a0] sm:$0xff]
    %v327 = vld [vmem:[#allocation4 + $0x6a8] sm:$0xff]
    %v328 = vld [vmem:[#allocation4 + $0x6b0] sm:$0xff]
    %v329 = vld [vmem:[#allocation4 + $0x6b8] sm:$0xff]
    %v330 = vld [vmem:[#allocation4 + $0x6c0] sm:$0xff]
    %v331 = vld [vmem:[#allocation4 + $0x6c8] sm:$0xff]
    %v332 = vld [vmem:[#allocation4 + $0x6d0] sm:$0xff]
    %v333 = vld [vmem:[#allocation4 + $0x6d8] sm:$0xff]
    %v334 = vld [vmem:[#allocation4 + $0x6e0] sm:$0xff]
    %v335 = vld [vmem:[#allocation4 + $0x6e8] sm:$0xff]
    %v336 = vld [vmem:[#allocation4 + $0x6f0] sm:$0xff]
    %v337 = vld [vmem:[#allocation4 + $0x6f8] sm:$0xff]
    %v338 = vld [vmem:[#allocation4 + $0x700] sm:$0xff]
    %v339 = vld [vmem:[#allocation4 + $0x708] sm:$0xff]
    %v340 = vld [vmem:[#allocation4 + $0x710] sm:$0xff]
    %v341 = vld [vmem:[#allocation4 + $0x718] sm:$0xff]
    %v342 = vld [vmem:[#allocation4 + $0x720] sm:$0xff]
    %v343 = vld [vmem:[#allocation4 + $0x728] sm:$0xff]
    %v344 = vld [vmem:[#allocation4 + $0x730] sm:$0xff]
    %v345 = vld [vmem:[#allocation4 + $0x738] sm:$0xff]
    %v346 = vld [vmem:[#allocation4 + $0x740] sm:$0xff]
    %v347 = vld [vmem:[#allocation4 + $0x748] sm:$0xff]
    %v348 = vld [vmem:[#allocation4 + $0x750] sm:$0xff]
    %v349 = vld [vmem:[#allocation4 + $0x758] sm:$0xff]
    %v350 = vld [vmem:[#allocation4 + $0x760] sm:$0xff]
    %v351 = vld [vmem:[#allocation4 + $0x768] sm:$0xff]
    %v352 = vld [vmem:[#allocation4 + $0x770] sm:$0xff]
    %v353 = vld [vmem:[#allocation4 + $0x778] sm:$0xff]
    %v354 = vld [vmem:[#allocation4 + $0x780] sm:$0xff]
    %v355 = vld [vmem:[#allocation4 + $0x788] sm:$0xff]
    %v356 = vld [vmem:[#allocation4 + $0x790] sm:$0xff]
    %v357 = vld [vmem:[#allocation4 + $0x798] sm:$0xff]
    %v358 = vld [vmem:[#allocation4 + $0x7a0] sm:$0xff]
    %v359 = vld [vmem:[#allocation4 + $0x7a8] sm:$0xff]
    %v360 = vld [vmem:[#allocation4 + $0x7b0] sm:$0xff]
    %v361 = vld [vmem:[#allocation4 + $0x7b8] sm:$0xff]
    %v362 = vld [vmem:[#allocation4 + $0x7c0] sm:$0xff]
    %v363 = vld [vmem:[#allocation4 + $0x7c8] sm:$0xff]
    %v364 = vld [vmem:[#allocation4 + $0x7d0] sm:$0xff]
    %v365 = vld [vmem:[#allocation4 + $0x7d8] sm:$0xff]
    %v366 = vld [vmem:[#allocation4 + $0x7e0] sm:$0xff]
    %v367 = vld [vmem:[#allocation4 + $0x7e8] sm:$0xff]
    %v368 = vld [vmem:[#allocation4 + $0x7f0] sm:$0xff]
    %v369 = vld [vmem:[#allocation4 + $0x7f8] sm:$0xff]
    %v370 = vld [vmem:[#allocation4 + $0x800] sm:$0xff]
    %v371 = vld [vmem:[#allocation4 + $0x808] sm:$0xff]
    %v372 = vld [vmem:[#allocation4 + $0x810] sm:$0xff]
    %v373 = vld [vmem:[#allocation4 + $0x818] sm:$0xff]
    %v374 = vld [vmem:[#allocation4 + $0x820] sm:$0xff]
    %v375 = vld [vmem:[#allocation4 + $0x828] sm:$0xff]
    %v376 = vld [vmem:[#allocation4 + $0x830] sm:$0xff]
    %v377 = vld [vmem:[#allocation4 + $0x838] sm:$0xff]
    %v378 = vld [vmem:[#allocation4 + $0x840] sm:$0xff]
    %v379 = vld [vmem:[#allocation4 + $0x848] sm:$0xff]
    %v380 = vld [vmem:[#allocation4 + $0x850] sm:$0xff]
    %v381 = vld [vmem:[#allocation4 + $0x858] sm:$0xff]
    %v382 = vld [vmem:[#allocation4 + $0x860] sm:$0xff]
    %v383 = vld [vmem:[#allocation4 + $0x868] sm:$0xff]
    %v384 = vld [vmem:[#allocation4 + $0x870] sm:$0xff]
    %v385 = vld [vmem:[#allocation4 + $0x878] sm:$0xff]
    %v386 = vld [vmem:[#allocation4 + $0x880] sm:$0xff]
    %v387 = vld [vmem:[#allocation4 + $0x888] sm:$0xff]
    %v388 = vld [vmem:[#allocation4 + $0x890] sm:$0xff]
    %v389 = vld [vmem:[#allocation4 + $0x898] sm:$0xff]
    %v390 = vld [vmem:[#allocation4 + $0x8a0] sm:$0xff]
    %v391 = vld [vmem:[#allocation4 + $0x8a8] sm:$0xff]
    %v392 = vld [vmem:[#allocation4 + $0x8b0] sm:$0xff]
    %v393 = vld [vmem:[#allocation4 + $0x8b8] sm:$0xff]
    %v394 = vld [vmem:[#allocation4 + $0x8c0] sm:$0xff]
    %v395 = vld [vmem:[#allocation4 + $0x8c8] sm:$0xff]
    %v396 = vld [vmem:[#allocation4 + $0x8d0] sm:$0xff]
    %v397 = vld [vmem:[#allocation4 + $0x8d8] sm:$0xff]
    %v398 = vld [vmem:[#allocation4 + $0x8e0] sm:$0xff]
    %v399 = vld [vmem:[#allocation4 + $0x8e8] sm:$0xff]
    %v400 = vld [vmem:[#allocation4 + $0x8f0] sm:$0xff]
    %v401 = vld [vmem:[#allocation4 + $0x8f8] sm:$0xff]
    %v402 = vld [vmem:[#allocation4 + $0x900] sm:$0xff]
    %v403 = vld [vmem:[#allocation4 + $0x908] sm:$0xff]
    %v404 = vld [vmem:[#allocation4 + $0x910] sm:$0xff]
    %v405 = vld [vmem:[#allocation4 + $0x918] sm:$0xff]
    %v406 = vld [vmem:[#allocation4 + $0x920] sm:$0xff]
    %v407 = vld [vmem:[#allocation4 + $0x928] sm:$0xff]
    %v408 = vld [vmem:[#allocation4 + $0x930] sm:$0xff]
    %v409 = vld [vmem:[#allocation4 + $0x938] sm:$0xff]
    %v410 = vld [vmem:[#allocation4 + $0x940] sm:$0xff]
    %v411 = vld [vmem:[#allocation4 + $0x948] sm:$0xff]
    %v412 = vld [vmem:[#allocation4 + $0x950] sm:$0xff]
    %v413 = vld [vmem:[#allocation4 + $0x958] sm:$0xff]
    %v414 = vld [vmem:[#allocation4 + $0x960] sm:$0xff]
    %v415 = vld [vmem:[#allocation4 + $0x968] sm:$0xff]
    %v416 = vld [vmem:[#allocation4 + $0x970] sm:$0xff]
    %v417 = vld [vmem:[#allocation4 + $0x978] sm:$0xff]
    %v418 = vld [vmem:[#allocation4 + $0x980] sm:$0xff]
    %v419 = vld [vmem:[#allocation4 + $0x988] sm:$0xff]
    %v420 = vld [vmem:[#allocation4 + $0x990] sm:$0xff]
    %v421 = vld [vmem:[#allocation4 + $0x998] sm:$0xff]
    %v422 = vld [vmem:[#allocation4 + $0x9a0] sm:$0xff]
    %v423 = vld [vmem:[#allocation4 + $0x9a8] sm:$0xff]
    %v424 = vld [vmem:[#allocation4 + $0x9b0] sm:$0xff]
    %v425 = vld [vmem:[#allocation4 + $0x9b8] sm:$0xff]
    %v426 = vld [vmem:[#allocation4 + $0x9c0] sm:$0xff]
    %v427 = vld [vmem:[#allocation4 + $0x9c8] sm:$0xff]
    %v428 = vld [vmem:[#allocation4 + $0x9d0] sm:$0xff]
    %v429 = vld [vmem:[#allocation4 + $0x9d8] sm:$0xff]
    %v430 = vld [vmem:[#allocation4 + $0x9e0] sm:$0xff]
    %v431 = vld [vmem:[#allocation4 + $0x9e8] sm:$0xff]
    %v432 = vld [vmem:[#allocation4 + $0x9f0] sm:$0xff]
    %v433 = vld [vmem:[#allocation4 + $0x9f8] sm:$0xff]
    %v434 = vld [vmem:[#allocation4 + $0xa00] sm:$0xff]
    %v435 = vld [vmem:[#allocation4 + $0xa08] sm:$0xff]
    %v436 = vld [vmem:[#allocation4 + $0xa10] sm:$0xff]
    %v437 = vld [vmem:[#allocation4 + $0xa18] sm:$0xff]
    %v438 = vld [vmem:[#allocation4 + $0xa20] sm:$0xff]
    %v439 = vld [vmem:[#allocation4 + $0xa28] sm:$0xff]
    %v440 = vld [vmem:[#allocation4 + $0xa30] sm:$0xff]
    %v441 = vld [vmem:[#allocation4 + $0xa38] sm:$0xff]
    %v442 = vld [vmem:[#allocation4 + $0xa40] sm:$0xff]
    %v443 = vld [vmem:[#allocation4 + $0xa48] sm:$0xff]
    %v444 = vld [vmem:[#allocation4 + $0xa50] sm:$0xff]
    %v445 = vld [vmem:[#allocation4 + $0xa58] sm:$0xff]
    %v446 = vld [vmem:[#allocation4 + $0xa60] sm:$0xff]
    %v447 = vld [vmem:[#allocation4 + $0xa68] sm:$0xff]
    %v448 = vld [vmem:[#allocation4 + $0xa70] sm:$0xff]
    %v449 = vld [vmem:[#allocation4 + $0xa78] sm:$0xff]
    %v450 = vld [vmem:[#allocation4 + $0xa80] sm:$0xff]
    %v451 = vld [vmem:[#allocation4 + $0xa88] sm:$0xff]
    %v452 = vld [vmem:[#allocation4 + $0xa90] sm:$0xff]
    %v453 = vld [vmem:[#allocation4 + $0xa98] sm:$0xff]
    %v454 = vld [vmem:[#allocation4 + $0xaa0] sm:$0xff]
    %v455 = vld [vmem:[#allocation4 + $0xaa8] sm:$0xff]
    %v456 = vld [vmem:[#allocation4 + $0xab0] sm:$0xff]
    %v457 = vld [vmem:[#allocation4 + $0xab8] sm:$0xff]
    %v458 = vld [vmem:[#allocation4 + $0xac0] sm:$0xff]
    %v459 = vld [vmem:[#allocation4 + $0xac8] sm:$0xff]
    %v460 = vld [vmem:[#allocation4 + $0xad0] sm:$0xff]
    %v461 = vld [vmem:[#allocation4 + $0xad8] sm:$0xff]
    %v462 = vld [vmem:[#allocation4 + $0xae0] sm:$0xff]
    %v463 = vld [vmem:[#allocation4 + $0xae8] sm:$0xff]
    %v464 = vld [vmem:[#allocation4 + $0xaf0] sm:$0xff]
    %v465 = vld [vmem:[#allocation4 + $0xaf8] sm:$0xff]
    %v466 = vld [vmem:[#allocation4 + $0xb00] sm:$0xff]
    %v467 = vld [vmem:[#allocation4 + $0xb08] sm:$0xff]
    %v468 = vld [vmem:[#allocation4 + $0xb10] sm:$0xff]
    %v469 = vld [vmem:[#allocation4 + $0xb18] sm:$0xff]
    %v470 = vld [vmem:[#allocation4 + $0xb20] sm:$0xff]
    %v471 = vld [vmem:[#allocation4 + $0xb28] sm:$0xff]
    %v472 = vld [vmem:[#allocation4 + $0xb30] sm:$0xff]
    %v473 = vld [vmem:[#allocation4 + $0xb38] sm:$0xff]
    %v474 = vld [vmem:[#allocation4 + $0xb40] sm:$0xff]
    %v475 = vld [vmem:[#allocation4 + $0xb48] sm:$0xff]
    %v476 = vld [vmem:[#allocation4 + $0xb50] sm:$0xff]
    %v477 = vld [vmem:[#allocation4 + $0xb58] sm:$0xff]
    %v478 = vld [vmem:[#allocation4 + $0xb60] sm:$0xff]
    %v479 = vld [vmem:[#allocation4 + $0xb68] sm:$0xff]
    %v480 = vld [vmem:[#allocation4 + $0xb70] sm:$0xff]
    %v481 = vld [vmem:[#allocation4 + $0xb78] sm:$0xff]
    %v482 = vld [vmem:[#allocation4 + $0xb80] sm:$0xff]
    %v483 = vld [vmem:[#allocation4 + $0xb88] sm:$0xff]
    %v484 = vld [vmem:[#allocation4 + $0xb90] sm:$0xff]
    %v485 = vld [vmem:[#allocation4 + $0xb98] sm:$0xff]
    %v486 = vld [vmem:[#allocation4 + $0xba0] sm:$0xff]
    %v487 = vld [vmem:[#allocation4 + $0xba8] sm:$0xff]
    %v488 = vld [vmem:[#allocation4 + $0xbb0] sm:$0xff]
    %v489 = vld [vmem:[#allocation4 + $0xbb8] sm:$0xff]
    %v490 = vld [vmem:[#allocation4 + $0xbc0] sm:$0xff]
    %v491 = vld [vmem:[#allocation4 + $0xbc8] sm:$0xff]
    %v492 = vld [vmem:[#allocation4 + $0xbd0] sm:$0xff]
    %v493 = vld [vmem:[#allocation4 + $0xbd8] sm:$0xff]
    %v494 = vld [vmem:[#allocation4 + $0xbe0] sm:$0xff]
    %v495 = vld [vmem:[#allocation4 + $0xbe8] sm:$0xff]
    %v496 = vld [vmem:[#allocation4 + $0xbf0] sm:$0xff]
    %v497 = vld [vmem:[#allocation4 + $0xbf8] sm:$0xff]
    %v498 = vld [vmem:[#allocation4 + $0xc00] sm:$0xff]
    %v499 = vld [vmem:[#allocation4 + $0xc08] sm:$0xff]
    %v500 = vld [vmem:[#allocation4 + $0xc10] sm:$0xff]
    %v501 = vld [vmem:[#allocation4 + $0xc18] sm:$0xff]
    %v502 = vld [vmem:[#allocation4 + $0xc20] sm:$0xff]
    %v503 = vld [vmem:[#allocation4 + $0xc28] sm:$0xff]
    %v504 = vld [vmem:[#allocation4 + $0xc30] sm:$0xff]
    %v505 = vld [vmem:[#allocation4 + $0xc38] sm:$0xff]
    %v506 = vld [vmem:[#allocation4 + $0xc40] sm:$0xff]
    %v507 = vld [vmem:[#allocation4 + $0xc48] sm:$0xff]
    %v508 = vld [vmem:[#allocation4 + $0xc50] sm:$0xff]
    %v509 = vld [vmem:[#allocation4 + $0xc58] sm:$0xff]
    %v510 = vld [vmem:[#allocation4 + $0xc60] sm:$0xff]
    %v511 = vld [vmem:[#allocation4 + $0xc68] sm:$0xff]
    %v512 = vld [vmem:[#allocation4 + $0xc70] sm:$0xff]
    %v513 = vld [vmem:[#allocation4 + $0xc78] sm:$0xff]
    %v514 = vld [vmem:[#allocation4 + $0xc80] sm:$0xff]
    %v515 = vld [vmem:[#allocation4 + $0xc88] sm:$0xff]
    %v516 = vld [vmem:[#allocation4 + $0xc90] sm:$0xff]
    %v517 = vld [vmem:[#allocation4 + $0xc98] sm:$0xff]
    %v518 = vld [vmem:[#allocation4 + $0xca0] sm:$0xff]
    %v519 = vld [vmem:[#allocation4 + $0xca8] sm:$0xff]
    %v520 = vld [vmem:[#allocation4 + $0xcb0] sm:$0xff]
    %v521 = vld [vmem:[#allocation4 + $0xcb8] sm:$0xff]
    %v522 = vld [vmem:[#allocation4 + $0xcc0] sm:$0xff]
    %v523 = vld [vmem:[#allocation4 + $0xcc8] sm:$0xff]
    %v524 = vld [vmem:[#allocation4 + $0xcd0] sm:$0xff]
    %v525 = vld [vmem:[#allocation4 + $0xcd8] sm:$0xff]
    %v526 = vld [vmem:[#allocation4 + $0xce0] sm:$0xff]
    %v527 = vld [vmem:[#allocation4 + $0xce8] sm:$0xff]
    %v528 = vld [vmem:[#allocation4 + $0xcf0] sm:$0xff]
    %v529 = vld [vmem:[#allocation4 + $0xcf8] sm:$0xff]
    %v530 = vld [vmem:[#allocation4 + $0xd00] sm:$0xff]
    %v531 = vld [vmem:[#allocation4 + $0xd08] sm:$0xff]
    %v532 = vld [vmem:[#allocation4 + $0xd10] sm:$0xff]
    %v533 = vld [vmem:[#allocation4 + $0xd18] sm:$0xff]
    %v534 = vld [vmem:[#allocation4 + $0xd20] sm:$0xff]
    %v535 = vld [vmem:[#allocation4 + $0xd28] sm:$0xff]
    %v536 = vld [vmem:[#allocation4 + $0xd30] sm:$0xff]
    %v537 = vld [vmem:[#allocation4 + $0xd38] sm:$0xff]
    %v538 = vld [vmem:[#allocation4 + $0xd40] sm:$0xff]
    %v539 = vld [vmem:[#allocation4 + $0xd48] sm:$0xff]
    %v540 = vld [vmem:[#allocation4 + $0xd50] sm:$0xff]
    %v541 = vld [vmem:[#allocation4 + $0xd58] sm:$0xff]
    %v542 = vld [vmem:[#allocation4 + $0xd60] sm:$0xff]
    %v543 = vld [vmem:[#allocation4 + $0xd68] sm:$0xff]
    %v544 = vld [vmem:[#allocation4 + $0xd70] sm:$0xff]
    %v545 = vld [vmem:[#allocation4 + $0xd78] sm:$0xff]
    %v546 = vld [vmem:[#allocation4 + $0xd80] sm:$0xff]
    %v547 = vld [vmem:[#allocation4 + $0xd88] sm:$0xff]
    %v548 = vld [vmem:[#allocation4 + $0xd90] sm:$0xff]
    %v549 = vld [vmem:[#allocation4 + $0xd98] sm:$0xff]
    %v550 = vld [vmem:[#allocation4 + $0xda0] sm:$0xff]
    %v551 = vld [vmem:[#allocation4 + $0xda8] sm:$0xff]
    %v552 = vld [vmem:[#allocation4 + $0xdb0] sm:$0xff]
    %v553 = vld [vmem:[#allocation4 + $0xdb8] sm:$0xff]
    %v554 = vld [vmem:[#allocation4 + $0xdc0] sm:$0xff]
    %v555 = vld [vmem:[#allocation4 + $0xdc8] sm:$0xff]
    %v556 = vld [vmem:[#allocation4 + $0xdd0] sm:$0xff]
    %v557 = vld [vmem:[#allocation4 + $0xdd8] sm:$0xff]
    %v558 = vld [vmem:[#allocation4 + $0xde0] sm:$0xff]
    %v559 = vld [vmem:[#allocation4 + $0xde8] sm:$0xff]
    %v560 = vld [vmem:[#allocation4 + $0xdf0] sm:$0xff]
    %v561 = vld [vmem:[#allocation4 + $0xdf8] sm:$0xff]
    %v562 = vld [vmem:[#allocation4 + $0xe00] sm:$0xff]
    %v563 = vld [vmem:[#allocation4 + $0xe08] sm:$0xff]
    %v564 = vld [vmem:[#allocation4 + $0xe10] sm:$0xff]
    %v565 = vld [vmem:[#allocation4 + $0xe18] sm:$0xff]
    %v566 = vld [vmem:[#allocation4 + $0xe20] sm:$0xff]
    %v567 = vld [vmem:[#allocation4 + $0xe28] sm:$0xff]
    %v568 = vld [vmem:[#allocation4 + $0xe30] sm:$0xff]
    %v569 = vld [vmem:[#allocation4 + $0xe38] sm:$0xff]
    %v570 = vld [vmem:[#allocation4 + $0xe40] sm:$0xff]
    %v571 = vld [vmem:[#allocation4 + $0xe48] sm:$0xff]
    %v572 = vld [vmem:[#allocation4 + $0xe50] sm:$0xff]
    %v573 = vld [vmem:[#allocation4 + $0xe58] sm:$0xff]
    %v574 = vld [vmem:[#allocation4 + $0xe60] sm:$0xff]
    %v575 = vld [vmem:[#allocation4 + $0xe68] sm:$0xff]
    %v576 = vld [vmem:[#allocation4 + $0xe70] sm:$0xff]
    %v577 = vld [vmem:[#allocation4 + $0xe78] sm:$0xff]
    %v578 = vld [vmem:[#allocation4 + $0xe80] sm:$0xff]
    %v579 = vld [vmem:[#allocation4 + $0xe88] sm:$0xff]
    %v580 = vld [vmem:[#allocation4 + $0xe90] sm:$0xff]
    %v581 = vld [vmem:[#allocation4 + $0xe98] sm:$0xff]
    %v582 = vld [vmem:[#allocation4 + $0xea0] sm:$0xff]
    %v583 = vld [vmem:[#allocation4 + $0xea8] sm:$0xff]
    %v584 = vld [vmem:[#allocation4 + $0xeb0] sm:$0xff]
    %v585 = vld [vmem:[#allocation4 + $0xeb8] sm:$0xff]
    %v586 = vld [vmem:[#allocation4 + $0xec0] sm:$0xff]
    %v587 = vld [vmem:[#allocation4 + $0xec8] sm:$0xff]
    %v588 = vld [vmem:[#allocation4 + $0xed0] sm:$0xff]
    %v589 = vld [vmem:[#allocation4 + $0xed8] sm:$0xff]
    %v590 = vld [vmem:[#allocation4 + $0xee0] sm:$0xff]
    %v591 = vld [vmem:[#allocation4 + $0xee8] sm:$0xff]
    %v592 = vld [vmem:[#allocation4 + $0xef0] sm:$0xff]
    %v593 = vld [vmem:[#allocation4 + $0xef8] sm:$0xff]
    %v594 = vld [vmem:[#allocation4 + $0xf00] sm:$0xff]
    %v595 = vld [vmem:[#allocation4 + $0xf08] sm:$0xff]
    %v596 = vld [vmem:[#allocation4 + $0xf10] sm:$0xff]
    %v597 = vld [vmem:[#allocation4 + $0xf18] sm:$0xff]
    %v598 = vld [vmem:[#allocation4 + $0xf20] sm:$0xff]
    %v599 = vld [vmem:[#allocation4 + $0xf28] sm:$0xff]
    %v600 = vld [vmem:[#allocation4 + $0xf30] sm:$0xff]
    %v601 = vld [vmem:[#allocation4 + $0xf38] sm:$0xff]
    %v602 = vld [vmem:[#allocation4 + $0xf40] sm:$0xff]
    %v603 = vld [vmem:[#allocation4 + $0xf48] sm:$0xff]
    %v604 = vld [vmem:[#allocation4 + $0xf50] sm:$0xff]
    %v605 = vld [vmem:[#allocation4 + $0xf58] sm:$0xff]
    %v606 = vld [vmem:[#allocation4 + $0xf60] sm:$0xff]
    %v607 = vld [vmem:[#allocation4 + $0xf68] sm:$0xff]
    %v608 = vld [vmem:[#allocation4 + $0xf70] sm:$0xff]
    %v609 = vld [vmem:[#allocation4 + $0xf78] sm:$0xff]
    %v610 = vld [vmem:[#allocation4 + $0xf80] sm:$0xff]
    %v611 = vld [vmem:[#allocation4 + $0xf88] sm:$0xff]
    %v612 = vld [vmem:[#allocation4 + $0xf90] sm:$0xff]
    %v613 = vld [vmem:[#allocation4 + $0xf98] sm:$0xff]
    %v614 = vld [vmem:[#allocation4 + $0xfa0] sm:$0xff]
    %v615 = vld [vmem:[#allocation4 + $0xfa8] sm:$0xff]
    %v616 = vld [vmem:[#allocation4 + $0xfb0] sm:$0xff]
    %v617 = vld [vmem:[#allocation4 + $0xfb8] sm:$0xff]
    %v618 = vld [vmem:[#allocation4 + $0xfc0] sm:$0xff]
    %v619 = vld [vmem:[#allocation4 + $0xfc8] sm:$0xff]
    %v620 = vld [vmem:[#allocation4 + $0xfd0] sm:$0xff]
    %v621 = vld [vmem:[#allocation4 + $0xfd8] sm:$0xff]
    %v622 = vld [vmem:[#allocation4 + $0xfe0] sm:$0xff]
    %v623 = vld [vmem:[#allocation4 + $0xfe8] sm:$0xff]
    %v624 = vld [vmem:[#allocation4 + $0xff0] sm:$0xff]
    %v625 = vld [vmem:[#allocation4 + $0xff8] sm:$0xff]
    %v626 = vld [vmem:[#allocation4 + $0x1000] sm:$0xff]
    %v627 = vld [vmem:[#allocation4 + $0x1008] sm:$0xff]
    %v628 = vld [vmem:[#allocation4 + $0x1010] sm:$0xff]
    %v629 = vld [vmem:[#allocation4 + $0x1018] sm:$0xff]
    %v630 = vld [vmem:[#allocation4 + $0x1020] sm:$0xff]
    %v631 = vld [vmem:[#allocation4 + $0x1028] sm:$0xff]
    %v632 = vld [vmem:[#allocation4 + $0x1030] sm:$0xff]
    %v633 = vld [vmem:[#allocation4 + $0x1038] sm:$0xff]
    %v634 = vld [vmem:[#allocation4 + $0x1040] sm:$0xff]
    %v635 = vld [vmem:[#allocation4 + $0x1048] sm:$0xff]
    %v636 = vld [vmem:[#allocation4 + $0x1050] sm:$0xff]
    %v637 = vld [vmem:[#allocation4 + $0x1058] sm:$0xff]
    %v638 = vld [vmem:[#allocation4 + $0x1060] sm:$0xff]
    %v639 = vld [vmem:[#allocation4 + $0x1068] sm:$0xff]
    %v640 = vld [vmem:[#allocation4 + $0x1070] sm:$0xff]
    %v641 = vld [vmem:[#allocation4 + $0x1078] sm:$0xff]
    %v642 = vld [vmem:[#allocation4 + $0x1080] sm:$0xff]
    %v643 = vld [vmem:[#allocation4 + $0x1088] sm:$0xff]
    %v644 = vld [vmem:[#allocation4 + $0x1090] sm:$0xff]
    %v645 = vld [vmem:[#allocation4 + $0x1098] sm:$0xff]
    %v646 = vld [vmem:[#allocation4 + $0x10a0] sm:$0xff]
    %v647 = vld [vmem:[#allocation4 + $0x10a8] sm:$0xff]
    %v648 = vld [vmem:[#allocation4 + $0x10b0] sm:$0xff]
    %v649 = vld [vmem:[#allocation4 + $0x10b8] sm:$0xff]
    %v650 = vld [vmem:[#allocation4 + $0x10c0] sm:$0xff]
    %v651 = vld [vmem:[#allocation4 + $0x10c8] sm:$0xff]
    %v652 = vld [vmem:[#allocation4 + $0x10d0] sm:$0xff]
    %v653 = vld [vmem:[#allocation4 + $0x10d8] sm:$0xff]
    %v654 = vld [vmem:[#allocation4 + $0x10e0] sm:$0xff]
    %v655 = vld [vmem:[#allocation4 + $0x10e8] sm:$0xff]
    %v656 = vld [vmem:[#allocation4 + $0x10f0] sm:$0xff]
    %v657 = vld [vmem:[#allocation4 + $0x10f8] sm:$0xff]
    %v658 = vld [vmem:[#allocation4 + $0x1100] sm:$0xff]
    %v659 = vld [vmem:[#allocation4 + $0x1108] sm:$0xff]
    %v660 = vld [vmem:[#allocation4 + $0x1110] sm:$0xff]
    %v661 = vld [vmem:[#allocation4 + $0x1118] sm:$0xff]
    %v662 = vld [vmem:[#allocation4 + $0x1120] sm:$0xff]
    %v663 = vld [vmem:[#allocation4 + $0x1128] sm:$0xff]
    %v664 = vld [vmem:[#allocation4 + $0x1130] sm:$0xff]
    %v665 = vld [vmem:[#allocation4 + $0x1138] sm:$0xff]
    %v666 = vld [vmem:[#allocation4 + $0x1140] sm:$0xff]
    %v667 = vld [vmem:[#allocation4 + $0x1148] sm:$0xff]
    %v668 = vld [vmem:[#allocation4 + $0x1150] sm:$0xff]
    %v669 = vld [vmem:[#allocation4 + $0x1158] sm:$0xff]
    %v670 = vld [vmem:[#allocation4 + $0x1160] sm:$0xff]
    %v671 = vld [vmem:[#allocation4 + $0x1168] sm:$0xff]
    %v672 = vld [vmem:[#allocation4 + $0x1170] sm:$0xff]
    %v673 = vld [vmem:[#allocation4 + $0x1178] sm:$0xff]
    %v674 = vld [vmem:[#allocation4 + $0x1180] sm:$0xff]
    %v675 = vld [vmem:[#allocation4 + $0x1188] sm:$0xff]
    %v676 = vld [vmem:[#allocation4 + $0x1190] sm:$0xff]
    %v677 = vld [vmem:[#allocation4 + $0x1198] sm:$0xff]
    %v678 = vld [vmem:[#allocation4 + $0x11a0] sm:$0xff]
    %v679 = vld [vmem:[#allocation4 + $0x11a8] sm:$0xff]
    %v680 = vld [vmem:[#allocation4 + $0x11b0] sm:$0xff]
    %v681 = vld [vmem:[#allocation4 + $0x11b8] sm:$0xff]
    %v682 = vld [vmem:[#allocation4 + $0x11c0] sm:$0xff]
    %v683 = vld [vmem:[#allocation4 + $0x11c8] sm:$0xff]
    %v684 = vld [vmem:[#allocation4 + $0x11d0] sm:$0xff]
    %v685 = vld [vmem:[#allocation4 + $0x11d8] sm:$0xff]
    %v686 = vld [vmem:[#allocation4 + $0x11e0] sm:$0xff]
    %v687 = vld [vmem:[#allocation4 + $0x11e8] sm:$0xff]
    %v688 = vld [vmem:[#allocation4 + $0x11f0] sm:$0xff]
    %v689 = vld [vmem:[#allocation4 + $0x11f8] sm:$0xff]
    %v690 = vld [vmem:[#allocation4 + $0x1200] sm:$0xff]
    %v691 = vld [vmem:[#allocation4 + $0x1208] sm:$0xff]
    %v692 = vld [vmem:[#allocation4 + $0x1210] sm:$0xff]
    %v693 = vld [vmem:[#allocation4 + $0x1218] sm:$0xff]
    %v694 = vld [vmem:[#allocation4 + $0x1220] sm:$0xff]
    %v695 = vld [vmem:[#allocation4 + $0x1228] sm:$0xff]
    %v696 = vld [vmem:[#allocation4 + $0x1230] sm:$0xff]
    %v697 = vld [vmem:[#allocation4 + $0x1238] sm:$0xff]
    %v698 = vld [vmem:[#allocation4 + $0x1240] sm:$0xff]
    %v699 = vld [vmem:[#allocation4 + $0x1248] sm:$0xff]
    %v700 = vld [vmem:[#allocation4 + $0x1250] sm:$0xff]
    %v701 = vld [vmem:[#allocation4 + $0x1258] sm:$0xff]
    %v702 = vld [vmem:[#allocation4 + $0x1260] sm:$0xff]
    %v703 = vld [vmem:[#allocation4 + $0x1268] sm:$0xff]
    %v704 = vld [vmem:[#allocation4 + $0x1270] sm:$0xff]
    %v705 = vld [vmem:[#allocation4 + $0x1278] sm:$0xff]
    %v706 = vld [vmem:[#allocation4 + $0x1280] sm:$0xff]
    %v707 = vld [vmem:[#allocation4 + $0x1288] sm:$0xff]
    %v708 = vld [vmem:[#allocation4 + $0x1290] sm:$0xff]
    %v709 = vld [vmem:[#allocation4 + $0x1298] sm:$0xff]
    %v710 = vld [vmem:[#allocation4 + $0x12a0] sm:$0xff]
    %v711 = vld [vmem:[#allocation4 + $0x12a8] sm:$0xff]
    %v712 = vld [vmem:[#allocation4 + $0x12b0] sm:$0xff]
    %v713 = vld [vmem:[#allocation4 + $0x12b8] sm:$0xff]
    %v714 = vld [vmem:[#allocation4 + $0x12c0] sm:$0xff]
    %v715 = vld [vmem:[#allocation4 + $0x12c8] sm:$0xff]
    %v716 = vld [vmem:[#allocation4 + $0x12d0] sm:$0xff]
    %v717 = vld [vmem:[#allocation4 + $0x12d8] sm:$0xff]
    %v718 = vld [vmem:[#allocation4 + $0x12e0] sm:$0xff]
    %v719 = vld [vmem:[#allocation4 + $0x12e8] sm:$0xff]
    %v720 = vld [vmem:[#allocation4 + $0x12f0] sm:$0xff]
    %v721 = vld [vmem:[#allocation4 + $0x12f8] sm:$0xff]
    %v722 = vld [vmem:[#allocation7] sm:$0xf]
    %v724 = vlaneseq
    %v725 = vshrl.u32 %v724, 7
    %v726 = vsub.s32 0, %v725
    %v727 = vrot.slane %v722, %v726
    %v728 = vlaneseq
    %v729 = vshrl.u32 %v728, 7
    %v730 = vsub.s32 1, %v729
    %v731 = vrot.slane %v722, %v730
    %v732 = vlaneseq
    %v733 = vshrl.u32 %v732, 7
    %v734 = vsub.s32 2, %v733
    %v735 = vrot.slane %v722, %v734
    %v736 = vlaneseq
    %v737 = vshrl.u32 %v736, 7
    %v738 = vsub.s32 3, %v737
    %v739 = vrot.slane %v722, %v738
    %v754 = vunpack.c.l.b16 %v104
    %v755 = vunpack.c.h.b16 %v104
    %v756 = vunpack.c.l.b16 %v105
    %v757 = vunpack.c.h.b16 %v105
    %v758 = vunpack.c.l.b16 %v106
    %v759 = vunpack.c.h.b16 %v106
    %v760 = vunpack.c.l.b16 %v107
    %v761 = vunpack.c.h.b16 %v107
    %v762 = vunpack.c.l.b16 %v108
    %v763 = vunpack.c.h.b16 %v108
    %v764 = vunpack.c.l.b16 %v109
    %v765 = vunpack.c.h.b16 %v109
    %v766 = vunpack.c.l.b16 %v110
    %v767 = vunpack.c.h.b16 %v110
    %v768 = vunpack.c.l.b16 %v111
    %v769 = vunpack.c.h.b16 %v111
    %v770 = vunpack.c.l.b16 %v112
    %v771 = vunpack.c.h.b16 %v112
    %v772 = vunpack.c.l.b16 %v113
    %v773 = vpack.c.b16 %v754, %v754
    %v774 = vpack.c.b16 %v755, %v755
    %v775 = vpack.c.b16 %v756, %v756
    %v776 = vpack.c.b16 %v757, %v757
    %v777 = vpack.c.b16 %v758, %v758
    %v778 = vpack.c.b16 %v759, %v759
    %v779 = vpack.c.b16 %v760, %v760
    %v780 = vpack.c.b16 %v761, %v761
    %v781 = vpack.c.b16 %v762, %v762
    %v782 = vpack.c.b16 %v763, %v763
    %v783 = vpack.c.b16 %v764, %v764
    %v784 = vpack.c.b16 %v765, %v765
    %v785 = vpack.c.b16 %v766, %v766
    %v786 = vpack.c.b16 %v767, %v767
    %v787 = vpack.c.b16 %v768, %v768
    %v788 = vpack.c.b16 %v769, %v769
    %v789 = vpack.c.b16 %v770, %v770
    %v790 = vpack.c.b16 %v771, %v771
    %v791 = vpack.c.b16 %v772, %v772
    %v1419 = vunpack.c.l.b16 %v114
    %v1420 = vunpack.c.h.b16 %v114
    %v1421 = vunpack.c.l.b16 %v115
    %v1422 = vunpack.c.h.b16 %v115
    %v1423 = vunpack.c.l.b16 %v116
    %v1424 = vunpack.c.h.b16 %v116
    %v1425 = vunpack.c.l.b16 %v117
    %v1426 = vunpack.c.h.b16 %v117
    %v1427 = vunpack.c.l.b16 %v118
    %v1428 = vunpack.c.h.b16 %v118
    %v1429 = vunpack.c.l.b16 %v119
    %v1430 = vunpack.c.h.b16 %v119
    %v1431 = vunpack.c.l.b16 %v120
    %v1432 = vunpack.c.h.b16 %v120
    %v1433 = vunpack.c.l.b16 %v121
    %v1434 = vunpack.c.h.b16 %v121
    %v1435 = vunpack.c.l.b16 %v122
    %v1436 = vunpack.c.h.b16 %v122
    %v1437 = vunpack.c.l.b16 %v123
    %v1438 = vunpack.c.h.b16 %v123
    %v1439 = vunpack.c.l.b16 %v124
    %v1440 = vunpack.c.h.b16 %v124
    %v1441 = vunpack.c.l.b16 %v125
    %v1442 = vunpack.c.h.b16 %v125
    %v1443 = vunpack.c.l.b16 %v126
    %v1444 = vunpack.c.h.b16 %v126
    %v1445 = vunpack.c.l.b16 %v127
    %v1446 = vunpack.c.h.b16 %v127
    %v1447 = vunpack.c.l.b16 %v128
    %v1448 = vunpack.c.h.b16 %v128
    %v1449 = vunpack.c.l.b16 %v129
    %v1450 = vunpack.c.h.b16 %v129
    %v1451 = vunpack.c.l.b16 %v130
    %v1452 = vunpack.c.h.b16 %v130
    %v1453 = vunpack.c.l.b16 %v131
    %v1454 = vunpack.c.h.b16 %v131
    %v1455 = vunpack.c.l.b16 %v132
    %v1456 = vunpack.c.h.b16 %v132
    %v1457 = vunpack.c.l.b16 %v133
    %v1458 = vunpack.c.h.b16 %v133
    %v1459 = vunpack.c.l.b16 %v134
    %v1460 = vunpack.c.h.b16 %v134
    %v1461 = vunpack.c.l.b16 %v135
    %v1462 = vunpack.c.h.b16 %v135
    %v1463 = vunpack.c.l.b16 %v136
    %v1464 = vunpack.c.h.b16 %v136
    %v1465 = vunpack.c.l.b16 %v137
    %v1466 = vunpack.c.h.b16 %v137
    %v1467 = vunpack.c.l.b16 %v138
    %v1468 = vunpack.c.h.b16 %v138
    %v1469 = vunpack.c.l.b16 %v139
    %v1470 = vunpack.c.h.b16 %v139
    %v1471 = vunpack.c.l.b16 %v140
    %v1472 = vunpack.c.h.b16 %v140
    %v1473 = vunpack.c.l.b16 %v141
    %v1474 = vunpack.c.h.b16 %v141
    %v1475 = vunpack.c.l.b16 %v142
    %v1476 = vunpack.c.h.b16 %v142
    %v1477 = vunpack.c.l.b16 %v143
    %v1478 = vunpack.c.h.b16 %v143
    %v1479 = vunpack.c.l.b16 %v144
    %v1480 = vunpack.c.h.b16 %v144
    %v1481 = vunpack.c.l.b16 %v145
    %v1482 = vunpack.c.h.b16 %v145
    %v1483 = vunpack.c.l.b16 %v146
    %v1484 = vunpack.c.h.b16 %v146
    %v1485 = vunpack.c.l.b16 %v147
    %v1486 = vunpack.c.h.b16 %v147
    %v1487 = vunpack.c.l.b16 %v148
    %v1488 = vunpack.c.h.b16 %v148
    %v1489 = vunpack.c.l.b16 %v149
    %v1490 = vunpack.c.h.b16 %v149
    %v1491 = vunpack.c.l.b16 %v150
    %v1492 = vunpack.c.h.b16 %v150
    %v1493 = vunpack.c.l.b16 %v151
    %v1494 = vunpack.c.h.b16 %v151
    %v1495 = vunpack.c.l.b16 %v152
    %v1496 = vunpack.c.h.b16 %v152
    %v1497 = vunpack.c.l.b16 %v153
    %v1498 = vunpack.c.h.b16 %v153
    %v1499 = vunpack.c.l.b16 %v154
    %v1500 = vunpack.c.h.b16 %v154
    %v1501 = vunpack.c.l.b16 %v155
    %v1502 = vunpack.c.h.b16 %v155
    %v1503 = vunpack.c.l.b16 %v156
    %v1504 = vunpack.c.h.b16 %v156
    %v1505 = vunpack.c.l.b16 %v157
    %v1506 = vunpack.c.h.b16 %v157
    %v1507 = vunpack.c.l.b16 %v158
    %v1508 = vunpack.c.h.b16 %v158
    %v1509 = vunpack.c.l.b16 %v159
    %v1510 = vunpack.c.h.b16 %v159
    %v1511 = vunpack.c.l.b16 %v160
    %v1512 = vunpack.c.h.b16 %v160
    %v1513 = vunpack.c.l.b16 %v161
    %v1514 = vunpack.c.h.b16 %v161
    %v1515 = vunpack.c.l.b16 %v162
    %v1516 = vunpack.c.h.b16 %v162
    %v1517 = vunpack.c.l.b16 %v163
    %v1518 = vunpack.c.h.b16 %v163
    %v1519 = vunpack.c.l.b16 %v164
    %v1520 = vunpack.c.h.b16 %v164
    %v1521 = vunpack.c.l.b16 %v165
    %v1522 = vunpack.c.h.b16 %v165
    %v1523 = vunpack.c.l.b16 %v166
    %v1524 = vunpack.c.h.b16 %v166
    %v1525 = vunpack.c.l.b16 %v167
    %v1526 = vunpack.c.h.b16 %v167
    %v1527 = vunpack.c.l.b16 %v168
    %v1528 = vunpack.c.h.b16 %v168
    %v1529 = vunpack.c.l.b16 %v169
    %v1530 = vunpack.c.h.b16 %v169
    %v1531 = vunpack.c.l.b16 %v170
    %v1532 = vunpack.c.h.b16 %v170
    %v1533 = vunpack.c.l.b16 %v171
    %v1534 = vunpack.c.h.b16 %v171
    %v1535 = vunpack.c.l.b16 %v172
    %v1536 = vunpack.c.h.b16 %v172
    %v1537 = vunpack.c.l.b16 %v173
    %v1538 = vunpack.c.h.b16 %v173
    %v1539 = vunpack.c.l.b16 %v174
    %v1540 = vunpack.c.h.b16 %v174
    %v1541 = vunpack.c.l.b16 %v175
    %v1542 = vunpack.c.h.b16 %v175
    %v1543 = vunpack.c.l.b16 %v176
    %v1544 = vunpack.c.h.b16 %v176
    %v1545 = vunpack.c.l.b16 %v177
    %v1546 = vunpack.c.h.b16 %v177
    %v1547 = vunpack.c.l.b16 %v178
    %v1548 = vunpack.c.h.b16 %v178
    %v1549 = vunpack.c.l.b16 %v179
    %v1550 = vunpack.c.h.b16 %v179
    %v1551 = vunpack.c.l.b16 %v180
    %v1552 = vunpack.c.h.b16 %v180
    %v1553 = vunpack.c.l.b16 %v181
    %v1554 = vunpack.c.h.b16 %v181
    %v1555 = vunpack.c.l.b16 %v182
    %v1556 = vunpack.c.h.b16 %v182
    %v1557 = vunpack.c.l.b16 %v183
    %v1558 = vunpack.c.h.b16 %v183
    %v1559 = vunpack.c.l.b16 %v184
    %v1560 = vunpack.c.h.b16 %v184
    %v1561 = vunpack.c.l.b16 %v185
    %v1562 = vunpack.c.h.b16 %v185
    %v1563 = vunpack.c.l.b16 %v186
    %v1564 = vunpack.c.h.b16 %v186
    %v1565 = vunpack.c.l.b16 %v187
    %v1566 = vunpack.c.h.b16 %v187
    %v1567 = vunpack.c.l.b16 %v188
    %v1568 = vunpack.c.h.b16 %v188
    %v1569 = vunpack.c.l.b16 %v189
    %v1570 = vunpack.c.h.b16 %v189
    %v1571 = vunpack.c.l.b16 %v190
    %v1572 = vunpack.c.h.b16 %v190
    %v1573 = vunpack.c.l.b16 %v191
    %v1574 = vunpack.c.h.b16 %v191
    %v1575 = vunpack.c.l.b16 %v192
    %v1576 = vunpack.c.h.b16 %v192
    %v1577 = vunpack.c.l.b16 %v193
    %v1578 = vunpack.c.h.b16 %v193
    %v1579 = vunpack.c.l.b16 %v194
    %v1580 = vunpack.c.h.b16 %v194
    %v1581 = vunpack.c.l.b16 %v195
    %v1582 = vunpack.c.h.b16 %v195
    %v1583 = vunpack.c.l.b16 %v196
    %v1584 = vunpack.c.h.b16 %v196
    %v1585 = vunpack.c.l.b16 %v197
    %v1586 = vunpack.c.h.b16 %v197
    %v1587 = vunpack.c.l.b16 %v198
    %v1588 = vunpack.c.h.b16 %v198
    %v1589 = vunpack.c.l.b16 %v199
    %v1590 = vunpack.c.h.b16 %v199
    %v1591 = vunpack.c.l.b16 %v200
    %v1592 = vunpack.c.h.b16 %v200
    %v1593 = vunpack.c.l.b16 %v201
    %v1594 = vunpack.c.h.b16 %v201
    %v1595 = vunpack.c.l.b16 %v202
    %v1596 = vunpack.c.h.b16 %v202
    %v1597 = vunpack.c.l.b16 %v203
    %v1598 = vunpack.c.h.b16 %v203
    %v1599 = vunpack.c.l.b16 %v204
    %v1600 = vunpack.c.h.b16 %v204
    %v1601 = vunpack.c.l.b16 %v205
    %v1602 = vunpack.c.h.b16 %v205
    %v1603 = vunpack.c.l.b16 %v206
    %v1604 = vunpack.c.h.b16 %v206
    %v1605 = vunpack.c.l.b16 %v207
    %v1606 = vunpack.c.h.b16 %v207
    %v1607 = vunpack.c.l.b16 %v208
    %v1608 = vunpack.c.h.b16 %v208
    %v1609 = vunpack.c.l.b16 %v209
    %v1610 = vunpack.c.h.b16 %v209
    %v1611 = vunpack.c.l.b16 %v210
    %v1612 = vunpack.c.h.b16 %v210
    %v1613 = vunpack.c.l.b16 %v211
    %v1614 = vunpack.c.h.b16 %v211
    %v1615 = vunpack.c.l.b16 %v212
    %v1616 = vunpack.c.h.b16 %v212
    %v1617 = vunpack.c.l.b16 %v213
    %v1618 = vunpack.c.h.b16 %v213
    %v1619 = vunpack.c.l.b16 %v214
    %v1620 = vunpack.c.h.b16 %v214
    %v1621 = vunpack.c.l.b16 %v215
    %v1622 = vunpack.c.h.b16 %v215
    %v1623 = vunpack.c.l.b16 %v216
    %v1624 = vunpack.c.h.b16 %v216
    %v1625 = vunpack.c.l.b16 %v217
    %v1626 = vunpack.c.h.b16 %v217
    %v1627 = vunpack.c.l.b16 %v218
    %v1628 = vunpack.c.h.b16 %v218
    %v1629 = vunpack.c.l.b16 %v219
    %v1630 = vunpack.c.h.b16 %v219
    %v1631 = vunpack.c.l.b16 %v220
    %v1632 = vunpack.c.h.b16 %v220
    %v1633 = vunpack.c.l.b16 %v221
    %v1634 = vunpack.c.h.b16 %v221
    %v1635 = vunpack.c.l.b16 %v222
    %v1636 = vunpack.c.h.b16 %v222
    %v1637 = vunpack.c.l.b16 %v223
    %v1638 = vunpack.c.h.b16 %v223
    %v1639 = vunpack.c.l.b16 %v224
    %v1640 = vunpack.c.h.b16 %v224
    %v1641 = vunpack.c.l.b16 %v225
    %v1642 = vunpack.c.h.b16 %v225
    %v1643 = vunpack.c.l.b16 %v226
    %v1644 = vunpack.c.h.b16 %v226
    %v1645 = vunpack.c.l.b16 %v227
    %v1646 = vunpack.c.h.b16 %v227
    %v1647 = vunpack.c.l.b16 %v228
    %v1648 = vunpack.c.h.b16 %v228
    %v1649 = vunpack.c.l.b16 %v229
    %v1650 = vunpack.c.h.b16 %v229
    %v1651 = vunpack.c.l.b16 %v230
    %v1652 = vunpack.c.h.b16 %v230
    %v1653 = vunpack.c.l.b16 %v231
    %v1654 = vunpack.c.h.b16 %v231
    %v1655 = vunpack.c.l.b16 %v232
    %v1656 = vunpack.c.h.b16 %v232
    %v1657 = vunpack.c.l.b16 %v233
    %v1658 = vunpack.c.h.b16 %v233
    %v1659 = vunpack.c.l.b16 %v234
    %v1660 = vunpack.c.h.b16 %v234
    %v1661 = vunpack.c.l.b16 %v235
    %v1662 = vunpack.c.h.b16 %v235
    %v1663 = vunpack.c.l.b16 %v236
    %v1664 = vunpack.c.h.b16 %v236
    %v1665 = vunpack.c.l.b16 %v237
    %v1666 = vunpack.c.h.b16 %v237
    %v1667 = vunpack.c.l.b16 %v238
    %v1668 = vunpack.c.h.b16 %v238
    %v1669 = vunpack.c.l.b16 %v239
    %v1670 = vunpack.c.h.b16 %v239
    %v1671 = vunpack.c.l.b16 %v240
    %v1672 = vunpack.c.h.b16 %v240
    %v1673 = vunpack.c.l.b16 %v241
    %v1674 = vunpack.c.h.b16 %v241
    %v1675 = vunpack.c.l.b16 %v242
    %v1676 = vunpack.c.h.b16 %v242
    %v1677 = vunpack.c.l.b16 %v243
    %v1678 = vunpack.c.h.b16 %v243
    %v1679 = vunpack.c.l.b16 %v244
    %v1680 = vunpack.c.h.b16 %v244
    %v1681 = vunpack.c.l.b16 %v245
    %v1682 = vunpack.c.h.b16 %v245
    %v1683 = vunpack.c.l.b16 %v246
    %v1684 = vunpack.c.h.b16 %v246
    %v1685 = vunpack.c.l.b16 %v247
    %v1686 = vunpack.c.h.b16 %v247
    %v1687 = vunpack.c.l.b16 %v248
    %v1688 = vunpack.c.h.b16 %v248
    %v1689 = vunpack.c.l.b16 %v249
    %v1690 = vunpack.c.h.b16 %v249
    %v1691 = vunpack.c.l.b16 %v250
    %v1692 = vunpack.c.h.b16 %v250
    %v1693 = vunpack.c.l.b16 %v251
    %v1694 = vunpack.c.h.b16 %v251
    %v1695 = vunpack.c.l.b16 %v252
    %v1696 = vunpack.c.h.b16 %v252
    %v1697 = vunpack.c.l.b16 %v253
    %v1698 = vunpack.c.h.b16 %v253
    %v1699 = vunpack.c.l.b16 %v254
    %v1700 = vunpack.c.h.b16 %v254
    %v1701 = vunpack.c.l.b16 %v255
    %v1702 = vunpack.c.h.b16 %v255
    %v1703 = vunpack.c.l.b16 %v256
    %v1704 = vunpack.c.h.b16 %v256
    %v1705 = vunpack.c.l.b16 %v257
    %v1706 = vunpack.c.h.b16 %v257
    %v1707 = vunpack.c.l.b16 %v258
    %v1708 = vunpack.c.h.b16 %v258
    %v1709 = vunpack.c.l.b16 %v259
    %v1710 = vunpack.c.h.b16 %v259
    %v1711 = vunpack.c.l.b16 %v260
    %v1712 = vunpack.c.h.b16 %v260
    %v1713 = vunpack.c.l.b16 %v261
    %v1714 = vunpack.c.h.b16 %v261
    %v1715 = vunpack.c.l.b16 %v262
    %v1716 = vunpack.c.h.b16 %v262
    %v1717 = vunpack.c.l.b16 %v263
    %v1718 = vunpack.c.h.b16 %v263
    %v1719 = vunpack.c.l.b16 %v264
    %v1720 = vunpack.c.h.b16 %v264
    %v1721 = vunpack.c.l.b16 %v265
    %v1722 = vunpack.c.h.b16 %v265
    %v1723 = vunpack.c.l.b16 %v266
    %v1724 = vunpack.c.h.b16 %v266
    %v1725 = vunpack.c.l.b16 %v267
    %v1726 = vunpack.c.h.b16 %v267
    %v1727 = vunpack.c.l.b16 %v268
    %v1728 = vunpack.c.h.b16 %v268
    %v1729 = vunpack.c.l.b16 %v269
    %v1730 = vunpack.c.h.b16 %v269
    %v1731 = vunpack.c.l.b16 %v270
    %v1732 = vunpack.c.h.b16 %v270
    %v1733 = vunpack.c.l.b16 %v271
    %v1734 = vunpack.c.h.b16 %v271
    %v1735 = vunpack.c.l.b16 %v272
    %v1736 = vunpack.c.h.b16 %v272
    %v1737 = vunpack.c.l.b16 %v273
    %v1738 = vunpack.c.h.b16 %v273
    %v1739 = vunpack.c.l.b16 %v274
    %v1740 = vunpack.c.h.b16 %v274
    %v1741 = vunpack.c.l.b16 %v275
    %v1742 = vunpack.c.h.b16 %v275
    %v1743 = vunpack.c.l.b16 %v276
    %v1744 = vunpack.c.h.b16 %v276
    %v1745 = vunpack.c.l.b16 %v277
    %v1746 = vunpack.c.h.b16 %v277
    %v1747 = vunpack.c.l.b16 %v278
    %v1748 = vunpack.c.h.b16 %v278
    %v1749 = vunpack.c.l.b16 %v279
    %v1750 = vunpack.c.h.b16 %v279
    %v1751 = vunpack.c.l.b16 %v280
    %v1752 = vunpack.c.h.b16 %v280
    %v1753 = vunpack.c.l.b16 %v281
    %v1754 = vunpack.c.h.b16 %v281
    %v1755 = vunpack.c.l.b16 %v282
    %v1756 = vunpack.c.h.b16 %v282
    %v1757 = vunpack.c.l.b16 %v283
    %v1758 = vunpack.c.h.b16 %v283
    %v1759 = vunpack.c.l.b16 %v284
    %v1760 = vunpack.c.h.b16 %v284
    %v1761 = vunpack.c.l.b16 %v285
    %v1762 = vunpack.c.h.b16 %v285
    %v1763 = vunpack.c.l.b16 %v286
    %v1764 = vunpack.c.h.b16 %v286
    %v1765 = vunpack.c.l.b16 %v287
    %v1766 = vunpack.c.h.b16 %v287
    %v1767 = vunpack.c.l.b16 %v288
    %v1768 = vunpack.c.h.b16 %v288
    %v1769 = vunpack.c.l.b16 %v289
    %v1770 = vunpack.c.h.b16 %v289
    %v1771 = vunpack.c.l.b16 %v290
    %v1772 = vunpack.c.h.b16 %v290
    %v1773 = vunpack.c.l.b16 %v291
    %v1774 = vunpack.c.h.b16 %v291
    %v1775 = vunpack.c.l.b16 %v292
    %v1776 = vunpack.c.h.b16 %v292
    %v1777 = vunpack.c.l.b16 %v293
    %v1778 = vunpack.c.h.b16 %v293
    %v1779 = vunpack.c.l.b16 %v294
    %v1780 = vunpack.c.h.b16 %v294
    %v1781 = vunpack.c.l.b16 %v295
    %v1782 = vunpack.c.h.b16 %v295
    %v1783 = vunpack.c.l.b16 %v296
    %v1784 = vunpack.c.h.b16 %v296
    %v1785 = vunpack.c.l.b16 %v297
    %v1786 = vunpack.c.h.b16 %v297
    %v1787 = vunpack.c.l.b16 %v298
    %v1788 = vunpack.c.h.b16 %v298
    %v1789 = vunpack.c.l.b16 %v299
    %v1790 = vunpack.c.h.b16 %v299
    %v1791 = vunpack.c.l.b16 %v300
    %v1792 = vunpack.c.h.b16 %v300
    %v1793 = vunpack.c.l.b16 %v301
    %v1794 = vunpack.c.h.b16 %v301
    %v1795 = vunpack.c.l.b16 %v302
    %v1796 = vunpack.c.h.b16 %v302
    %v1797 = vunpack.c.l.b16 %v303
    %v1798 = vunpack.c.h.b16 %v303
    %v1799 = vunpack.c.l.b16 %v304
    %v1800 = vunpack.c.h.b16 %v304
    %v1801 = vunpack.c.l.b16 %v305
    %v1802 = vunpack.c.h.b16 %v305
    %v1803 = vunpack.c.l.b16 %v306
    %v1804 = vunpack.c.h.b16 %v306
    %v1805 = vunpack.c.l.b16 %v307
    %v1806 = vunpack.c.h.b16 %v307
    %v1807 = vunpack.c.l.b16 %v308
    %v1808 = vunpack.c.h.b16 %v308
    %v1809 = vunpack.c.l.b16 %v309
    %v1810 = vunpack.c.h.b16 %v309
    %v1811 = vunpack.c.l.b16 %v310
    %v1812 = vunpack.c.h.b16 %v310
    %v1813 = vunpack.c.l.b16 %v311
    %v1814 = vunpack.c.h.b16 %v311
    %v1815 = vunpack.c.l.b16 %v312
    %v1816 = vunpack.c.h.b16 %v312
    %v1817 = vunpack.c.l.b16 %v313
    %v1818 = vunpack.c.h.b16 %v313
    %v1819 = vunpack.c.l.b16 %v314
    %v1820 = vunpack.c.h.b16 %v314
    %v1821 = vunpack.c.l.b16 %v315
    %v1822 = vunpack.c.h.b16 %v315
    %v1823 = vunpack.c.l.b16 %v316
    %v1824 = vunpack.c.h.b16 %v316
    %v1825 = vunpack.c.l.b16 %v317
    %v1826 = vunpack.c.h.b16 %v317
    %v1827 = vunpack.c.l.b16 %v318
    %v1828 = vunpack.c.h.b16 %v318
    %v1829 = vunpack.c.l.b16 %v319
    %v1830 = vunpack.c.h.b16 %v319
    %v1831 = vunpack.c.l.b16 %v320
    %v1832 = vunpack.c.h.b16 %v320
    %v1833 = vunpack.c.l.b16 %v321
    %v1834 = vunpack.c.h.b16 %v321
    %v1835 = vunpack.c.l.b16 %v322
    %v1836 = vunpack.c.h.b16 %v322
    %v1837 = vunpack.c.l.b16 %v323
    %v1838 = vunpack.c.h.b16 %v323
    %v1839 = vunpack.c.l.b16 %v324
    %v1840 = vunpack.c.h.b16 %v324
    %v1841 = vunpack.c.l.b16 %v325
    %v1842 = vunpack.c.h.b16 %v325
    %v1843 = vunpack.c.l.b16 %v326
    %v1844 = vunpack.c.h.b16 %v326
    %v1845 = vunpack.c.l.b16 %v327
    %v1846 = vunpack.c.h.b16 %v327
    %v1847 = vunpack.c.l.b16 %v328
    %v1848 = vunpack.c.h.b16 %v328
    %v1849 = vunpack.c.l.b16 %v329
    %v1850 = vunpack.c.h.b16 %v329
    %v1851 = vunpack.c.l.b16 %v330
    %v1852 = vunpack.c.h.b16 %v330
    %v1853 = vunpack.c.l.b16 %v331
    %v1854 = vunpack.c.h.b16 %v331
    %v1855 = vunpack.c.l.b16 %v332
    %v1856 = vunpack.c.h.b16 %v332
    %v1857 = vunpack.c.l.b16 %v333
    %v1858 = vunpack.c.h.b16 %v333
    %v1859 = vunpack.c.l.b16 %v334
    %v1860 = vunpack.c.h.b16 %v334
    %v1861 = vunpack.c.l.b16 %v335
    %v1862 = vunpack.c.h.b16 %v335
    %v1863 = vunpack.c.l.b16 %v336
    %v1864 = vunpack.c.h.b16 %v336
    %v1865 = vunpack.c.l.b16 %v337
    %v1866 = vunpack.c.h.b16 %v337
    %v1867 = vunpack.c.l.b16 %v338
    %v1868 = vunpack.c.h.b16 %v338
    %v1869 = vunpack.c.l.b16 %v339
    %v1870 = vunpack.c.h.b16 %v339
    %v1871 = vunpack.c.l.b16 %v340
    %v1872 = vunpack.c.h.b16 %v340
    %v1873 = vunpack.c.l.b16 %v341
    %v1874 = vunpack.c.h.b16 %v341
    %v1875 = vunpack.c.l.b16 %v342
    %v1876 = vunpack.c.h.b16 %v342
    %v1877 = vunpack.c.l.b16 %v343
    %v1878 = vunpack.c.h.b16 %v343
    %v1879 = vunpack.c.l.b16 %v344
    %v1880 = vunpack.c.h.b16 %v344
    %v1881 = vunpack.c.l.b16 %v345
    %v1882 = vunpack.c.h.b16 %v345
    %v1883 = vunpack.c.l.b16 %v346
    %v1884 = vunpack.c.h.b16 %v346
    %v1885 = vunpack.c.l.b16 %v347
    %v1886 = vunpack.c.h.b16 %v347
    %v1887 = vunpack.c.l.b16 %v348
    %v1888 = vunpack.c.h.b16 %v348
    %v1889 = vunpack.c.l.b16 %v349
    %v1890 = vunpack.c.h.b16 %v349
    %v1891 = vunpack.c.l.b16 %v350
    %v1892 = vunpack.c.h.b16 %v350
    %v1893 = vunpack.c.l.b16 %v351
    %v1894 = vunpack.c.h.b16 %v351
    %v1895 = vunpack.c.l.b16 %v352
    %v1896 = vunpack.c.h.b16 %v352
    %v1897 = vunpack.c.l.b16 %v353
    %v1898 = vunpack.c.h.b16 %v353
    %v1899 = vunpack.c.l.b16 %v354
    %v1900 = vunpack.c.h.b16 %v354
    %v1901 = vunpack.c.l.b16 %v355
    %v1902 = vunpack.c.h.b16 %v355
    %v1903 = vunpack.c.l.b16 %v356
    %v1904 = vunpack.c.h.b16 %v356
    %v1905 = vunpack.c.l.b16 %v357
    %v1906 = vunpack.c.h.b16 %v357
    %v1907 = vunpack.c.l.b16 %v358
    %v1908 = vunpack.c.h.b16 %v358
    %v1909 = vunpack.c.l.b16 %v359
    %v1910 = vunpack.c.h.b16 %v359
    %v1911 = vunpack.c.l.b16 %v360
    %v1912 = vunpack.c.h.b16 %v360
    %v1913 = vunpack.c.l.b16 %v361
    %v1914 = vunpack.c.h.b16 %v361
    %v1915 = vunpack.c.l.b16 %v362
    %v1916 = vunpack.c.h.b16 %v362
    %v1917 = vunpack.c.l.b16 %v363
    %v1918 = vunpack.c.h.b16 %v363
    %v1919 = vunpack.c.l.b16 %v364
    %v1920 = vunpack.c.h.b16 %v364
    %v1921 = vunpack.c.l.b16 %v365
    %v1922 = vunpack.c.h.b16 %v365
    %v1923 = vunpack.c.l.b16 %v366
    %v1924 = vunpack.c.h.b16 %v366
    %v1925 = vunpack.c.l.b16 %v367
    %v1926 = vunpack.c.h.b16 %v367
    %v1927 = vunpack.c.l.b16 %v368
    %v1928 = vunpack.c.h.b16 %v368
    %v1929 = vunpack.c.l.b16 %v369
    %v1930 = vunpack.c.h.b16 %v369
    %v1931 = vunpack.c.l.b16 %v370
    %v1932 = vunpack.c.h.b16 %v370
    %v1933 = vunpack.c.l.b16 %v371
    %v1934 = vunpack.c.h.b16 %v371
    %v1935 = vunpack.c.l.b16 %v372
    %v1936 = vunpack.c.h.b16 %v372
    %v1937 = vunpack.c.l.b16 %v373
    %v1938 = vunpack.c.h.b16 %v373
    %v1939 = vunpack.c.l.b16 %v374
    %v1940 = vunpack.c.h.b16 %v374
    %v1941 = vunpack.c.l.b16 %v375
    %v1942 = vunpack.c.h.b16 %v375
    %v1943 = vunpack.c.l.b16 %v376
    %v1944 = vunpack.c.h.b16 %v376
    %v1945 = vunpack.c.l.b16 %v377
    %v1946 = vunpack.c.h.b16 %v377
    %v1947 = vunpack.c.l.b16 %v378
    %v1948 = vunpack.c.h.b16 %v378
    %v1949 = vunpack.c.l.b16 %v379
    %v1950 = vunpack.c.h.b16 %v379
    %v1951 = vunpack.c.l.b16 %v380
    %v1952 = vunpack.c.h.b16 %v380
    %v1953 = vunpack.c.l.b16 %v381
    %v1954 = vunpack.c.h.b16 %v381
    %v1955 = vunpack.c.l.b16 %v382
    %v1956 = vunpack.c.h.b16 %v382
    %v1957 = vunpack.c.l.b16 %v383
    %v1958 = vunpack.c.h.b16 %v383
    %v1959 = vunpack.c.l.b16 %v384
    %v1960 = vunpack.c.h.b16 %v384
    %v1961 = vunpack.c.l.b16 %v385
    %v1962 = vunpack.c.h.b16 %v385
    %v1963 = vunpack.c.l.b16 %v386
    %v1964 = vunpack.c.h.b16 %v386
    %v1965 = vunpack.c.l.b16 %v387
    %v1966 = vunpack.c.h.b16 %v387
    %v1967 = vunpack.c.l.b16 %v388
    %v1968 = vunpack.c.h.b16 %v388
    %v1969 = vunpack.c.l.b16 %v389
    %v1970 = vunpack.c.h.b16 %v389
    %v1971 = vunpack.c.l.b16 %v390
    %v1972 = vunpack.c.h.b16 %v390
    %v1973 = vunpack.c.l.b16 %v391
    %v1974 = vunpack.c.h.b16 %v391
    %v1975 = vunpack.c.l.b16 %v392
    %v1976 = vunpack.c.h.b16 %v392
    %v1977 = vunpack.c.l.b16 %v393
    %v1978 = vunpack.c.h.b16 %v393
    %v1979 = vunpack.c.l.b16 %v394
    %v1980 = vunpack.c.h.b16 %v394
    %v1981 = vunpack.c.l.b16 %v395
    %v1982 = vunpack.c.h.b16 %v395
    %v1983 = vunpack.c.l.b16 %v396
    %v1984 = vunpack.c.h.b16 %v396
    %v1985 = vunpack.c.l.b16 %v397
    %v1986 = vunpack.c.h.b16 %v397
    %v1987 = vunpack.c.l.b16 %v398
    %v1988 = vunpack.c.h.b16 %v398
    %v1989 = vunpack.c.l.b16 %v399
    %v1990 = vunpack.c.h.b16 %v399
    %v1991 = vunpack.c.l.b16 %v400
    %v1992 = vunpack.c.h.b16 %v400
    %v1993 = vunpack.c.l.b16 %v401
    %v1994 = vunpack.c.h.b16 %v401
    %v1995 = vunpack.c.l.b16 %v402
    %v1996 = vunpack.c.h.b16 %v402
    %v1997 = vunpack.c.l.b16 %v403
    %v1998 = vunpack.c.h.b16 %v403
    %v1999 = vunpack.c.l.b16 %v404
    %v2000 = vunpack.c.h.b16 %v404
    %v2001 = vunpack.c.l.b16 %v405
    %v2002 = vunpack.c.h.b16 %v405
    %v2003 = vunpack.c.l.b16 %v406
    %v2004 = vunpack.c.h.b16 %v406
    %v2005 = vunpack.c.l.b16 %v407
    %v2006 = vunpack.c.h.b16 %v407
    %v2007 = vunpack.c.l.b16 %v408
    %v2008 = vunpack.c.h.b16 %v408
    %v2009 = vunpack.c.l.b16 %v409
    %v2010 = vunpack.c.h.b16 %v409
    %v2011 = vunpack.c.l.b16 %v410
    %v2012 = vunpack.c.h.b16 %v410
    %v2013 = vunpack.c.l.b16 %v411
    %v2014 = vunpack.c.h.b16 %v411
    %v2015 = vunpack.c.l.b16 %v412
    %v2016 = vunpack.c.h.b16 %v412
    %v2017 = vunpack.c.l.b16 %v413
    %v2018 = vunpack.c.h.b16 %v413
    %v2019 = vunpack.c.l.b16 %v414
    %v2020 = vunpack.c.h.b16 %v414
    %v2021 = vunpack.c.l.b16 %v415
    %v2022 = vunpack.c.h.b16 %v415
    %v2023 = vunpack.c.l.b16 %v416
    %v2024 = vunpack.c.h.b16 %v416
    %v2025 = vunpack.c.l.b16 %v417
    %v2026 = vunpack.c.h.b16 %v417
    %v2027 = vunpack.c.l.b16 %v418
    %v2028 = vunpack.c.h.b16 %v418
    %v2029 = vunpack.c.l.b16 %v419
    %v2030 = vunpack.c.h.b16 %v419
    %v2031 = vunpack.c.l.b16 %v420
    %v2032 = vunpack.c.h.b16 %v420
    %v2033 = vunpack.c.l.b16 %v421
    %v2034 = vunpack.c.h.b16 %v421
    %v2035 = vunpack.c.l.b16 %v422
    %v2036 = vunpack.c.h.b16 %v422
    %v2037 = vunpack.c.l.b16 %v423
    %v2038 = vunpack.c.h.b16 %v423
    %v2039 = vunpack.c.l.b16 %v424
    %v2040 = vunpack.c.h.b16 %v424
    %v2041 = vunpack.c.l.b16 %v425
    %v2042 = vunpack.c.h.b16 %v425
    %v2043 = vunpack.c.l.b16 %v426
    %v2044 = vunpack.c.h.b16 %v426
    %v2045 = vunpack.c.l.b16 %v427
    %v2046 = vunpack.c.h.b16 %v427
    %v2047 = vunpack.c.l.b16 %v428
    %v2048 = vunpack.c.h.b16 %v428
    %v2049 = vunpack.c.l.b16 %v429
    %v2050 = vunpack.c.h.b16 %v429
    %v2051 = vunpack.c.l.b16 %v430
    %v2052 = vunpack.c.h.b16 %v430
    %v2053 = vunpack.c.l.b16 %v431
    %v2054 = vunpack.c.h.b16 %v431
    %v2055 = vunpack.c.l.b16 %v432
    %v2056 = vunpack.c.h.b16 %v432
    %v2057 = vunpack.c.l.b16 %v433
    %v2058 = vunpack.c.h.b16 %v433
    %v2059 = vunpack.c.l.b16 %v434
    %v2060 = vunpack.c.h.b16 %v434
    %v2061 = vunpack.c.l.b16 %v435
    %v2062 = vunpack.c.h.b16 %v435
    %v2063 = vunpack.c.l.b16 %v436
    %v2064 = vunpack.c.h.b16 %v436
    %v2065 = vunpack.c.l.b16 %v437
    %v2066 = vunpack.c.h.b16 %v437
    %v2067 = vunpack.c.l.b16 %v438
    %v2068 = vunpack.c.h.b16 %v438
    %v2069 = vunpack.c.l.b16 %v439
    %v2070 = vunpack.c.h.b16 %v439
    %v2071 = vunpack.c.l.b16 %v440
    %v2072 = vunpack.c.h.b16 %v440
    %v2073 = vunpack.c.l.b16 %v441
    %v2074 = vunpack.c.h.b16 %v441
    %v2075 = vunpack.c.l.b16 %v442
    %v2076 = vunpack.c.h.b16 %v442
    %v2077 = vunpack.c.l.b16 %v443
    %v2078 = vunpack.c.h.b16 %v443
    %v2079 = vunpack.c.l.b16 %v444
    %v2080 = vunpack.c.h.b16 %v444
    %v2081 = vunpack.c.l.b16 %v445
    %v2082 = vunpack.c.h.b16 %v445
    %v2083 = vunpack.c.l.b16 %v446
    %v2084 = vunpack.c.h.b16 %v446
    %v2085 = vunpack.c.l.b16 %v447
    %v2086 = vunpack.c.h.b16 %v447
    %v2087 = vunpack.c.l.b16 %v448
    %v2088 = vunpack.c.h.b16 %v448
    %v2089 = vunpack.c.l.b16 %v449
    %v2090 = vunpack.c.h.b16 %v449
    %v2091 = vunpack.c.l.b16 %v450
    %v2092 = vunpack.c.h.b16 %v450
    %v2093 = vunpack.c.l.b16 %v451
    %v2094 = vunpack.c.h.b16 %v451
    %v2095 = vunpack.c.l.b16 %v452
    %v2096 = vunpack.c.h.b16 %v452
    %v2097 = vunpack.c.l.b16 %v453
    %v2098 = vunpack.c.h.b16 %v453
    %v2099 = vunpack.c.l.b16 %v454
    %v2100 = vunpack.c.h.b16 %v454
    %v2101 = vunpack.c.l.b16 %v455
    %v2102 = vunpack.c.h.b16 %v455
    %v2103 = vunpack.c.l.b16 %v456
    %v2104 = vunpack.c.h.b16 %v456
    %v2105 = vunpack.c.l.b16 %v457
    %v2106 = vunpack.c.h.b16 %v457
    %v2107 = vunpack.c.l.b16 %v458
    %v2108 = vunpack.c.h.b16 %v458
    %v2109 = vunpack.c.l.b16 %v459
    %v2110 = vunpack.c.h.b16 %v459
    %v2111 = vunpack.c.l.b16 %v460
    %v2112 = vunpack.c.h.b16 %v460
    %v2113 = vunpack.c.l.b16 %v461
    %v2114 = vunpack.c.h.b16 %v461
    %v2115 = vunpack.c.l.b16 %v462
    %v2116 = vunpack.c.h.b16 %v462
    %v2117 = vunpack.c.l.b16 %v463
    %v2118 = vunpack.c.h.b16 %v463
    %v2119 = vunpack.c.l.b16 %v464
    %v2120 = vunpack.c.h.b16 %v464
    %v2121 = vunpack.c.l.b16 %v465
    %v2122 = vunpack.c.h.b16 %v465
    %v2123 = vunpack.c.l.b16 %v466
    %v2124 = vunpack.c.h.b16 %v466
    %v2125 = vunpack.c.l.b16 %v467
    %v2126 = vunpack.c.h.b16 %v467
    %v2127 = vunpack.c.l.b16 %v468
    %v2128 = vunpack.c.h.b16 %v468
    %v2129 = vunpack.c.l.b16 %v469
    %v2130 = vunpack.c.h.b16 %v469
    %v2131 = vunpack.c.l.b16 %v470
    %v2132 = vunpack.c.h.b16 %v470
    %v2133 = vunpack.c.l.b16 %v471
    %v2134 = vunpack.c.h.b16 %v471
    %v2135 = vunpack.c.l.b16 %v472
    %v2136 = vunpack.c.h.b16 %v472
    %v2137 = vunpack.c.l.b16 %v473
    %v2138 = vunpack.c.h.b16 %v473
    %v2139 = vunpack.c.l.b16 %v474
    %v2140 = vunpack.c.h.b16 %v474
    %v2141 = vunpack.c.l.b16 %v475
    %v2142 = vunpack.c.h.b16 %v475
    %v2143 = vunpack.c.l.b16 %v476
    %v2144 = vunpack.c.h.b16 %v476
    %v2145 = vunpack.c.l.b16 %v477
    %v2146 = vunpack.c.h.b16 %v477
    %v2147 = vunpack.c.l.b16 %v478
    %v2148 = vunpack.c.h.b16 %v478
    %v2149 = vunpack.c.l.b16 %v479
    %v2150 = vunpack.c.h.b16 %v479
    %v2151 = vunpack.c.l.b16 %v480
    %v2152 = vunpack.c.h.b16 %v480
    %v2153 = vunpack.c.l.b16 %v481
    %v2154 = vunpack.c.h.b16 %v481
    %v2155 = vunpack.c.l.b16 %v482
    %v2156 = vunpack.c.h.b16 %v482
    %v2157 = vunpack.c.l.b16 %v483
    %v2158 = vunpack.c.h.b16 %v483
    %v2159 = vunpack.c.l.b16 %v484
    %v2160 = vunpack.c.h.b16 %v484
    %v2161 = vunpack.c.l.b16 %v485
    %v2162 = vunpack.c.h.b16 %v485
    %v2163 = vunpack.c.l.b16 %v486
    %v2164 = vunpack.c.h.b16 %v486
    %v2165 = vunpack.c.l.b16 %v487
    %v2166 = vunpack.c.h.b16 %v487
    %v2167 = vunpack.c.l.b16 %v488
    %v2168 = vunpack.c.h.b16 %v488
    %v2169 = vunpack.c.l.b16 %v489
    %v2170 = vunpack.c.h.b16 %v489
    %v2171 = vunpack.c.l.b16 %v490
    %v2172 = vunpack.c.h.b16 %v490
    %v2173 = vunpack.c.l.b16 %v491
    %v2174 = vunpack.c.h.b16 %v491
    %v2175 = vunpack.c.l.b16 %v492
    %v2176 = vunpack.c.h.b16 %v492
    %v2177 = vunpack.c.l.b16 %v493
    %v2178 = vunpack.c.h.b16 %v493
    %v2179 = vunpack.c.l.b16 %v494
    %v2180 = vunpack.c.h.b16 %v494
    %v2181 = vunpack.c.l.b16 %v495
    %v2182 = vunpack.c.h.b16 %v495
    %v2183 = vunpack.c.l.b16 %v496
    %v2184 = vunpack.c.h.b16 %v496
    %v2185 = vunpack.c.l.b16 %v497
    %v2186 = vunpack.c.h.b16 %v497
    %v2187 = vunpack.c.l.b16 %v498
    %v2188 = vunpack.c.h.b16 %v498
    %v2189 = vunpack.c.l.b16 %v499
    %v2190 = vunpack.c.h.b16 %v499
    %v2191 = vunpack.c.l.b16 %v500
    %v2192 = vunpack.c.h.b16 %v500
    %v2193 = vunpack.c.l.b16 %v501
    %v2194 = vunpack.c.h.b16 %v501
    %v2195 = vunpack.c.l.b16 %v502
    %v2196 = vunpack.c.h.b16 %v502
    %v2197 = vunpack.c.l.b16 %v503
    %v2198 = vunpack.c.h.b16 %v503
    %v2199 = vunpack.c.l.b16 %v504
    %v2200 = vunpack.c.h.b16 %v504
    %v2201 = vunpack.c.l.b16 %v505
    %v2202 = vunpack.c.h.b16 %v505
    %v2203 = vunpack.c.l.b16 %v506
    %v2204 = vunpack.c.h.b16 %v506
    %v2205 = vunpack.c.l.b16 %v507
    %v2206 = vunpack.c.h.b16 %v507
    %v2207 = vunpack.c.l.b16 %v508
    %v2208 = vunpack.c.h.b16 %v508
    %v2209 = vunpack.c.l.b16 %v509
    %v2210 = vunpack.c.h.b16 %v509
    %v2211 = vunpack.c.l.b16 %v510
    %v2212 = vunpack.c.h.b16 %v510
    %v2213 = vunpack.c.l.b16 %v511
    %v2214 = vunpack.c.h.b16 %v511
    %v2215 = vunpack.c.l.b16 %v512
    %v2216 = vunpack.c.h.b16 %v512
    %v2217 = vunpack.c.l.b16 %v513
    %v2218 = vunpack.c.h.b16 %v513
    %v2219 = vunpack.c.l.b16 %v514
    %v2220 = vunpack.c.h.b16 %v514
    %v2221 = vunpack.c.l.b16 %v515
    %v2222 = vunpack.c.h.b16 %v515
    %v2223 = vunpack.c.l.b16 %v516
    %v2224 = vunpack.c.h.b16 %v516
    %v2225 = vunpack.c.l.b16 %v517
    %v2226 = vunpack.c.h.b16 %v517
    %v2227 = vunpack.c.l.b16 %v518
    %v2228 = vunpack.c.h.b16 %v518
    %v2229 = vunpack.c.l.b16 %v519
    %v2230 = vunpack.c.h.b16 %v519
    %v2231 = vunpack.c.l.b16 %v520
    %v2232 = vunpack.c.h.b16 %v520
    %v2233 = vunpack.c.l.b16 %v521
    %v2234 = vunpack.c.h.b16 %v521
    %v2235 = vunpack.c.l.b16 %v522
    %v2236 = vunpack.c.h.b16 %v522
    %v2237 = vunpack.c.l.b16 %v523
    %v2238 = vunpack.c.h.b16 %v523
    %v2239 = vunpack.c.l.b16 %v524
    %v2240 = vunpack.c.h.b16 %v524
    %v2241 = vunpack.c.l.b16 %v525
    %v2242 = vunpack.c.h.b16 %v525
    %v2243 = vunpack.c.l.b16 %v526
    %v2244 = vunpack.c.h.b16 %v526
    %v2245 = vunpack.c.l.b16 %v527
    %v2246 = vunpack.c.h.b16 %v527
    %v2247 = vunpack.c.l.b16 %v528
    %v2248 = vunpack.c.h.b16 %v528
    %v2249 = vunpack.c.l.b16 %v529
    %v2250 = vunpack.c.h.b16 %v529
    %v2251 = vunpack.c.l.b16 %v530
    %v2252 = vunpack.c.h.b16 %v530
    %v2253 = vunpack.c.l.b16 %v531
    %v2254 = vunpack.c.h.b16 %v531
    %v2255 = vunpack.c.l.b16 %v532
    %v2256 = vunpack.c.h.b16 %v532
    %v2257 = vunpack.c.l.b16 %v533
    %v2258 = vunpack.c.h.b16 %v533
    %v2259 = vunpack.c.l.b16 %v534
    %v2260 = vunpack.c.h.b16 %v534
    %v2261 = vunpack.c.l.b16 %v535
    %v2262 = vunpack.c.h.b16 %v535
    %v2263 = vunpack.c.l.b16 %v536
    %v2264 = vunpack.c.h.b16 %v536
    %v2265 = vunpack.c.l.b16 %v537
    %v2266 = vunpack.c.h.b16 %v537
    %v2267 = vunpack.c.l.b16 %v538
    %v2268 = vunpack.c.h.b16 %v538
    %v2269 = vunpack.c.l.b16 %v539
    %v2270 = vunpack.c.h.b16 %v539
    %v2271 = vunpack.c.l.b16 %v540
    %v2272 = vunpack.c.h.b16 %v540
    %v2273 = vunpack.c.l.b16 %v541
    %v2274 = vunpack.c.h.b16 %v541
    %v2275 = vunpack.c.l.b16 %v542
    %v2276 = vunpack.c.h.b16 %v542
    %v2277 = vunpack.c.l.b16 %v543
    %v2278 = vunpack.c.h.b16 %v543
    %v2279 = vunpack.c.l.b16 %v544
    %v2280 = vunpack.c.h.b16 %v544
    %v2281 = vunpack.c.l.b16 %v545
    %v2282 = vunpack.c.h.b16 %v545
    %v2283 = vunpack.c.l.b16 %v546
    %v2284 = vunpack.c.h.b16 %v546
    %v2285 = vunpack.c.l.b16 %v547
    %v2286 = vunpack.c.h.b16 %v547
    %v2287 = vunpack.c.l.b16 %v548
    %v2288 = vunpack.c.h.b16 %v548
    %v2289 = vunpack.c.l.b16 %v549
    %v2290 = vunpack.c.h.b16 %v549
    %v2291 = vunpack.c.l.b16 %v550
    %v2292 = vunpack.c.h.b16 %v550
    %v2293 = vunpack.c.l.b16 %v551
    %v2294 = vunpack.c.h.b16 %v551
    %v2295 = vunpack.c.l.b16 %v552
    %v2296 = vunpack.c.h.b16 %v552
    %v2297 = vunpack.c.l.b16 %v553
    %v2298 = vunpack.c.h.b16 %v553
    %v2299 = vunpack.c.l.b16 %v554
    %v2300 = vunpack.c.h.b16 %v554
    %v2301 = vunpack.c.l.b16 %v555
    %v2302 = vunpack.c.h.b16 %v555
    %v2303 = vunpack.c.l.b16 %v556
    %v2304 = vunpack.c.h.b16 %v556
    %v2305 = vunpack.c.l.b16 %v557
    %v2306 = vunpack.c.h.b16 %v557
    %v2307 = vunpack.c.l.b16 %v558
    %v2308 = vunpack.c.h.b16 %v558
    %v2309 = vunpack.c.l.b16 %v559
    %v2310 = vunpack.c.h.b16 %v559
    %v2311 = vunpack.c.l.b16 %v560
    %v2312 = vunpack.c.h.b16 %v560
    %v2313 = vunpack.c.l.b16 %v561
    %v2314 = vunpack.c.h.b16 %v561
    %v2315 = vunpack.c.l.b16 %v562
    %v2316 = vunpack.c.h.b16 %v562
    %v2317 = vunpack.c.l.b16 %v563
    %v2318 = vunpack.c.h.b16 %v563
    %v2319 = vunpack.c.l.b16 %v564
    %v2320 = vunpack.c.h.b16 %v564
    %v2321 = vunpack.c.l.b16 %v565
    %v2322 = vunpack.c.h.b16 %v565
    %v2323 = vunpack.c.l.b16 %v566
    %v2324 = vunpack.c.h.b16 %v566
    %v2325 = vunpack.c.l.b16 %v567
    %v2326 = vunpack.c.h.b16 %v567
    %v2327 = vunpack.c.l.b16 %v568
    %v2328 = vunpack.c.h.b16 %v568
    %v2329 = vunpack.c.l.b16 %v569
    %v2330 = vunpack.c.h.b16 %v569
    %v2331 = vunpack.c.l.b16 %v570
    %v2332 = vunpack.c.h.b16 %v570
    %v2333 = vunpack.c.l.b16 %v571
    %v2334 = vunpack.c.h.b16 %v571
    %v2335 = vunpack.c.l.b16 %v572
    %v2336 = vunpack.c.h.b16 %v572
    %v2337 = vunpack.c.l.b16 %v573
    %v2338 = vunpack.c.h.b16 %v573
    %v2339 = vunpack.c.l.b16 %v574
    %v2340 = vunpack.c.h.b16 %v574
    %v2341 = vunpack.c.l.b16 %v575
    %v2342 = vunpack.c.h.b16 %v575
    %v2343 = vunpack.c.l.b16 %v576
    %v2344 = vunpack.c.h.b16 %v576
    %v2345 = vunpack.c.l.b16 %v577
    %v2346 = vunpack.c.h.b16 %v577
    %v2347 = vunpack.c.l.b16 %v578
    %v2348 = vunpack.c.h.b16 %v578
    %v2349 = vunpack.c.l.b16 %v579
    %v2350 = vunpack.c.h.b16 %v579
    %v2351 = vunpack.c.l.b16 %v580
    %v2352 = vunpack.c.h.b16 %v580
    %v2353 = vunpack.c.l.b16 %v581
    %v2354 = vunpack.c.h.b16 %v581
    %v2355 = vunpack.c.l.b16 %v582
    %v2356 = vunpack.c.h.b16 %v582
    %v2357 = vunpack.c.l.b16 %v583
    %v2358 = vunpack.c.h.b16 %v583
    %v2359 = vunpack.c.l.b16 %v584
    %v2360 = vunpack.c.h.b16 %v584
    %v2361 = vunpack.c.l.b16 %v585
    %v2362 = vunpack.c.h.b16 %v585
    %v2363 = vunpack.c.l.b16 %v586
    %v2364 = vunpack.c.h.b16 %v586
    %v2365 = vunpack.c.l.b16 %v587
    %v2366 = vunpack.c.h.b16 %v587
    %v2367 = vunpack.c.l.b16 %v588
    %v2368 = vunpack.c.h.b16 %v588
    %v2369 = vunpack.c.l.b16 %v589
    %v2370 = vunpack.c.h.b16 %v589
    %v2371 = vunpack.c.l.b16 %v590
    %v2372 = vunpack.c.h.b16 %v590
    %v2373 = vunpack.c.l.b16 %v591
    %v2374 = vunpack.c.h.b16 %v591
    %v2375 = vunpack.c.l.b16 %v592
    %v2376 = vunpack.c.h.b16 %v592
    %v2377 = vunpack.c.l.b16 %v593
    %v2378 = vunpack.c.h.b16 %v593
    %v2379 = vunpack.c.l.b16 %v594
    %v2380 = vunpack.c.h.b16 %v594
    %v2381 = vunpack.c.l.b16 %v595
    %v2382 = vunpack.c.h.b16 %v595
    %v2383 = vunpack.c.l.b16 %v596
    %v2384 = vunpack.c.h.b16 %v596
    %v2385 = vunpack.c.l.b16 %v597
    %v2386 = vunpack.c.h.b16 %v597
    %v2387 = vunpack.c.l.b16 %v598
    %v2388 = vunpack.c.h.b16 %v598
    %v2389 = vunpack.c.l.b16 %v599
    %v2390 = vunpack.c.h.b16 %v599
    %v2391 = vunpack.c.l.b16 %v600
    %v2392 = vunpack.c.h.b16 %v600
    %v2393 = vunpack.c.l.b16 %v601
    %v2394 = vunpack.c.h.b16 %v601
    %v2395 = vunpack.c.l.b16 %v602
    %v2396 = vunpack.c.h.b16 %v602
    %v2397 = vunpack.c.l.b16 %v603
    %v2398 = vunpack.c.h.b16 %v603
    %v2399 = vunpack.c.l.b16 %v604
    %v2400 = vunpack.c.h.b16 %v604
    %v2401 = vunpack.c.l.b16 %v605
    %v2402 = vunpack.c.h.b16 %v605
    %v2403 = vunpack.c.l.b16 %v606
    %v2404 = vunpack.c.h.b16 %v606
    %v2405 = vunpack.c.l.b16 %v607
    %v2406 = vunpack.c.h.b16 %v607
    %v2407 = vunpack.c.l.b16 %v608
    %v2408 = vunpack.c.h.b16 %v608
    %v2409 = vunpack.c.l.b16 %v609
    %v2410 = vunpack.c.h.b16 %v609
    %v2411 = vunpack.c.l.b16 %v610
    %v2412 = vunpack.c.h.b16 %v610
    %v2413 = vunpack.c.l.b16 %v611
    %v2414 = vunpack.c.h.b16 %v611
    %v2415 = vunpack.c.l.b16 %v612
    %v2416 = vunpack.c.h.b16 %v612
    %v2417 = vunpack.c.l.b16 %v613
    %v2418 = vunpack.c.h.b16 %v613
    %v2419 = vunpack.c.l.b16 %v614
    %v2420 = vunpack.c.h.b16 %v614
    %v2421 = vunpack.c.l.b16 %v615
    %v2422 = vunpack.c.h.b16 %v615
    %v2423 = vunpack.c.l.b16 %v616
    %v2424 = vunpack.c.h.b16 %v616
    %v2425 = vunpack.c.l.b16 %v617
    %v2426 = vunpack.c.h.b16 %v617
    %v2427 = vunpack.c.l.b16 %v618
    %v2428 = vunpack.c.h.b16 %v618
    %v2429 = vunpack.c.l.b16 %v619
    %v2430 = vunpack.c.h.b16 %v619
    %v2431 = vunpack.c.l.b16 %v620
    %v2432 = vunpack.c.h.b16 %v620
    %v2433 = vunpack.c.l.b16 %v621
    %v2434 = vunpack.c.h.b16 %v621
    %v2435 = vunpack.c.l.b16 %v622
    %v2436 = vunpack.c.h.b16 %v622
    %v2437 = vunpack.c.l.b16 %v623
    %v2438 = vunpack.c.h.b16 %v623
    %v2439 = vunpack.c.l.b16 %v624
    %v2440 = vunpack.c.h.b16 %v624
    %v2441 = vunpack.c.l.b16 %v625
    %v2442 = vunpack.c.h.b16 %v625
    %v2443 = vunpack.c.l.b16 %v626
    %v2444 = vunpack.c.h.b16 %v626
    %v2445 = vunpack.c.l.b16 %v627
    %v2446 = vunpack.c.h.b16 %v627
    %v2447 = vunpack.c.l.b16 %v628
    %v2448 = vunpack.c.h.b16 %v628
    %v2449 = vunpack.c.l.b16 %v629
    %v2450 = vunpack.c.h.b16 %v629
    %v2451 = vunpack.c.l.b16 %v630
    %v2452 = vunpack.c.h.b16 %v630
    %v2453 = vunpack.c.l.b16 %v631
    %v2454 = vunpack.c.h.b16 %v631
    %v2455 = vunpack.c.l.b16 %v632
    %v2456 = vunpack.c.h.b16 %v632
    %v2457 = vunpack.c.l.b16 %v633
    %v2458 = vunpack.c.h.b16 %v633
    %v2459 = vunpack.c.l.b16 %v634
    %v2460 = vunpack.c.h.b16 %v634
    %v2461 = vunpack.c.l.b16 %v635
    %v2462 = vunpack.c.h.b16 %v635
    %v2463 = vunpack.c.l.b16 %v636
    %v2464 = vunpack.c.h.b16 %v636
    %v2465 = vunpack.c.l.b16 %v637
    %v2466 = vunpack.c.h.b16 %v637
    %v2467 = vunpack.c.l.b16 %v638
    %v2468 = vunpack.c.h.b16 %v638
    %v2469 = vunpack.c.l.b16 %v639
    %v2470 = vunpack.c.h.b16 %v639
    %v2471 = vunpack.c.l.b16 %v640
    %v2472 = vunpack.c.h.b16 %v640
    %v2473 = vunpack.c.l.b16 %v641
    %v2474 = vunpack.c.h.b16 %v641
    %v2475 = vunpack.c.l.b16 %v642
    %v2476 = vunpack.c.h.b16 %v642
    %v2477 = vunpack.c.l.b16 %v643
    %v2478 = vunpack.c.h.b16 %v643
    %v2479 = vunpack.c.l.b16 %v644
    %v2480 = vunpack.c.h.b16 %v644
    %v2481 = vunpack.c.l.b16 %v645
    %v2482 = vunpack.c.h.b16 %v645
    %v2483 = vunpack.c.l.b16 %v646
    %v2484 = vunpack.c.h.b16 %v646
    %v2485 = vunpack.c.l.b16 %v647
    %v2486 = vunpack.c.h.b16 %v647
    %v2487 = vunpack.c.l.b16 %v648
    %v2488 = vunpack.c.h.b16 %v648
    %v2489 = vunpack.c.l.b16 %v649
    %v2490 = vunpack.c.h.b16 %v649
    %v2491 = vunpack.c.l.b16 %v650
    %v2492 = vunpack.c.h.b16 %v650
    %v2493 = vunpack.c.l.b16 %v651
    %v2494 = vunpack.c.h.b16 %v651
    %v2495 = vunpack.c.l.b16 %v652
    %v2496 = vunpack.c.h.b16 %v652
    %v2497 = vunpack.c.l.b16 %v653
    %v2498 = vunpack.c.h.b16 %v653
    %v2499 = vunpack.c.l.b16 %v654
    %v2500 = vunpack.c.h.b16 %v654
    %v2501 = vunpack.c.l.b16 %v655
    %v2502 = vunpack.c.h.b16 %v655
    %v2503 = vunpack.c.l.b16 %v656
    %v2504 = vunpack.c.h.b16 %v656
    %v2505 = vunpack.c.l.b16 %v657
    %v2506 = vunpack.c.h.b16 %v657
    %v2507 = vunpack.c.l.b16 %v658
    %v2508 = vunpack.c.h.b16 %v658
    %v2509 = vunpack.c.l.b16 %v659
    %v2510 = vunpack.c.h.b16 %v659
    %v2511 = vunpack.c.l.b16 %v660
    %v2512 = vunpack.c.h.b16 %v660
    %v2513 = vunpack.c.l.b16 %v661
    %v2514 = vunpack.c.h.b16 %v661
    %v2515 = vunpack.c.l.b16 %v662
    %v2516 = vunpack.c.h.b16 %v662
    %v2517 = vunpack.c.l.b16 %v663
    %v2518 = vunpack.c.h.b16 %v663
    %v2519 = vunpack.c.l.b16 %v664
    %v2520 = vunpack.c.h.b16 %v664
    %v2521 = vunpack.c.l.b16 %v665
    %v2522 = vunpack.c.h.b16 %v665
    %v2523 = vunpack.c.l.b16 %v666
    %v2524 = vunpack.c.h.b16 %v666
    %v2525 = vunpack.c.l.b16 %v667
    %v2526 = vunpack.c.h.b16 %v667
    %v2527 = vunpack.c.l.b16 %v668
    %v2528 = vunpack.c.h.b16 %v668
    %v2529 = vunpack.c.l.b16 %v669
    %v2530 = vunpack.c.h.b16 %v669
    %v2531 = vunpack.c.l.b16 %v670
    %v2532 = vunpack.c.h.b16 %v670
    %v2533 = vunpack.c.l.b16 %v671
    %v2534 = vunpack.c.h.b16 %v671
    %v2535 = vunpack.c.l.b16 %v672
    %v2536 = vunpack.c.h.b16 %v672
    %v2537 = vunpack.c.l.b16 %v673
    %v2538 = vunpack.c.h.b16 %v673
    %v2539 = vunpack.c.l.b16 %v674
    %v2540 = vunpack.c.h.b16 %v674
    %v2541 = vunpack.c.l.b16 %v675
    %v2542 = vunpack.c.h.b16 %v675
    %v2543 = vunpack.c.l.b16 %v676
    %v2544 = vunpack.c.h.b16 %v676
    %v2545 = vunpack.c.l.b16 %v677
    %v2546 = vunpack.c.h.b16 %v677
    %v2547 = vunpack.c.l.b16 %v678
    %v2548 = vunpack.c.h.b16 %v678
    %v2549 = vunpack.c.l.b16 %v679
    %v2550 = vunpack.c.h.b16 %v679
    %v2551 = vunpack.c.l.b16 %v680
    %v2552 = vunpack.c.h.b16 %v680
    %v2553 = vunpack.c.l.b16 %v681
    %v2554 = vunpack.c.h.b16 %v681
    %v2555 = vunpack.c.l.b16 %v682
    %v2556 = vunpack.c.h.b16 %v682
    %v2557 = vunpack.c.l.b16 %v683
    %v2558 = vunpack.c.h.b16 %v683
    %v2559 = vunpack.c.l.b16 %v684
    %v2560 = vunpack.c.h.b16 %v684
    %v2561 = vunpack.c.l.b16 %v685
    %v2562 = vunpack.c.h.b16 %v685
    %v2563 = vunpack.c.l.b16 %v686
    %v2564 = vunpack.c.h.b16 %v686
    %v2565 = vunpack.c.l.b16 %v687
    %v2566 = vunpack.c.h.b16 %v687
    %v2567 = vunpack.c.l.b16 %v688
    %v2568 = vunpack.c.h.b16 %v688
    %v2569 = vunpack.c.l.b16 %v689
    %v2570 = vunpack.c.h.b16 %v689
    %v2571 = vunpack.c.l.b16 %v690
    %v2572 = vunpack.c.h.b16 %v690
    %v2573 = vunpack.c.l.b16 %v691
    %v2574 = vunpack.c.h.b16 %v691
    %v2575 = vunpack.c.l.b16 %v692
    %v2576 = vunpack.c.h.b16 %v692
    %v2577 = vunpack.c.l.b16 %v693
    %v2578 = vunpack.c.h.b16 %v693
    %v2579 = vunpack.c.l.b16 %v694
    %v2580 = vunpack.c.h.b16 %v694
    %v2581 = vunpack.c.l.b16 %v695
    %v2582 = vunpack.c.h.b16 %v695
    %v2583 = vunpack.c.l.b16 %v696
    %v2584 = vunpack.c.h.b16 %v696
    %v2585 = vunpack.c.l.b16 %v697
    %v2586 = vunpack.c.h.b16 %v697
    %v2587 = vunpack.c.l.b16 %v698
    %v2588 = vunpack.c.h.b16 %v698
    %v2589 = vunpack.c.l.b16 %v699
    %v2590 = vunpack.c.h.b16 %v699
    %v2591 = vunpack.c.l.b16 %v700
    %v2592 = vunpack.c.h.b16 %v700
    %v2593 = vunpack.c.l.b16 %v701
    %v2594 = vunpack.c.h.b16 %v701
    %v2595 = vunpack.c.l.b16 %v702
    %v2596 = vunpack.c.h.b16 %v702
    %v2597 = vunpack.c.l.b16 %v703
    %v2598 = vunpack.c.h.b16 %v703
    %v2599 = vunpack.c.l.b16 %v704
    %v2600 = vunpack.c.h.b16 %v704
    %v2601 = vunpack.c.l.b16 %v705
    %v2602 = vunpack.c.h.b16 %v705
    %v2603 = vunpack.c.l.b16 %v706
    %v2604 = vunpack.c.h.b16 %v706
    %v2605 = vunpack.c.l.b16 %v707
    %v2606 = vunpack.c.h.b16 %v707
    %v2607 = vunpack.c.l.b16 %v708
    %v2608 = vunpack.c.h.b16 %v708
    %v2609 = vunpack.c.l.b16 %v709
    %v2610 = vunpack.c.h.b16 %v709
    %v2611 = vunpack.c.l.b16 %v710
    %v2612 = vunpack.c.h.b16 %v710
    %v2613 = vunpack.c.l.b16 %v711
    %v2614 = vunpack.c.h.b16 %v711
    %v2615 = vunpack.c.l.b16 %v712
    %v2616 = vunpack.c.h.b16 %v712
    %v2617 = vunpack.c.l.b16 %v713
    %v2618 = vunpack.c.h.b16 %v713
    %v2619 = vunpack.c.l.b16 %v714
    %v2620 = vunpack.c.h.b16 %v714
    %v2621 = vunpack.c.l.b16 %v715
    %v2622 = vunpack.c.h.b16 %v715
    %v2623 = vunpack.c.l.b16 %v716
    %v2624 = vunpack.c.h.b16 %v716
    %v2625 = vunpack.c.l.b16 %v717
    %v2626 = vunpack.c.h.b16 %v717
    %v2627 = vunpack.c.l.b16 %v718
    %v2628 = vunpack.c.h.b16 %v718
    %v2629 = vunpack.c.l.b16 %v719
    %v2630 = vunpack.c.h.b16 %v719
    %v2631 = vunpack.c.l.b16 %v720
    %v2632 = vunpack.c.h.b16 %v720
    %v2633 = vunpack.c.l.b16 %v721
    %v2634 = vunpack.c.h.b16 %v721
    %v2635 = vpack.c.b16 %v1423, %v1419
    %v2636 = vpack.c.b16 %v1424, %v1420
    %v2637 = vpack.c.b16 %v1425, %v1421
    %v2638 = vpack.c.b16 %v1426, %v1422
    %v2639 = vpack.c.b16 %v1431, %v1427
    %v2640 = vpack.c.b16 %v1432, %v1428
    %v2641 = vpack.c.b16 %v1433, %v1429
    %v2642 = vpack.c.b16 %v1434, %v1430
    %v2643 = vpack.c.b16 %v1439, %v1435
    %v2644 = vpack.c.b16 %v1440, %v1436
    %v2645 = vpack.c.b16 %v1441, %v1437
    %v2646 = vpack.c.b16 %v1442, %v1438
    %v2647 = vpack.c.b16 %v1447, %v1443
    %v2648 = vpack.c.b16 %v1448, %v1444
    %v2649 = vpack.c.b16 %v1449, %v1445
    %v2650 = vpack.c.b16 %v1450, %v1446
    %v2651 = vpack.c.b16 %v1455, %v1451
    %v2652 = vpack.c.b16 %v1456, %v1452
    %v2653 = vpack.c.b16 %v1457, %v1453
    %v2654 = vpack.c.b16 %v1458, %v1454
    %v2655 = vpack.c.b16 %v1463, %v1459
    %v2656 = vpack.c.b16 %v1464, %v1460
    %v2657 = vpack.c.b16 %v1465, %v1461
    %v2658 = vpack.c.b16 %v1466, %v1462
    %v2659 = vpack.c.b16 %v1471, %v1467
    %v2660 = vpack.c.b16 %v1472, %v1468
    %v2661 = vpack.c.b16 %v1473, %v1469
    %v2662 = vpack.c.b16 %v1474, %v1470
    %v2663 = vpack.c.b16 %v1479, %v1475
    %v2664 = vpack.c.b16 %v1480, %v1476
    %v2665 = vpack.c.b16 %v1481, %v1477
    %v2666 = vpack.c.b16 %v1482, %v1478
    %v2667 = vpack.c.b16 %v1487, %v1483
    %v2668 = vpack.c.b16 %v1488, %v1484
    %v2669 = vpack.c.b16 %v1489, %v1485
    %v2670 = vpack.c.b16 %v1490, %v1486
    %v2671 = vpack.c.b16 %v1495, %v1491
    %v2672 = vpack.c.b16 %v1496, %v1492
    %v2673 = vpack.c.b16 %v1497, %v1493
    %v2674 = vpack.c.b16 %v1498, %v1494
    %v2675 = vpack.c.b16 %v1503, %v1499
    %v2676 = vpack.c.b16 %v1504, %v1500
    %v2677 = vpack.c.b16 %v1505, %v1501
    %v2678 = vpack.c.b16 %v1506, %v1502
    %v2679 = vpack.c.b16 %v1511, %v1507
    %v2680 = vpack.c.b16 %v1512, %v1508
    %v2681 = vpack.c.b16 %v1513, %v1509
    %v2682 = vpack.c.b16 %v1514, %v1510
    %v2683 = vpack.c.b16 %v1519, %v1515
    %v2684 = vpack.c.b16 %v1520, %v1516
    %v2685 = vpack.c.b16 %v1521, %v1517
    %v2686 = vpack.c.b16 %v1522, %v1518
    %v2687 = vpack.c.b16 %v1527, %v1523
    %v2688 = vpack.c.b16 %v1528, %v1524
    %v2689 = vpack.c.b16 %v1529, %v1525
    %v2690 = vpack.c.b16 %v1530, %v1526
    %v2691 = vpack.c.b16 %v1535, %v1531
    %v2692 = vpack.c.b16 %v1536, %v1532
    %v2693 = vpack.c.b16 %v1537, %v1533
    %v2694 = vpack.c.b16 %v1538, %v1534
    %v2695 = vpack.c.b16 %v1543, %v1539
    %v2696 = vpack.c.b16 %v1544, %v1540
    %v2697 = vpack.c.b16 %v1545, %v1541
    %v2698 = vpack.c.b16 %v1546, %v1542
    %v2699 = vpack.c.b16 %v1551, %v1547
    %v2700 = vpack.c.b16 %v1552, %v1548
    %v2701 = vpack.c.b16 %v1553, %v1549
    %v2702 = vpack.c.b16 %v1554, %v1550
    %v2703 = vpack.c.b16 %v1559, %v1555
    %v2704 = vpack.c.b16 %v1560, %v1556
    %v2705 = vpack.c.b16 %v1561, %v1557
    %v2706 = vpack.c.b16 %v1562, %v1558
    %v2707 = vpack.c.b16 %v1567, %v1563
    %v2708 = vpack.c.b16 %v1568, %v1564
    %v2709 = vpack.c.b16 %v1569, %v1565
    %v2710 = vpack.c.b16 %v1570, %v1566
    %v2711 = vpack.c.b16 %v1575, %v1571
    %v2712 = vpack.c.b16 %v1576, %v1572
    %v2713 = vpack.c.b16 %v1577, %v1573
    %v2714 = vpack.c.b16 %v1578, %v1574
    %v2715 = vpack.c.b16 %v1583, %v1579
    %v2716 = vpack.c.b16 %v1584, %v1580
    %v2717 = vpack.c.b16 %v1585, %v1581
    %v2718 = vpack.c.b16 %v1586, %v1582
    %v2719 = vpack.c.b16 %v1591, %v1587
    %v2720 = vpack.c.b16 %v1592, %v1588
    %v2721 = vpack.c.b16 %v1593, %v1589
    %v2722 = vpack.c.b16 %v1594, %v1590
    %v2723 = vpack.c.b16 %v1599, %v1595
    %v2724 = vpack.c.b16 %v1600, %v1596
    %v2725 = vpack.c.b16 %v1601, %v1597
    %v2726 = vpack.c.b16 %v1602, %v1598
    %v2727 = vpack.c.b16 %v1607, %v1603
    %v2728 = vpack.c.b16 %v1608, %v1604
    %v2729 = vpack.c.b16 %v1609, %v1605
    %v2730 = vpack.c.b16 %v1610, %v1606
    %v2731 = vpack.c.b16 %v1615, %v1611
    %v2732 = vpack.c.b16 %v1616, %v1612
    %v2733 = vpack.c.b16 %v1617, %v1613
    %v2734 = vpack.c.b16 %v1618, %v1614
    %v2735 = vpack.c.b16 %v1623, %v1619
    %v2736 = vpack.c.b16 %v1624, %v1620
    %v2737 = vpack.c.b16 %v1625, %v1621
    %v2738 = vpack.c.b16 %v1626, %v1622
    %v2739 = vpack.c.b16 %v1631, %v1627
    %v2740 = vpack.c.b16 %v1632, %v1628
    %v2741 = vpack.c.b16 %v1633, %v1629
    %v2742 = vpack.c.b16 %v1634, %v1630
    %v2743 = vpack.c.b16 %v1639, %v1635
    %v2744 = vpack.c.b16 %v1640, %v1636
    %v2745 = vpack.c.b16 %v1641, %v1637
    %v2746 = vpack.c.b16 %v1642, %v1638
    %v2747 = vpack.c.b16 %v1647, %v1643
    %v2748 = vpack.c.b16 %v1648, %v1644
    %v2749 = vpack.c.b16 %v1649, %v1645
    %v2750 = vpack.c.b16 %v1650, %v1646
    %v2751 = vpack.c.b16 %v1655, %v1651
    %v2752 = vpack.c.b16 %v1656, %v1652
    %v2753 = vpack.c.b16 %v1657, %v1653
    %v2754 = vpack.c.b16 %v1658, %v1654
    %v2755 = vpack.c.b16 %v1663, %v1659
    %v2756 = vpack.c.b16 %v1664, %v1660
    %v2757 = vpack.c.b16 %v1665, %v1661
    %v2758 = vpack.c.b16 %v1666, %v1662
    %v2759 = vpack.c.b16 %v1671, %v1667
    %v2760 = vpack.c.b16 %v1672, %v1668
    %v2761 = vpack.c.b16 %v1673, %v1669
    %v2762 = vpack.c.b16 %v1674, %v1670
    %v2763 = vpack.c.b16 %v1679, %v1675
    %v2764 = vpack.c.b16 %v1680, %v1676
    %v2765 = vpack.c.b16 %v1681, %v1677
    %v2766 = vpack.c.b16 %v1682, %v1678
    %v2767 = vpack.c.b16 %v1687, %v1683
    %v2768 = vpack.c.b16 %v1688, %v1684
    %v2769 = vpack.c.b16 %v1689, %v1685
    %v2770 = vpack.c.b16 %v1690, %v1686
    %v2771 = vpack.c.b16 %v1695, %v1691
    %v2772 = vpack.c.b16 %v1696, %v1692
    %v2773 = vpack.c.b16 %v1697, %v1693
    %v2774 = vpack.c.b16 %v1698, %v1694
    %v2775 = vpack.c.b16 %v1703, %v1699
    %v2776 = vpack.c.b16 %v1704, %v1700
    %v2777 = vpack.c.b16 %v1705, %v1701
    %v2778 = vpack.c.b16 %v1706, %v1702
    %v2779 = vpack.c.b16 %v1711, %v1707
    %v2780 = vpack.c.b16 %v1712, %v1708
    %v2781 = vpack.c.b16 %v1713, %v1709
    %v2782 = vpack.c.b16 %v1714, %v1710
    %v2783 = vpack.c.b16 %v1719, %v1715
    %v2784 = vpack.c.b16 %v1720, %v1716
    %v2785 = vpack.c.b16 %v1721, %v1717
    %v2786 = vpack.c.b16 %v1722, %v1718
    %v2787 = vpack.c.b16 %v1727, %v1723
    %v2788 = vpack.c.b16 %v1728, %v1724
    %v2789 = vpack.c.b16 %v1729, %v1725
    %v2790 = vpack.c.b16 %v1730, %v1726
    %v2791 = vpack.c.b16 %v1735, %v1731
    %v2792 = vpack.c.b16 %v1736, %v1732
    %v2793 = vpack.c.b16 %v1737, %v1733
    %v2794 = vpack.c.b16 %v1738, %v1734
    %v2795 = vpack.c.b16 %v1743, %v1739
    %v2796 = vpack.c.b16 %v1744, %v1740
    %v2797 = vpack.c.b16 %v1745, %v1741
    %v2798 = vpack.c.b16 %v1746, %v1742
    %v2799 = vpack.c.b16 %v1751, %v1747
    %v2800 = vpack.c.b16 %v1752, %v1748
    %v2801 = vpack.c.b16 %v1753, %v1749
    %v2802 = vpack.c.b16 %v1754, %v1750
    %v2803 = vpack.c.b16 %v1759, %v1755
    %v2804 = vpack.c.b16 %v1760, %v1756
    %v2805 = vpack.c.b16 %v1761, %v1757
    %v2806 = vpack.c.b16 %v1762, %v1758
    %v2807 = vpack.c.b16 %v1767, %v1763
    %v2808 = vpack.c.b16 %v1768, %v1764
    %v2809 = vpack.c.b16 %v1769, %v1765
    %v2810 = vpack.c.b16 %v1770, %v1766
    %v2811 = vpack.c.b16 %v1775, %v1771
    %v2812 = vpack.c.b16 %v1776, %v1772
    %v2813 = vpack.c.b16 %v1777, %v1773
    %v2814 = vpack.c.b16 %v1778, %v1774
    %v2815 = vpack.c.b16 %v1783, %v1779
    %v2816 = vpack.c.b16 %v1784, %v1780
    %v2817 = vpack.c.b16 %v1785, %v1781
    %v2818 = vpack.c.b16 %v1786, %v1782
    %v2819 = vpack.c.b16 %v1791, %v1787
    %v2820 = vpack.c.b16 %v1792, %v1788
    %v2821 = vpack.c.b16 %v1793, %v1789
    %v2822 = vpack.c.b16 %v1794, %v1790
    %v2823 = vpack.c.b16 %v1799, %v1795
    %v2824 = vpack.c.b16 %v1800, %v1796
    %v2825 = vpack.c.b16 %v1801, %v1797
    %v2826 = vpack.c.b16 %v1802, %v1798
    %v2827 = vpack.c.b16 %v1807, %v1803
    %v2828 = vpack.c.b16 %v1808, %v1804
    %v2829 = vpack.c.b16 %v1809, %v1805
    %v2830 = vpack.c.b16 %v1810, %v1806
    %v2831 = vpack.c.b16 %v1815, %v1811
    %v2832 = vpack.c.b16 %v1816, %v1812
    %v2833 = vpack.c.b16 %v1817, %v1813
    %v2834 = vpack.c.b16 %v1818, %v1814
    %v2835 = vpack.c.b16 %v1823, %v1819
    %v2836 = vpack.c.b16 %v1824, %v1820
    %v2837 = vpack.c.b16 %v1825, %v1821
    %v2838 = vpack.c.b16 %v1826, %v1822
    %v2839 = vpack.c.b16 %v1831, %v1827
    %v2840 = vpack.c.b16 %v1832, %v1828
    %v2841 = vpack.c.b16 %v1833, %v1829
    %v2842 = vpack.c.b16 %v1834, %v1830
    %v2843 = vpack.c.b16 %v1839, %v1835
    %v2844 = vpack.c.b16 %v1840, %v1836
    %v2845 = vpack.c.b16 %v1841, %v1837
    %v2846 = vpack.c.b16 %v1842, %v1838
    %v2847 = vpack.c.b16 %v1847, %v1843
    %v2848 = vpack.c.b16 %v1848, %v1844
    %v2849 = vpack.c.b16 %v1849, %v1845
    %v2850 = vpack.c.b16 %v1850, %v1846
    %v2851 = vpack.c.b16 %v1855, %v1851
    %v2852 = vpack.c.b16 %v1856, %v1852
    %v2853 = vpack.c.b16 %v1857, %v1853
    %v2854 = vpack.c.b16 %v1858, %v1854
    %v2855 = vpack.c.b16 %v1863, %v1859
    %v2856 = vpack.c.b16 %v1864, %v1860
    %v2857 = vpack.c.b16 %v1865, %v1861
    %v2858 = vpack.c.b16 %v1866, %v1862
    %v2859 = vpack.c.b16 %v1871, %v1867
    %v2860 = vpack.c.b16 %v1872, %v1868
    %v2861 = vpack.c.b16 %v1873, %v1869
    %v2862 = vpack.c.b16 %v1874, %v1870
    %v2863 = vpack.c.b16 %v1879, %v1875
    %v2864 = vpack.c.b16 %v1880, %v1876
    %v2865 = vpack.c.b16 %v1881, %v1877
    %v2866 = vpack.c.b16 %v1882, %v1878
    %v2867 = vpack.c.b16 %v1887, %v1883
    %v2868 = vpack.c.b16 %v1888, %v1884
    %v2869 = vpack.c.b16 %v1889, %v1885
    %v2870 = vpack.c.b16 %v1890, %v1886
    %v2871 = vpack.c.b16 %v1895, %v1891
    %v2872 = vpack.c.b16 %v1896, %v1892
    %v2873 = vpack.c.b16 %v1897, %v1893
    %v2874 = vpack.c.b16 %v1898, %v1894
    %v2875 = vpack.c.b16 %v1903, %v1899
    %v2876 = vpack.c.b16 %v1904, %v1900
    %v2877 = vpack.c.b16 %v1905, %v1901
    %v2878 = vpack.c.b16 %v1906, %v1902
    %v2879 = vpack.c.b16 %v1911, %v1907
    %v2880 = vpack.c.b16 %v1912, %v1908
    %v2881 = vpack.c.b16 %v1913, %v1909
    %v2882 = vpack.c.b16 %v1914, %v1910
    %v2883 = vpack.c.b16 %v1919, %v1915
    %v2884 = vpack.c.b16 %v1920, %v1916
    %v2885 = vpack.c.b16 %v1921, %v1917
    %v2886 = vpack.c.b16 %v1922, %v1918
    %v2887 = vpack.c.b16 %v1927, %v1923
    %v2888 = vpack.c.b16 %v1928, %v1924
    %v2889 = vpack.c.b16 %v1929, %v1925
    %v2890 = vpack.c.b16 %v1930, %v1926
    %v2891 = vpack.c.b16 %v1935, %v1931
    %v2892 = vpack.c.b16 %v1936, %v1932
    %v2893 = vpack.c.b16 %v1937, %v1933
    %v2894 = vpack.c.b16 %v1938, %v1934
    %v2895 = vpack.c.b16 %v1943, %v1939
    %v2896 = vpack.c.b16 %v1944, %v1940
    %v2897 = vpack.c.b16 %v1945, %v1941
    %v2898 = vpack.c.b16 %v1946, %v1942
    %v2899 = vpack.c.b16 %v1951, %v1947
    %v2900 = vpack.c.b16 %v1952, %v1948
    %v2901 = vpack.c.b16 %v1953, %v1949
    %v2902 = vpack.c.b16 %v1954, %v1950
    %v2903 = vpack.c.b16 %v1959, %v1955
    %v2904 = vpack.c.b16 %v1960, %v1956
    %v2905 = vpack.c.b16 %v1961, %v1957
    %v2906 = vpack.c.b16 %v1962, %v1958
    %v2907 = vpack.c.b16 %v1967, %v1963
    %v2908 = vpack.c.b16 %v1968, %v1964
    %v2909 = vpack.c.b16 %v1969, %v1965
    %v2910 = vpack.c.b16 %v1970, %v1966
    %v2911 = vpack.c.b16 %v1975, %v1971
    %v2912 = vpack.c.b16 %v1976, %v1972
    %v2913 = vpack.c.b16 %v1977, %v1973
    %v2914 = vpack.c.b16 %v1978, %v1974
    %v2915 = vpack.c.b16 %v1983, %v1979
    %v2916 = vpack.c.b16 %v1984, %v1980
    %v2917 = vpack.c.b16 %v1985, %v1981
    %v2918 = vpack.c.b16 %v1986, %v1982
    %v2919 = vpack.c.b16 %v1991, %v1987
    %v2920 = vpack.c.b16 %v1992, %v1988
    %v2921 = vpack.c.b16 %v1993, %v1989
    %v2922 = vpack.c.b16 %v1994, %v1990
    %v2923 = vpack.c.b16 %v1999, %v1995
    %v2924 = vpack.c.b16 %v2000, %v1996
    %v2925 = vpack.c.b16 %v2001, %v1997
    %v2926 = vpack.c.b16 %v2002, %v1998
    %v2927 = vpack.c.b16 %v2007, %v2003
    %v2928 = vpack.c.b16 %v2008, %v2004
    %v2929 = vpack.c.b16 %v2009, %v2005
    %v2930 = vpack.c.b16 %v2010, %v2006
    %v2931 = vpack.c.b16 %v2015, %v2011
    %v2932 = vpack.c.b16 %v2016, %v2012
    %v2933 = vpack.c.b16 %v2017, %v2013
    %v2934 = vpack.c.b16 %v2018, %v2014
    %v2935 = vpack.c.b16 %v2023, %v2019
    %v2936 = vpack.c.b16 %v2024, %v2020
    %v2937 = vpack.c.b16 %v2025, %v2021
    %v2938 = vpack.c.b16 %v2026, %v2022
    %v2939 = vpack.c.b16 %v2031, %v2027
    %v2940 = vpack.c.b16 %v2032, %v2028
    %v2941 = vpack.c.b16 %v2033, %v2029
    %v2942 = vpack.c.b16 %v2034, %v2030
    %v2943 = vpack.c.b16 %v2039, %v2035
    %v2944 = vpack.c.b16 %v2040, %v2036
    %v2945 = vpack.c.b16 %v2041, %v2037
    %v2946 = vpack.c.b16 %v2042, %v2038
    %v2947 = vpack.c.b16 %v2047, %v2043
    %v2948 = vpack.c.b16 %v2048, %v2044
    %v2949 = vpack.c.b16 %v2049, %v2045
    %v2950 = vpack.c.b16 %v2050, %v2046
    %v2951 = vpack.c.b16 %v2055, %v2051
    %v2952 = vpack.c.b16 %v2056, %v2052
    %v2953 = vpack.c.b16 %v2057, %v2053
    %v2954 = vpack.c.b16 %v2058, %v2054
    %v2955 = vpack.c.b16 %v2063, %v2059
    %v2956 = vpack.c.b16 %v2064, %v2060
    %v2957 = vpack.c.b16 %v2065, %v2061
    %v2958 = vpack.c.b16 %v2066, %v2062
    %v2959 = vpack.c.b16 %v2071, %v2067
    %v2960 = vpack.c.b16 %v2072, %v2068
    %v2961 = vpack.c.b16 %v2073, %v2069
    %v2962 = vpack.c.b16 %v2074, %v2070
    %v2963 = vpack.c.b16 %v2079, %v2075
    %v2964 = vpack.c.b16 %v2080, %v2076
    %v2965 = vpack.c.b16 %v2081, %v2077
    %v2966 = vpack.c.b16 %v2082, %v2078
    %v2967 = vpack.c.b16 %v2087, %v2083
    %v2968 = vpack.c.b16 %v2088, %v2084
    %v2969 = vpack.c.b16 %v2089, %v2085
    %v2970 = vpack.c.b16 %v2090, %v2086
    %v2971 = vpack.c.b16 %v2095, %v2091
    %v2972 = vpack.c.b16 %v2096, %v2092
    %v2973 = vpack.c.b16 %v2097, %v2093
    %v2974 = vpack.c.b16 %v2098, %v2094
    %v2975 = vpack.c.b16 %v2103, %v2099
    %v2976 = vpack.c.b16 %v2104, %v2100
    %v2977 = vpack.c.b16 %v2105, %v2101
    %v2978 = vpack.c.b16 %v2106, %v2102
    %v2979 = vpack.c.b16 %v2111, %v2107
    %v2980 = vpack.c.b16 %v2112, %v2108
    %v2981 = vpack.c.b16 %v2113, %v2109
    %v2982 = vpack.c.b16 %v2114, %v2110
    %v2983 = vpack.c.b16 %v2119, %v2115
    %v2984 = vpack.c.b16 %v2120, %v2116
    %v2985 = vpack.c.b16 %v2121, %v2117
    %v2986 = vpack.c.b16 %v2122, %v2118
    %v2987 = vpack.c.b16 %v2127, %v2123
    %v2988 = vpack.c.b16 %v2128, %v2124
    %v2989 = vpack.c.b16 %v2129, %v2125
    %v2990 = vpack.c.b16 %v2130, %v2126
    %v2991 = vpack.c.b16 %v2135, %v2131
    %v2992 = vpack.c.b16 %v2136, %v2132
    %v2993 = vpack.c.b16 %v2137, %v2133
    %v2994 = vpack.c.b16 %v2138, %v2134
    %v2995 = vpack.c.b16 %v2143, %v2139
    %v2996 = vpack.c.b16 %v2144, %v2140
    %v2997 = vpack.c.b16 %v2145, %v2141
    %v2998 = vpack.c.b16 %v2146, %v2142
    %v2999 = vpack.c.b16 %v2151, %v2147
    %v3000 = vpack.c.b16 %v2152, %v2148
    %v3001 = vpack.c.b16 %v2153, %v2149
    %v3002 = vpack.c.b16 %v2154, %v2150
    %v3003 = vpack.c.b16 %v2159, %v2155
    %v3004 = vpack.c.b16 %v2160, %v2156
    %v3005 = vpack.c.b16 %v2161, %v2157
    %v3006 = vpack.c.b16 %v2162, %v2158
    %v3007 = vpack.c.b16 %v2167, %v2163
    %v3008 = vpack.c.b16 %v2168, %v2164
    %v3009 = vpack.c.b16 %v2169, %v2165
    %v3010 = vpack.c.b16 %v2170, %v2166
    %v3011 = vpack.c.b16 %v2175, %v2171
    %v3012 = vpack.c.b16 %v2176, %v2172
    %v3013 = vpack.c.b16 %v2177, %v2173
    %v3014 = vpack.c.b16 %v2178, %v2174
    %v3015 = vpack.c.b16 %v2183, %v2179
    %v3016 = vpack.c.b16 %v2184, %v2180
    %v3017 = vpack.c.b16 %v2185, %v2181
    %v3018 = vpack.c.b16 %v2186, %v2182
    %v3019 = vpack.c.b16 %v2191, %v2187
    %v3020 = vpack.c.b16 %v2192, %v2188
    %v3021 = vpack.c.b16 %v2193, %v2189
    %v3022 = vpack.c.b16 %v2194, %v2190
    %v3023 = vpack.c.b16 %v2199, %v2195
    %v3024 = vpack.c.b16 %v2200, %v2196
    %v3025 = vpack.c.b16 %v2201, %v2197
    %v3026 = vpack.c.b16 %v2202, %v2198
    %v3027 = vpack.c.b16 %v2207, %v2203
    %v3028 = vpack.c.b16 %v2208, %v2204
    %v3029 = vpack.c.b16 %v2209, %v2205
    %v3030 = vpack.c.b16 %v2210, %v2206
    %v3031 = vpack.c.b16 %v2215, %v2211
    %v3032 = vpack.c.b16 %v2216, %v2212
    %v3033 = vpack.c.b16 %v2217, %v2213
    %v3034 = vpack.c.b16 %v2218, %v2214
    %v3035 = vpack.c.b16 %v2223, %v2219
    %v3036 = vpack.c.b16 %v2224, %v2220
    %v3037 = vpack.c.b16 %v2225, %v2221
    %v3038 = vpack.c.b16 %v2226, %v2222
    %v3039 = vpack.c.b16 %v2231, %v2227
    %v3040 = vpack.c.b16 %v2232, %v2228
    %v3041 = vpack.c.b16 %v2233, %v2229
    %v3042 = vpack.c.b16 %v2234, %v2230
    %v3043 = vpack.c.b16 %v2239, %v2235
    %v3044 = vpack.c.b16 %v2240, %v2236
    %v3045 = vpack.c.b16 %v2241, %v2237
    %v3046 = vpack.c.b16 %v2242, %v2238
    %v3047 = vpack.c.b16 %v2247, %v2243
    %v3048 = vpack.c.b16 %v2248, %v2244
    %v3049 = vpack.c.b16 %v2249, %v2245
    %v3050 = vpack.c.b16 %v2250, %v2246
    %v3051 = vpack.c.b16 %v2255, %v2251
    %v3052 = vpack.c.b16 %v2256, %v2252
    %v3053 = vpack.c.b16 %v2257, %v2253
    %v3054 = vpack.c.b16 %v2258, %v2254
    %v3055 = vpack.c.b16 %v2263, %v2259
    %v3056 = vpack.c.b16 %v2264, %v2260
    %v3057 = vpack.c.b16 %v2265, %v2261
    %v3058 = vpack.c.b16 %v2266, %v2262
    %v3059 = vpack.c.b16 %v2271, %v2267
    %v3060 = vpack.c.b16 %v2272, %v2268
    %v3061 = vpack.c.b16 %v2273, %v2269
    %v3062 = vpack.c.b16 %v2274, %v2270
    %v3063 = vpack.c.b16 %v2279, %v2275
    %v3064 = vpack.c.b16 %v2280, %v2276
    %v3065 = vpack.c.b16 %v2281, %v2277
    %v3066 = vpack.c.b16 %v2282, %v2278
    %v3067 = vpack.c.b16 %v2287, %v2283
    %v3068 = vpack.c.b16 %v2288, %v2284
    %v3069 = vpack.c.b16 %v2289, %v2285
    %v3070 = vpack.c.b16 %v2290, %v2286
    %v3071 = vpack.c.b16 %v2295, %v2291
    %v3072 = vpack.c.b16 %v2296, %v2292
    %v3073 = vpack.c.b16 %v2297, %v2293
    %v3074 = vpack.c.b16 %v2298, %v2294
    %v3075 = vpack.c.b16 %v2303, %v2299
    %v3076 = vpack.c.b16 %v2304, %v2300
    %v3077 = vpack.c.b16 %v2305, %v2301
    %v3078 = vpack.c.b16 %v2306, %v2302
    %v3079 = vpack.c.b16 %v2311, %v2307
    %v3080 = vpack.c.b16 %v2312, %v2308
    %v3081 = vpack.c.b16 %v2313, %v2309
    %v3082 = vpack.c.b16 %v2314, %v2310
    %v3083 = vpack.c.b16 %v2319, %v2315
    %v3084 = vpack.c.b16 %v2320, %v2316
    %v3085 = vpack.c.b16 %v2321, %v2317
    %v3086 = vpack.c.b16 %v2322, %v2318
    %v3087 = vpack.c.b16 %v2327, %v2323
    %v3088 = vpack.c.b16 %v2328, %v2324
    %v3089 = vpack.c.b16 %v2329, %v2325
    %v3090 = vpack.c.b16 %v2330, %v2326
    %v3091 = vpack.c.b16 %v2335, %v2331
    %v3092 = vpack.c.b16 %v2336, %v2332
    %v3093 = vpack.c.b16 %v2337, %v2333
    %v3094 = vpack.c.b16 %v2338, %v2334
    %v3095 = vpack.c.b16 %v2343, %v2339
    %v3096 = vpack.c.b16 %v2344, %v2340
    %v3097 = vpack.c.b16 %v2345, %v2341
    %v3098 = vpack.c.b16 %v2346, %v2342
    %v3099 = vpack.c.b16 %v2351, %v2347
    %v3100 = vpack.c.b16 %v2352, %v2348
    %v3101 = vpack.c.b16 %v2353, %v2349
    %v3102 = vpack.c.b16 %v2354, %v2350
    %v3103 = vpack.c.b16 %v2359, %v2355
    %v3104 = vpack.c.b16 %v2360, %v2356
    %v3105 = vpack.c.b16 %v2361, %v2357
    %v3106 = vpack.c.b16 %v2362, %v2358
    %v3107 = vpack.c.b16 %v2367, %v2363
    %v3108 = vpack.c.b16 %v2368, %v2364
    %v3109 = vpack.c.b16 %v2369, %v2365
    %v3110 = vpack.c.b16 %v2370, %v2366
    %v3111 = vpack.c.b16 %v2375, %v2371
    %v3112 = vpack.c.b16 %v2376, %v2372
    %v3113 = vpack.c.b16 %v2377, %v2373
    %v3114 = vpack.c.b16 %v2378, %v2374
    %v3115 = vpack.c.b16 %v2383, %v2379
    %v3116 = vpack.c.b16 %v2384, %v2380
    %v3117 = vpack.c.b16 %v2385, %v2381
    %v3118 = vpack.c.b16 %v2386, %v2382
    %v3119 = vpack.c.b16 %v2391, %v2387
    %v3120 = vpack.c.b16 %v2392, %v2388
    %v3121 = vpack.c.b16 %v2393, %v2389
    %v3122 = vpack.c.b16 %v2394, %v2390
    %v3123 = vpack.c.b16 %v2399, %v2395
    %v3124 = vpack.c.b16 %v2400, %v2396
    %v3125 = vpack.c.b16 %v2401, %v2397
    %v3126 = vpack.c.b16 %v2402, %v2398
    %v3127 = vpack.c.b16 %v2407, %v2403
    %v3128 = vpack.c.b16 %v2408, %v2404
    %v3129 = vpack.c.b16 %v2409, %v2405
    %v3130 = vpack.c.b16 %v2410, %v2406
    %v3131 = vpack.c.b16 %v2415, %v2411
    %v3132 = vpack.c.b16 %v2416, %v2412
    %v3133 = vpack.c.b16 %v2417, %v2413
    %v3134 = vpack.c.b16 %v2418, %v2414
    %v3135 = vpack.c.b16 %v2423, %v2419
    %v3136 = vpack.c.b16 %v2424, %v2420
    %v3137 = vpack.c.b16 %v2425, %v2421
    %v3138 = vpack.c.b16 %v2426, %v2422
    %v3139 = vpack.c.b16 %v2431, %v2427
    %v3140 = vpack.c.b16 %v2432, %v2428
    %v3141 = vpack.c.b16 %v2433, %v2429
    %v3142 = vpack.c.b16 %v2434, %v2430
    %v3143 = vpack.c.b16 %v2439, %v2435
    %v3144 = vpack.c.b16 %v2440, %v2436
    %v3145 = vpack.c.b16 %v2441, %v2437
    %v3146 = vpack.c.b16 %v2442, %v2438
    %v3147 = vpack.c.b16 %v2447, %v2443
    %v3148 = vpack.c.b16 %v2448, %v2444
    %v3149 = vpack.c.b16 %v2449, %v2445
    %v3150 = vpack.c.b16 %v2450, %v2446
    %v3151 = vpack.c.b16 %v2455, %v2451
    %v3152 = vpack.c.b16 %v2456, %v2452
    %v3153 = vpack.c.b16 %v2457, %v2453
    %v3154 = vpack.c.b16 %v2458, %v2454
    %v3155 = vpack.c.b16 %v2463, %v2459
    %v3156 = vpack.c.b16 %v2464, %v2460
    %v3157 = vpack.c.b16 %v2465, %v2461
    %v3158 = vpack.c.b16 %v2466, %v2462
    %v3159 = vpack.c.b16 %v2471, %v2467
    %v3160 = vpack.c.b16 %v2472, %v2468
    %v3161 = vpack.c.b16 %v2473, %v2469
    %v3162 = vpack.c.b16 %v2474, %v2470
    %v3163 = vpack.c.b16 %v2479, %v2475
    %v3164 = vpack.c.b16 %v2480, %v2476
    %v3165 = vpack.c.b16 %v2481, %v2477
    %v3166 = vpack.c.b16 %v2482, %v2478
    %v3167 = vpack.c.b16 %v2487, %v2483
    %v3168 = vpack.c.b16 %v2488, %v2484
    %v3169 = vpack.c.b16 %v2489, %v2485
    %v3170 = vpack.c.b16 %v2490, %v2486
    %v3171 = vpack.c.b16 %v2495, %v2491
    %v3172 = vpack.c.b16 %v2496, %v2492
    %v3173 = vpack.c.b16 %v2497, %v2493
    %v3174 = vpack.c.b16 %v2498, %v2494
    %v3175 = vpack.c.b16 %v2503, %v2499
    %v3176 = vpack.c.b16 %v2504, %v2500
    %v3177 = vpack.c.b16 %v2505, %v2501
    %v3178 = vpack.c.b16 %v2506, %v2502
    %v3179 = vpack.c.b16 %v2511, %v2507
    %v3180 = vpack.c.b16 %v2512, %v2508
    %v3181 = vpack.c.b16 %v2513, %v2509
    %v3182 = vpack.c.b16 %v2514, %v2510
    %v3183 = vpack.c.b16 %v2519, %v2515
    %v3184 = vpack.c.b16 %v2520, %v2516
    %v3185 = vpack.c.b16 %v2521, %v2517
    %v3186 = vpack.c.b16 %v2522, %v2518
    %v3187 = vpack.c.b16 %v2527, %v2523
    %v3188 = vpack.c.b16 %v2528, %v2524
    %v3189 = vpack.c.b16 %v2529, %v2525
    %v3190 = vpack.c.b16 %v2530, %v2526
    %v3191 = vpack.c.b16 %v2535, %v2531
    %v3192 = vpack.c.b16 %v2536, %v2532
    %v3193 = vpack.c.b16 %v2537, %v2533
    %v3194 = vpack.c.b16 %v2538, %v2534
    %v3195 = vpack.c.b16 %v2543, %v2539
    %v3196 = vpack.c.b16 %v2544, %v2540
    %v3197 = vpack.c.b16 %v2545, %v2541
    %v3198 = vpack.c.b16 %v2546, %v2542
    %v3199 = vpack.c.b16 %v2551, %v2547
    %v3200 = vpack.c.b16 %v2552, %v2548
    %v3201 = vpack.c.b16 %v2553, %v2549
    %v3202 = vpack.c.b16 %v2554, %v2550
    %v3203 = vpack.c.b16 %v2559, %v2555
    %v3204 = vpack.c.b16 %v2560, %v2556
    %v3205 = vpack.c.b16 %v2561, %v2557
    %v3206 = vpack.c.b16 %v2562, %v2558
    %v3207 = vpack.c.b16 %v2567, %v2563
    %v3208 = vpack.c.b16 %v2568, %v2564
    %v3209 = vpack.c.b16 %v2569, %v2565
    %v3210 = vpack.c.b16 %v2570, %v2566
    %v3211 = vpack.c.b16 %v2575, %v2571
    %v3212 = vpack.c.b16 %v2576, %v2572
    %v3213 = vpack.c.b16 %v2577, %v2573
    %v3214 = vpack.c.b16 %v2578, %v2574
    %v3215 = vpack.c.b16 %v2583, %v2579
    %v3216 = vpack.c.b16 %v2584, %v2580
    %v3217 = vpack.c.b16 %v2585, %v2581
    %v3218 = vpack.c.b16 %v2586, %v2582
    %v3219 = vpack.c.b16 %v2591, %v2587
    %v3220 = vpack.c.b16 %v2592, %v2588
    %v3221 = vpack.c.b16 %v2593, %v2589
    %v3222 = vpack.c.b16 %v2594, %v2590
    %v3223 = vpack.c.b16 %v2599, %v2595
    %v3224 = vpack.c.b16 %v2600, %v2596
    %v3225 = vpack.c.b16 %v2601, %v2597
    %v3226 = vpack.c.b16 %v2602, %v2598
    %v3227 = vpack.c.b16 %v2607, %v2603
    %v3228 = vpack.c.b16 %v2608, %v2604
    %v3229 = vpack.c.b16 %v2609, %v2605
    %v3230 = vpack.c.b16 %v2610, %v2606
    %v3231 = vpack.c.b16 %v2615, %v2611
    %v3232 = vpack.c.b16 %v2616, %v2612
    %v3233 = vpack.c.b16 %v2617, %v2613
    %v3234 = vpack.c.b16 %v2618, %v2614
    %v3235 = vpack.c.b16 %v2623, %v2619
    %v3236 = vpack.c.b16 %v2624, %v2620
    %v3237 = vpack.c.b16 %v2625, %v2621
    %v3238 = vpack.c.b16 %v2626, %v2622
    %v3239 = vpack.c.b16 %v2631, %v2627
    %v3240 = vpack.c.b16 %v2632, %v2628
    %v3241 = vpack.c.b16 %v2633, %v2629
    %v3242 = vpack.c.b16 %v2634, %v2630
    %3851 = vmatprep.subr.bf16.mxu0 %v2636
    %3852 = vmatpush1.bf16.msra.mxu0 %v2635
    %3853 = vmatprep.subr.bf16.mxu0 %v2640
    %3854 = vmatpush1.bf16.msra.mxu0 %v2639
    %3855 = vmatprep.subr.bf16.mxu0 %v2644
    %3856 = vmatpush1.bf16.msra.mxu0 %v2643
    %3857 = vmatprep.subr.bf16.mxu0 %v2648
    %3858 = vmatpush1.bf16.msra.mxu0 %v2647
    %3859 = vmatprep.subr.bf16.mxu0 %v2652
    %3860 = vmatpush1.bf16.msra.mxu0 %v2651
    %3861 = vmatprep.subr.bf16.mxu0 %v2656
    %3862 = vmatpush1.bf16.msra.mxu0 %v2655
    %3863 = vmatprep.subr.bf16.mxu0 %v2660
    %3864 = vmatpush1.bf16.msra.mxu0 %v2659
    %3865 = vmatprep.subr.bf16.mxu0 %v2664
    %3866 = vmatpush1.bf16.msra.mxu0 %v2663
    %3867 = vmatprep.subr.bf16.mxu0 %v2668
    %3868 = vmatpush1.bf16.msra.mxu0 %v2667
    %3869 = vmatprep.subr.bf16.mxu0 %v2672
    %3870 = vmatpush1.bf16.msra.mxu0 %v2671
    %3871 = vmatprep.subr.bf16.mxu0 %v2676
    %3872 = vmatpush1.bf16.msra.mxu0 %v2675
    %3873 = vmatprep.subr.bf16.mxu0 %v2680
    %3874 = vmatpush1.bf16.msra.mxu0 %v2679
    %3875 = vmatprep.subr.bf16.mxu0 %v2684
    %3876 = vmatpush1.bf16.msra.mxu0 %v2683
    %3877 = vmatprep.subr.bf16.mxu0 %v2688
    %3878 = vmatpush1.bf16.msra.mxu0 %v2687
    %3879 = vmatprep.subr.bf16.mxu0 %v2692
    %3880 = vmatpush1.bf16.msra.mxu0 %v2691
    %3881 = vmatprep.subr.bf16.mxu0 %v2696
    %3882 = vmatpush1.bf16.msra.mxu0 %v2695
    %3883 = vmatprep.mubr.bf16.mxu0 %v774
    %3884 = vmatmul.mubr.bf16.gmra.mrb[0].mxu0 %v773
    %v3885 = vpop.f32.mrb[0].mxu0
    %v3886 = vadd.f32 %v727, %v3885
    %v3887 = vpop.f32.mrb[0].mxu0
    %v3888 = vadd.f32 %v731, %v3887
    %v3889 = vpop.f32.mrb[0].mxu0
    %v3890 = vpop.f32.mrb[0].mxu0
    %3891 = vdwg.mxu0
    %3892 = vmatprep.subr.bf16.mxu0 %v2700
    %3893 = vmatpush1.bf16.msra.mxu0 %v2699
    %3894 = vmatprep.subr.bf16.mxu0 %v2704
    %3895 = vmatpush1.bf16.msra.mxu0 %v2703
    %3896 = vmatprep.subr.bf16.mxu0 %v2708
    %3897 = vmatpush1.bf16.msra.mxu0 %v2707
    %3898 = vmatprep.subr.bf16.mxu0 %v2712
    %3899 = vmatpush1.bf16.msra.mxu0 %v2711
    %3900 = vmatprep.subr.bf16.mxu0 %v2716
    %3901 = vmatpush1.bf16.msra.mxu0 %v2715
    %3902 = vmatprep.subr.bf16.mxu0 %v2720
    %3903 = vmatpush1.bf16.msra.mxu0 %v2719
    %3904 = vmatprep.subr.bf16.mxu0 %v2724
    %3905 = vmatpush1.bf16.msra.mxu0 %v2723
    %3906 = vmatprep.subr.bf16.mxu0 %v2728
    %3907 = vmatpush1.bf16.msra.mxu0 %v2727
    %3908 = vmatprep.subr.bf16.mxu0 %v2732
    %3909 = vmatpush1.bf16.msra.mxu0 %v2731
    %3910 = vmatprep.subr.bf16.mxu0 %v2736
    %3911 = vmatpush1.bf16.msra.mxu0 %v2735
    %3912 = vmatprep.subr.bf16.mxu0 %v2740
    %3913 = vmatpush1.bf16.msra.mxu0 %v2739
    %3914 = vmatprep.subr.bf16.mxu0 %v2744
    %3915 = vmatpush1.bf16.msra.mxu0 %v2743
    %3916 = vmatprep.subr.bf16.mxu0 %v2748
    %3917 = vmatpush1.bf16.msra.mxu0 %v2747
    %3918 = vmatprep.subr.bf16.mxu0 %v2752
    %3919 = vmatpush1.bf16.msra.mxu0 %v2751
    %3920 = vmatprep.subr.bf16.mxu0 %v2756
    %3921 = vmatpush1.bf16.msra.mxu0 %v2755
    %3922 = vmatprep.subr.bf16.mxu0 %v2760
    %3923 = vmatpush1.bf16.msra.mxu0 %v2759
    %3924 = vmatprep.mubr.bf16.mxu0 %v776
    %3925 = vmatmul.mubr.bf16.gmra.mrb[0].mxu0 %v775
    %v3926 = vpop.f32.mrb[0].mxu0
    %v3927 = vadd.f32 %v3886, %v3926
    %v3928 = vpop.f32.mrb[0].mxu0
    %v3929 = vadd.f32 %v3888, %v3928
    %v3930 = vpop.f32.mrb[0].mxu0
    %v3931 = vpop.f32.mrb[0].mxu0
    %3932 = vdwg.mxu0
    %3933 = vmatprep.subr.bf16.mxu0 %v2764
    %3934 = vmatpush1.bf16.msra.mxu0 %v2763
    %3935 = vmatprep.subr.bf16.mxu0 %v2768
    %3936 = vmatpush1.bf16.msra.mxu0 %v2767
    %3937 = vmatprep.subr.bf16.mxu0 %v2772
    %3938 = vmatpush1.bf16.msra.mxu0 %v2771
    %3939 = vmatprep.subr.bf16.mxu0 %v2776
    %3940 = vmatpush1.bf16.msra.mxu0 %v2775
    %3941 = vmatprep.subr.bf16.mxu0 %v2780
    %3942 = vmatpush1.bf16.msra.mxu0 %v2779
    %3943 = vmatprep.subr.bf16.mxu0 %v2784
    %3944 = vmatpush1.bf16.msra.mxu0 %v2783
    %3945 = vmatprep.subr.bf16.mxu0 %v2788
    %3946 = vmatpush1.bf16.msra.mxu0 %v2787
    %3947 = vmatprep.subr.bf16.mxu0 %v2792
    %3948 = vmatpush1.bf16.msra.mxu0 %v2791
    %3949 = vmatprep.subr.bf16.mxu0 %v2796
    %3950 = vmatpush1.bf16.msra.mxu0 %v2795
    %3951 = vmatprep.subr.bf16.mxu0 %v2800
    %3952 = vmatpush1.bf16.msra.mxu0 %v2799
    %3953 = vmatprep.subr.bf16.mxu0 %v2804
    %3954 = vmatpush1.bf16.msra.mxu0 %v2803
    %3955 = vmatprep.subr.bf16.mxu0 %v2808
    %3956 = vmatpush1.bf16.msra.mxu0 %v2807
    %3957 = vmatprep.subr.bf16.mxu0 %v2812
    %3958 = vmatpush1.bf16.msra.mxu0 %v2811
    %3959 = vmatprep.subr.bf16.mxu0 %v2816
    %3960 = vmatpush1.bf16.msra.mxu0 %v2815
    %3961 = vmatprep.subr.bf16.mxu0 %v2820
    %3962 = vmatpush1.bf16.msra.mxu0 %v2819
    %3963 = vmatprep.subr.bf16.mxu0 %v2824
    %3964 = vmatpush1.bf16.msra.mxu0 %v2823
    %3965 = vmatprep.mubr.bf16.mxu0 %v778
    %3966 = vmatmul.mubr.bf16.gmra.mrb[0].mxu0 %v777
    %v3967 = vpop.f32.mrb[0].mxu0
    %v3968 = vadd.f32 %v3927, %v3967
    %v3969 = vpop.f32.mrb[0].mxu0
    %v3970 = vadd.f32 %v3929, %v3969
    %v3971 = vpop.f32.mrb[0].mxu0
    %v3972 = vpop.f32.mrb[0].mxu0
    %3973 = vdwg.mxu0
    %3974 = vmatprep.subr.bf16.mxu0 %v2828
    %3975 = vmatpush1.bf16.msra.mxu0 %v2827
    %3976 = vmatprep.subr.bf16.mxu0 %v2832
    %3977 = vmatpush1.bf16.msra.mxu0 %v2831
    %3978 = vmatprep.subr.bf16.mxu0 %v2836
    %3979 = vmatpush1.bf16.msra.mxu0 %v2835
    %3980 = vmatprep.subr.bf16.mxu0 %v2840
    %3981 = vmatpush1.bf16.msra.mxu0 %v2839
    %3982 = vmatprep.subr.bf16.mxu0 %v2844
    %3983 = vmatpush1.bf16.msra.mxu0 %v2843
    %3984 = vmatprep.subr.bf16.mxu0 %v2848
    %3985 = vmatpush1.bf16.msra.mxu0 %v2847
    %3986 = vmatprep.subr.bf16.mxu0 %v2852
    %3987 = vmatpush1.bf16.msra.mxu0 %v2851
    %3988 = vmatprep.subr.bf16.mxu0 %v2856
    %3989 = vmatpush1.bf16.msra.mxu0 %v2855
    %3990 = vmatprep.subr.bf16.mxu0 %v2860
    %3991 = vmatpush1.bf16.msra.mxu0 %v2859
    %3992 = vmatprep.subr.bf16.mxu0 %v2864
    %3993 = vmatpush1.bf16.msra.mxu0 %v2863
    %3994 = vmatprep.subr.bf16.mxu0 %v2868
    %3995 = vmatpush1.bf16.msra.mxu0 %v2867
    %3996 = vmatprep.subr.bf16.mxu0 %v2872
    %3997 = vmatpush1.bf16.msra.mxu0 %v2871
    %3998 = vmatprep.subr.bf16.mxu0 %v2876
    %3999 = vmatpush1.bf16.msra.mxu0 %v2875
    %4000 = vmatprep.subr.bf16.mxu0 %v2880
    %4001 = vmatpush1.bf16.msra.mxu0 %v2879
    %4002 = vmatprep.subr.bf16.mxu0 %v2884
    %4003 = vmatpush1.bf16.msra.mxu0 %v2883
    %4004 = vmatprep.subr.bf16.mxu0 %v2888
    %4005 = vmatpush1.bf16.msra.mxu0 %v2887
    %4006 = vmatprep.mubr.bf16.mxu0 %v780
    %4007 = vmatmul.mubr.bf16.gmra.mrb[0].mxu0 %v779
    %v4008 = vpop.f32.mrb[0].mxu0
    %v4009 = vadd.f32 %v3968, %v4008
    %v4010 = vpop.f32.mrb[0].mxu0
    %v4011 = vadd.f32 %v3970, %v4010
    %v4012 = vpop.f32.mrb[0].mxu0
    %v4013 = vpop.f32.mrb[0].mxu0
    %4014 = vdwg.mxu0
    %4015 = vmatprep.subr.bf16.mxu0 %v2892
    %4016 = vmatpush1.bf16.msra.mxu0 %v2891
    %4017 = vmatprep.subr.bf16.mxu0 %v2896
    %4018 = vmatpush1.bf16.msra.mxu0 %v2895
    %4019 = vmatprep.subr.bf16.mxu0 %v2900
    %4020 = vmatpush1.bf16.msra.mxu0 %v2899
    %4021 = vmatprep.subr.bf16.mxu0 %v2904
    %4022 = vmatpush1.bf16.msra.mxu0 %v2903
    %4023 = vmatprep.subr.bf16.mxu0 %v2908
    %4024 = vmatpush1.bf16.msra.mxu0 %v2907
    %4025 = vmatprep.subr.bf16.mxu0 %v2912
    %4026 = vmatpush1.bf16.msra.mxu0 %v2911
    %4027 = vmatprep.subr.bf16.mxu0 %v2916
    %4028 = vmatpush1.bf16.msra.mxu0 %v2915
    %4029 = vmatprep.subr.bf16.mxu0 %v2920
    %4030 = vmatpush1.bf16.msra.mxu0 %v2919
    %4031 = vmatprep.subr.bf16.mxu0 %v2924
    %4032 = vmatpush1.bf16.msra.mxu0 %v2923
    %4033 = vmatprep.subr.bf16.mxu0 %v2928
    %4034 = vmatpush1.bf16.msra.mxu0 %v2927
    %4035 = vmatprep.subr.bf16.mxu0 %v2932
    %4036 = vmatpush1.bf16.msra.mxu0 %v2931
    %4037 = vmatprep.subr.bf16.mxu0 %v2936
    %4038 = vmatpush1.bf16.msra.mxu0 %v2935
    %4039 = vmatprep.subr.bf16.mxu0 %v2940
    %4040 = vmatpush1.bf16.msra.mxu0 %v2939
    %4041 = vmatprep.subr.bf16.mxu0 %v2944
    %4042 = vmatpush1.bf16.msra.mxu0 %v2943
    %4043 = vmatprep.subr.bf16.mxu0 %v2948
    %4044 = vmatpush1.bf16.msra.mxu0 %v2947
    %4045 = vmatprep.subr.bf16.mxu0 %v2952
    %4046 = vmatpush1.bf16.msra.mxu0 %v2951
    %4047 = vmatprep.mubr.bf16.mxu0 %v782
    %4048 = vmatmul.mubr.bf16.gmra.mrb[0].mxu0 %v781
    %v4049 = vpop.f32.mrb[0].mxu0
    %v4050 = vadd.f32 %v4009, %v4049
    %v4051 = vpop.f32.mrb[0].mxu0
    %v4052 = vadd.f32 %v4011, %v4051
    %v4053 = vpop.f32.mrb[0].mxu0
    %v4054 = vpop.f32.mrb[0].mxu0
    %4055 = vdwg.mxu0
    %4056 = vmatprep.subr.bf16.mxu0 %v2956
    %4057 = vmatpush1.bf16.msra.mxu0 %v2955
    %4058 = vmatprep.subr.bf16.mxu0 %v2960
    %4059 = vmatpush1.bf16.msra.mxu0 %v2959
    %4060 = vmatprep.subr.bf16.mxu0 %v2964
    %4061 = vmatpush1.bf16.msra.mxu0 %v2963
    %4062 = vmatprep.subr.bf16.mxu0 %v2968
    %4063 = vmatpush1.bf16.msra.mxu0 %v2967
    %4064 = vmatprep.subr.bf16.mxu0 %v2972
    %4065 = vmatpush1.bf16.msra.mxu0 %v2971
    %4066 = vmatprep.subr.bf16.mxu0 %v2976
    %4067 = vmatpush1.bf16.msra.mxu0 %v2975
    %4068 = vmatprep.subr.bf16.mxu0 %v2980
    %4069 = vmatpush1.bf16.msra.mxu0 %v2979
    %4070 = vmatprep.subr.bf16.mxu0 %v2984
    %4071 = vmatpush1.bf16.msra.mxu0 %v2983
    %4072 = vmatprep.subr.bf16.mxu0 %v2988
    %4073 = vmatpush1.bf16.msra.mxu0 %v2987
    %4074 = vmatprep.subr.bf16.mxu0 %v2992
    %4075 = vmatpush1.bf16.msra.mxu0 %v2991
    %4076 = vmatprep.subr.bf16.mxu0 %v2996
    %4077 = vmatpush1.bf16.msra.mxu0 %v2995
    %4078 = vmatprep.subr.bf16.mxu0 %v3000
    %4079 = vmatpush1.bf16.msra.mxu0 %v2999
    %4080 = vmatprep.subr.bf16.mxu0 %v3004
    %4081 = vmatpush1.bf16.msra.mxu0 %v3003
    %4082 = vmatprep.subr.bf16.mxu0 %v3008
    %4083 = vmatpush1.bf16.msra.mxu0 %v3007
    %4084 = vmatprep.subr.bf16.mxu0 %v3012
    %4085 = vmatpush1.bf16.msra.mxu0 %v3011
    %4086 = vmatprep.subr.bf16.mxu0 %v3016
    %4087 = vmatpush1.bf16.msra.mxu0 %v3015
    %4088 = vmatprep.mubr.bf16.mxu0 %v784
    %4089 = vmatmul.mubr.bf16.gmra.mrb[0].mxu0 %v783
    %v4090 = vpop.f32.mrb[0].mxu0
    %v4091 = vadd.f32 %v4050, %v4090
    %v4092 = vpop.f32.mrb[0].mxu0
    %v4093 = vadd.f32 %v4052, %v4092
    %v4094 = vpop.f32.mrb[0].mxu0
    %v4095 = vpop.f32.mrb[0].mxu0
    %4096 = vdwg.mxu0
    %4097 = vmatprep.subr.bf16.mxu0 %v3020
    %4098 = vmatpush1.bf16.msra.mxu0 %v3019
    %4099 = vmatprep.subr.bf16.mxu0 %v3024
    %4100 = vmatpush1.bf16.msra.mxu0 %v3023
    %4101 = vmatprep.subr.bf16.mxu0 %v3028
    %4102 = vmatpush1.bf16.msra.mxu0 %v3027
    %4103 = vmatprep.subr.bf16.mxu0 %v3032
    %4104 = vmatpush1.bf16.msra.mxu0 %v3031
    %4105 = vmatprep.subr.bf16.mxu0 %v3036
    %4106 = vmatpush1.bf16.msra.mxu0 %v3035
    %4107 = vmatprep.subr.bf16.mxu0 %v3040
    %4108 = vmatpush1.bf16.msra.mxu0 %v3039
    %4109 = vmatprep.subr.bf16.mxu0 %v3044
    %4110 = vmatpush1.bf16.msra.mxu0 %v3043
    %4111 = vmatprep.subr.bf16.mxu0 %v3048
    %4112 = vmatpush1.bf16.msra.mxu0 %v3047
    %4113 = vmatprep.subr.bf16.mxu0 %v3052
    %4114 = vmatpush1.bf16.msra.mxu0 %v3051
    %4115 = vmatprep.subr.bf16.mxu0 %v3056
    %4116 = vmatpush1.bf16.msra.mxu0 %v3055
    %4117 = vmatprep.subr.bf16.mxu0 %v3060
    %4118 = vmatpush1.bf16.msra.mxu0 %v3059
    %4119 = vmatprep.subr.bf16.mxu0 %v3064
    %4120 = vmatpush1.bf16.msra.mxu0 %v3063
    %4121 = vmatprep.subr.bf16.mxu0 %v3068
    %4122 = vmatpush1.bf16.msra.mxu0 %v3067
    %4123 = vmatprep.subr.bf16.mxu0 %v3072
    %4124 = vmatpush1.bf16.msra.mxu0 %v3071
    %4125 = vmatprep.subr.bf16.mxu0 %v3076
    %4126 = vmatpush1.bf16.msra.mxu0 %v3075
    %4127 = vmatprep.subr.bf16.mxu0 %v3080
    %4128 = vmatpush1.bf16.msra.mxu0 %v3079
    %4129 = vmatprep.mubr.bf16.mxu0 %v786
    %4130 = vmatmul.mubr.bf16.gmra.mrb[0].mxu0 %v785
    %v4131 = vpop.f32.mrb[0].mxu0
    %v4132 = vadd.f32 %v4091, %v4131
    %v4133 = vpop.f32.mrb[0].mxu0
    %v4134 = vadd.f32 %v4093, %v4133
    %v4135 = vpop.f32.mrb[0].mxu0
    %v4136 = vpop.f32.mrb[0].mxu0
    %4137 = vdwg.mxu0
    %4138 = vmatprep.subr.bf16.mxu0 %v3084
    %4139 = vmatpush1.bf16.msra.mxu0 %v3083
    %4140 = vmatprep.subr.bf16.mxu0 %v3088
    %4141 = vmatpush1.bf16.msra.mxu0 %v3087
    %4142 = vmatprep.subr.bf16.mxu0 %v3092
    %4143 = vmatpush1.bf16.msra.mxu0 %v3091
    %4144 = vmatprep.subr.bf16.mxu0 %v3096
    %4145 = vmatpush1.bf16.msra.mxu0 %v3095
    %4146 = vmatprep.subr.bf16.mxu0 %v3100
    %4147 = vmatpush1.bf16.msra.mxu0 %v3099
    %4148 = vmatprep.subr.bf16.mxu0 %v3104
    %4149 = vmatpush1.bf16.msra.mxu0 %v3103
    %4150 = vmatprep.subr.bf16.mxu0 %v3108
    %4151 = vmatpush1.bf16.msra.mxu0 %v3107
    %4152 = vmatprep.subr.bf16.mxu0 %v3112
    %4153 = vmatpush1.bf16.msra.mxu0 %v3111
    %4154 = vmatprep.subr.bf16.mxu0 %v3116
    %4155 = vmatpush1.bf16.msra.mxu0 %v3115
    %4156 = vmatprep.subr.bf16.mxu0 %v3120
    %4157 = vmatpush1.bf16.msra.mxu0 %v3119
    %4158 = vmatprep.subr.bf16.mxu0 %v3124
    %4159 = vmatpush1.bf16.msra.mxu0 %v3123
    %4160 = vmatprep.subr.bf16.mxu0 %v3128
    %4161 = vmatpush1.bf16.msra.mxu0 %v3127
    %4162 = vmatprep.subr.bf16.mxu0 %v3132
    %4163 = vmatpush1.bf16.msra.mxu0 %v3131
    %4164 = vmatprep.subr.bf16.mxu0 %v3136
    %4165 = vmatpush1.bf16.msra.mxu0 %v3135
    %4166 = vmatprep.subr.bf16.mxu0 %v3140
    %4167 = vmatpush1.bf16.msra.mxu0 %v3139
    %4168 = vmatprep.subr.bf16.mxu0 %v3144
    %4169 = vmatpush1.bf16.msra.mxu0 %v3143
    %4170 = vmatprep.mubr.bf16.mxu0 %v788
    %4171 = vmatmul.mubr.bf16.gmra.mrb[0].mxu0 %v787
    %v4172 = vpop.f32.mrb[0].mxu0
    %v4173 = vadd.f32 %v4132, %v4172
    %v4174 = vpop.f32.mrb[0].mxu0
    %v4175 = vadd.f32 %v4134, %v4174
    %v4176 = vpop.f32.mrb[0].mxu0
    %v4177 = vpop.f32.mrb[0].mxu0
    %4178 = vdwg.mxu0
    %4179 = vmatprep.subr.bf16.mxu0 %v3148
    %4180 = vmatpush1.bf16.msra.mxu0 %v3147
    %4181 = vmatprep.subr.bf16.mxu0 %v3152
    %4182 = vmatpush1.bf16.msra.mxu0 %v3151
    %4183 = vmatprep.subr.bf16.mxu0 %v3156
    %4184 = vmatpush1.bf16.msra.mxu0 %v3155
    %4185 = vmatprep.subr.bf16.mxu0 %v3160
    %4186 = vmatpush1.bf16.msra.mxu0 %v3159
    %4187 = vmatprep.subr.bf16.mxu0 %v3164
    %4188 = vmatpush1.bf16.msra.mxu0 %v3163
    %4189 = vmatprep.subr.bf16.mxu0 %v3168
    %4190 = vmatpush1.bf16.msra.mxu0 %v3167
    %4191 = vmatprep.subr.bf16.mxu0 %v3172
    %4192 = vmatpush1.bf16.msra.mxu0 %v3171
    %4193 = vmatprep.subr.bf16.mxu0 %v3176
    %4194 = vmatpush1.bf16.msra.mxu0 %v3175
    %4195 = vmatprep.subr.bf16.mxu0 %v3180
    %4196 = vmatpush1.bf16.msra.mxu0 %v3179
    %4197 = vmatprep.subr.bf16.mxu0 %v3184
    %4198 = vmatpush1.bf16.msra.mxu0 %v3183
    %4199 = vmatprep.subr.bf16.mxu0 %v3188
    %4200 = vmatpush1.bf16.msra.mxu0 %v3187
    %4201 = vmatprep.subr.bf16.mxu0 %v3192
    %4202 = vmatpush1.bf16.msra.mxu0 %v3191
    %4203 = vmatprep.subr.bf16.mxu0 %v3196
    %4204 = vmatpush1.bf16.msra.mxu0 %v3195
    %4205 = vmatprep.subr.bf16.mxu0 %v3200
    %4206 = vmatpush1.bf16.msra.mxu0 %v3199
    %4207 = vmatprep.subr.bf16.mxu0 %v3204
    %4208 = vmatpush1.bf16.msra.mxu0 %v3203
    %4209 = vmatprep.subr.bf16.mxu0 %v3208
    %4210 = vmatpush1.bf16.msra.mxu0 %v3207
    %4211 = vmatprep.mubr.bf16.mxu0 %v790
    %4212 = vmatmul.mubr.bf16.gmra.mrb[0].mxu0 %v789
    %v4213 = vpop.f32.mrb[0].mxu0
    %v4214 = vadd.f32 %v4173, %v4213
    %v4215 = vpop.f32.mrb[0].mxu0
    %v4216 = vadd.f32 %v4175, %v4215
    %v4217 = vpop.f32.mrb[0].mxu0
    %v4218 = vpop.f32.mrb[0].mxu0
    %4219 = vdwg.mxu0
    %4220 = vmatprep.subr.bf16.mxu0 %v3212
    %4221 = vmatpush1.bf16.msra.mxu0 %v3211
    %4222 = vmatprep.subr.bf16.mxu0 %v3216
    %4223 = vmatpush1.bf16.msra.mxu0 %v3215
    %4224 = vmatprep.subr.bf16.mxu0 %v3220
    %4225 = vmatpush1.bf16.msra.mxu0 %v3219
    %4226 = vmatprep.subr.bf16.mxu0 %v3224
    %4227 = vmatpush1.bf16.msra.mxu0 %v3223
    %4228 = vmatprep.subr.bf16.mxu0 %v3228
    %4229 = vmatpush1.bf16.msra.mxu0 %v3227
    %4230 = vmatprep.subr.bf16.mxu0 %v3232
    %4231 = vmatpush1.bf16.msra.mxu0 %v3231
    %4232 = vmatprep.subr.bf16.mxu0 %v3236
    %4233 = vmatpush1.bf16.msra.mxu0 %v3235
    %4234 = vmatprep.subr.bf16.mxu0 %v3240
    %4235 = vmatpush1.bf16.msra.mxu0 %v3239
    %4236 = vmatprep.subr.bf16.mxu0 0
    %4237 = vmatpush1.bf16.msra.mxu0 0
    %4238 = vmatprep.subr.bf16.mxu0 0
    %4239 = vmatpush1.bf16.msra.mxu0 0
    %4240 = vmatprep.subr.bf16.mxu0 0
    %4241 = vmatpush1.bf16.msra.mxu0 0
    %4242 = vmatprep.subr.bf16.mxu0 0
    %4243 = vmatpush1.bf16.msra.mxu0 0
    %4244 = vmatprep.subr.bf16.mxu0 0
    %4245 = vmatpush1.bf16.msra.mxu0 0
    %4246 = vmatprep.subr.bf16.mxu0 0
    %4247 = vmatpush1.bf16.msra.mxu0 0
    %4248 = vmatprep.subr.bf16.mxu0 0
    %4249 = vmatpush1.bf16.msra.mxu0 0
    %4250 = vmatprep.subr.bf16.mxu0 0
    %4251 = vmatpush1.bf16.msra.mxu0 0
    %4252 = vmatprep.mubr.bf16.mxu0 0
    %4253 = vmatmul.mubr.bf16.gmra.mrb[0].mxu0 %v791
    %v4254 = vpop.f32.mrb[0].mxu0
    %v4255 = vadd.f32 %v4214, %v4254
    %v4256 = vpop.f32.mrb[0].mxu0
    %v4257 = vadd.f32 %v4216, %v4256
    %v4258 = vpop.f32.mrb[0].mxu0
    %v4259 = vpop.f32.mrb[0].mxu0
    %4260 = vdwg.mxu0
    %4261 = vmatprep.subr.bf16.mxu0 %v2638
    %4262 = vmatpush1.bf16.msra.mxu0 %v2637
    %4263 = vmatprep.subr.bf16.mxu0 %v2642
    %4264 = vmatpush1.bf16.msra.mxu0 %v2641
    %4265 = vmatprep.subr.bf16.mxu0 %v2646
    %4266 = vmatpush1.bf16.msra.mxu0 %v2645
    %4267 = vmatprep.subr.bf16.mxu0 %v2650
    %4268 = vmatpush1.bf16.msra.mxu0 %v2649
    %4269 = vmatprep.subr.bf16.mxu0 %v2654
    %4270 = vmatpush1.bf16.msra.mxu0 %v2653
    %4271 = vmatprep.subr.bf16.mxu0 %v2658
    %4272 = vmatpush1.bf16.msra.mxu0 %v2657
    %4273 = vmatprep.subr.bf16.mxu0 %v2662
    %4274 = vmatpush1.bf16.msra.mxu0 %v2661
    %4275 = vmatprep.subr.bf16.mxu0 %v2666
    %4276 = vmatpush1.bf16.msra.mxu0 %v2665
    %4277 = vmatprep.subr.bf16.mxu0 %v2670
    %4278 = vmatpush1.bf16.msra.mxu0 %v2669
    %4279 = vmatprep.subr.bf16.mxu0 %v2674
    %4280 = vmatpush1.bf16.msra.mxu0 %v2673
    %4281 = vmatprep.subr.bf16.mxu0 %v2678
    %4282 = vmatpush1.bf16.msra.mxu0 %v2677
    %4283 = vmatprep.subr.bf16.mxu0 %v2682
    %4284 = vmatpush1.bf16.msra.mxu0 %v2681
    %4285 = vmatprep.subr.bf16.mxu0 %v2686
    %4286 = vmatpush1.bf16.msra.mxu0 %v2685
    %4287 = vmatprep.subr.bf16.mxu0 %v2690
    %4288 = vmatpush1.bf16.msra.mxu0 %v2689
    %4289 = vmatprep.subr.bf16.mxu0 %v2694
    %4290 = vmatpush1.bf16.msra.mxu0 %v2693
    %4291 = vmatprep.subr.bf16.mxu0 %v2698
    %4292 = vmatpush1.bf16.msra.mxu0 %v2697
    %4293 = vmatprep.mubr.bf16.mxu0 %v774
    %4294 = vmatmul.mubr.bf16.gmra.mrb[0].mxu0 %v773
    %v4295 = vpop.f32.mrb[0].mxu0
    %v4296 = vadd.f32 %v735, %v4295
    %v4297 = vpop.f32.mrb[0].mxu0
    %v4298 = vadd.f32 %v739, %v4297
    %v4299 = vpop.f32.mrb[0].mxu0
    %v4300 = vpop.f32.mrb[0].mxu0
    %4301 = vdwg.mxu0
    %4302 = vmatprep.subr.bf16.mxu0 %v2702
    %4303 = vmatpush1.bf16.msra.mxu0 %v2701
    %4304 = vmatprep.subr.bf16.mxu0 %v2706
    %4305 = vmatpush1.bf16.msra.mxu0 %v2705
    %4306 = vmatprep.subr.bf16.mxu0 %v2710
    %4307 = vmatpush1.bf16.msra.mxu0 %v2709
    %4308 = vmatprep.subr.bf16.mxu0 %v2714
    %4309 = vmatpush1.bf16.msra.mxu0 %v2713
    %4310 = vmatprep.subr.bf16.mxu0 %v2718
    %4311 = vmatpush1.bf16.msra.mxu0 %v2717
    %4312 = vmatprep.subr.bf16.mxu0 %v2722
    %4313 = vmatpush1.bf16.msra.mxu0 %v2721
    %4314 = vmatprep.subr.bf16.mxu0 %v2726
    %4315 = vmatpush1.bf16.msra.mxu0 %v2725
    %4316 = vmatprep.subr.bf16.mxu0 %v2730
    %4317 = vmatpush1.bf16.msra.mxu0 %v2729
    %4318 = vmatprep.subr.bf16.mxu0 %v2734
    %4319 = vmatpush1.bf16.msra.mxu0 %v2733
    %4320 = vmatprep.subr.bf16.mxu0 %v2738
    %4321 = vmatpush1.bf16.msra.mxu0 %v2737
    %4322 = vmatprep.subr.bf16.mxu0 %v2742
    %4323 = vmatpush1.bf16.msra.mxu0 %v2741
    %4324 = vmatprep.subr.bf16.mxu0 %v2746
    %4325 = vmatpush1.bf16.msra.mxu0 %v2745
    %4326 = vmatprep.subr.bf16.mxu0 %v2750
    %4327 = vmatpush1.bf16.msra.mxu0 %v2749
    %4328 = vmatprep.subr.bf16.mxu0 %v2754
    %4329 = vmatpush1.bf16.msra.mxu0 %v2753
    %4330 = vmatprep.subr.bf16.mxu0 %v2758
    %4331 = vmatpush1.bf16.msra.mxu0 %v2757
    %4332 = vmatprep.subr.bf16.mxu0 %v2762
    %4333 = vmatpush1.bf16.msra.mxu0 %v2761
    %4334 = vmatprep.mubr.bf16.mxu0 %v776
    %4335 = vmatmul.mubr.bf16.gmra.mrb[0].mxu0 %v775
    %v4336 = vpop.f32.mrb[0].mxu0
    %v4337 = vadd.f32 %v4296, %v4336
    %v4338 = vpop.f32.mrb[0].mxu0
    %v4339 = vadd.f32 %v4298, %v4338
    %v4340 = vpop.f32.mrb[0].mxu0
    %v4341 = vpop.f32.mrb[0].mxu0
    %4342 = vdwg.mxu0
    %4343 = vmatprep.subr.bf16.mxu0 %v2766
    %4344 = vmatpush1.bf16.msra.mxu0 %v2765
    %4345 = vmatprep.subr.bf16.mxu0 %v2770
    %4346 = vmatpush1.bf16.msra.mxu0 %v2769
    %4347 = vmatprep.subr.bf16.mxu0 %v2774
    %4348 = vmatpush1.bf16.msra.mxu0 %v2773
    %4349 = vmatprep.subr.bf16.mxu0 %v2778
    %4350 = vmatpush1.bf16.msra.mxu0 %v2777
    %4351 = vmatprep.subr.bf16.mxu0 %v2782
    %4352 = vmatpush1.bf16.msra.mxu0 %v2781
    %4353 = vmatprep.subr.bf16.mxu0 %v2786
    %4354 = vmatpush1.bf16.msra.mxu0 %v2785
    %4355 = vmatprep.subr.bf16.mxu0 %v2790
    %4356 = vmatpush1.bf16.msra.mxu0 %v2789
    %4357 = vmatprep.subr.bf16.mxu0 %v2794
    %4358 = vmatpush1.bf16.msra.mxu0 %v2793
    %4359 = vmatprep.subr.bf16.mxu0 %v2798
    %4360 = vmatpush1.bf16.msra.mxu0 %v2797
    %4361 = vmatprep.subr.bf16.mxu0 %v2802
    %4362 = vmatpush1.bf16.msra.mxu0 %v2801
    %4363 = vmatprep.subr.bf16.mxu0 %v2806
    %4364 = vmatpush1.bf16.msra.mxu0 %v2805
    %4365 = vmatprep.subr.bf16.mxu0 %v2810
    %4366 = vmatpush1.bf16.msra.mxu0 %v2809
    %4367 = vmatprep.subr.bf16.mxu0 %v2814
    %4368 = vmatpush1.bf16.msra.mxu0 %v2813
    %4369 = vmatprep.subr.bf16.mxu0 %v2818
    %4370 = vmatpush1.bf16.msra.mxu0 %v2817
    %4371 = vmatprep.subr.bf16.mxu0 %v2822
    %4372 = vmatpush1.bf16.msra.mxu0 %v2821
    %4373 = vmatprep.subr.bf16.mxu0 %v2826
    %4374 = vmatpush1.bf16.msra.mxu0 %v2825
    %4375 = vmatprep.mubr.bf16.mxu0 %v778
    %4376 = vmatmul.mubr.bf16.gmra.mrb[0].mxu0 %v777
    %v4377 = vpop.f32.mrb[0].mxu0
    %v4378 = vadd.f32 %v4337, %v4377
    %v4379 = vpop.f32.mrb[0].mxu0
    %v4380 = vadd.f32 %v4339, %v4379
    %v4381 = vpop.f32.mrb[0].mxu0
    %v4382 = vpop.f32.mrb[0].mxu0
    %4383 = vdwg.mxu0
    %4384 = vmatprep.subr.bf16.mxu0 %v2830
    %4385 = vmatpush1.bf16.msra.mxu0 %v2829
    %4386 = vmatprep.subr.bf16.mxu0 %v2834
    %4387 = vmatpush1.bf16.msra.mxu0 %v2833
    %4388 = vmatprep.subr.bf16.mxu0 %v2838
    %4389 = vmatpush1.bf16.msra.mxu0 %v2837
    %4390 = vmatprep.subr.bf16.mxu0 %v2842
    %4391 = vmatpush1.bf16.msra.mxu0 %v2841
    %4392 = vmatprep.subr.bf16.mxu0 %v2846
    %4393 = vmatpush1.bf16.msra.mxu0 %v2845
    %4394 = vmatprep.subr.bf16.mxu0 %v2850
    %4395 = vmatpush1.bf16.msra.mxu0 %v2849
    %4396 = vmatprep.subr.bf16.mxu0 %v2854
    %4397 = vmatpush1.bf16.msra.mxu0 %v2853
    %4398 = vmatprep.subr.bf16.mxu0 %v2858
    %4399 = vmatpush1.bf16.msra.mxu0 %v2857
    %4400 = vmatprep.subr.bf16.mxu0 %v2862
    %4401 = vmatpush1.bf16.msra.mxu0 %v2861
    %4402 = vmatprep.subr.bf16.mxu0 %v2866
    %4403 = vmatpush1.bf16.msra.mxu0 %v2865
    %4404 = vmatprep.subr.bf16.mxu0 %v2870
    %4405 = vmatpush1.bf16.msra.mxu0 %v2869
    %4406 = vmatprep.subr.bf16.mxu0 %v2874
    %4407 = vmatpush1.bf16.msra.mxu0 %v2873
    %4408 = vmatprep.subr.bf16.mxu0 %v2878
    %4409 = vmatpush1.bf16.msra.mxu0 %v2877
    %4410 = vmatprep.subr.bf16.mxu0 %v2882
    %4411 = vmatpush1.bf16.msra.mxu0 %v2881
    %4412 = vmatprep.subr.bf16.mxu0 %v2886
    %4413 = vmatpush1.bf16.msra.mxu0 %v2885
    %4414 = vmatprep.subr.bf16.mxu0 %v2890
    %4415 = vmatpush1.bf16.msra.mxu0 %v2889
    %4416 = vmatprep.mubr.bf16.mxu0 %v780
    %4417 = vmatmul.mubr.bf16.gmra.mrb[0].mxu0 %v779
    %v4418 = vpop.f32.mrb[0].mxu0
    %v4419 = vadd.f32 %v4378, %v4418
    %v4420 = vpop.f32.mrb[0].mxu0
    %v4421 = vadd.f32 %v4380, %v4420
    %v4422 = vpop.f32.mrb[0].mxu0
    %v4423 = vpop.f32.mrb[0].mxu0
    %4424 = vdwg.mxu0
    %4425 = vmatprep.subr.bf16.mxu0 %v2894
    %4426 = vmatpush1.bf16.msra.mxu0 %v2893
    %4427 = vmatprep.subr.bf16.mxu0 %v2898
    %4428 = vmatpush1.bf16.msra.mxu0 %v2897
    %4429 = vmatprep.subr.bf16.mxu0 %v2902
    %4430 = vmatpush1.bf16.msra.mxu0 %v2901
    %4431 = vmatprep.subr.bf16.mxu0 %v2906
    %4432 = vmatpush1.bf16.msra.mxu0 %v2905
    %4433 = vmatprep.subr.bf16.mxu0 %v2910
    %4434 = vmatpush1.bf16.msra.mxu0 %v2909
    %4435 = vmatprep.subr.bf16.mxu0 %v2914
    %4436 = vmatpush1.bf16.msra.mxu0 %v2913
    %4437 = vmatprep.subr.bf16.mxu0 %v2918
    %4438 = vmatpush1.bf16.msra.mxu0 %v2917
    %4439 = vmatprep.subr.bf16.mxu0 %v2922
    %4440 = vmatpush1.bf16.msra.mxu0 %v2921
    %4441 = vmatprep.subr.bf16.mxu0 %v2926
    %4442 = vmatpush1.bf16.msra.mxu0 %v2925
    %4443 = vmatprep.subr.bf16.mxu0 %v2930
    %4444 = vmatpush1.bf16.msra.mxu0 %v2929
    %4445 = vmatprep.subr.bf16.mxu0 %v2934
    %4446 = vmatpush1.bf16.msra.mxu0 %v2933
    %4447 = vmatprep.subr.bf16.mxu0 %v2938
    %4448 = vmatpush1.bf16.msra.mxu0 %v2937
    %4449 = vmatprep.subr.bf16.mxu0 %v2942
    %4450 = vmatpush1.bf16.msra.mxu0 %v2941
    %4451 = vmatprep.subr.bf16.mxu0 %v2946
    %4452 = vmatpush1.bf16.msra.mxu0 %v2945
    %4453 = vmatprep.subr.bf16.mxu0 %v2950
    %4454 = vmatpush1.bf16.msra.mxu0 %v2949
    %4455 = vmatprep.subr.bf16.mxu0 %v2954
    %4456 = vmatpush1.bf16.msra.mxu0 %v2953
    %4457 = vmatprep.mubr.bf16.mxu0 %v782
    %4458 = vmatmul.mubr.bf16.gmra.mrb[0].mxu0 %v781
    %v4459 = vpop.f32.mrb[0].mxu0
    %v4460 = vadd.f32 %v4419, %v4459
    %v4461 = vpop.f32.mrb[0].mxu0
    %v4462 = vadd.f32 %v4421, %v4461
    %v4463 = vpop.f32.mrb[0].mxu0
    %v4464 = vpop.f32.mrb[0].mxu0
    %4465 = vdwg.mxu0
    %4466 = vmatprep.subr.bf16.mxu0 %v2958
    %4467 = vmatpush1.bf16.msra.mxu0 %v2957
    %4468 = vmatprep.subr.bf16.mxu0 %v2962
    %4469 = vmatpush1.bf16.msra.mxu0 %v2961
    %4470 = vmatprep.subr.bf16.mxu0 %v2966
    %4471 = vmatpush1.bf16.msra.mxu0 %v2965
    %4472 = vmatprep.subr.bf16.mxu0 %v2970
    %4473 = vmatpush1.bf16.msra.mxu0 %v2969
    %4474 = vmatprep.subr.bf16.mxu0 %v2974
    %4475 = vmatpush1.bf16.msra.mxu0 %v2973
    %4476 = vmatprep.subr.bf16.mxu0 %v2978
    %4477 = vmatpush1.bf16.msra.mxu0 %v2977
    %4478 = vmatprep.subr.bf16.mxu0 %v2982
    %4479 = vmatpush1.bf16.msra.mxu0 %v2981
    %4480 = vmatprep.subr.bf16.mxu0 %v2986
    %4481 = vmatpush1.bf16.msra.mxu0 %v2985
    %4482 = vmatprep.subr.bf16.mxu0 %v2990
    %4483 = vmatpush1.bf16.msra.mxu0 %v2989
    %4484 = vmatprep.subr.bf16.mxu0 %v2994
    %4485 = vmatpush1.bf16.msra.mxu0 %v2993
    %4486 = vmatprep.subr.bf16.mxu0 %v2998
    %4487 = vmatpush1.bf16.msra.mxu0 %v2997
    %4488 = vmatprep.subr.bf16.mxu0 %v3002
    %4489 = vmatpush1.bf16.msra.mxu0 %v3001
    %4490 = vmatprep.subr.bf16.mxu0 %v3006
    %4491 = vmatpush1.bf16.msra.mxu0 %v3005
    %4492 = vmatprep.subr.bf16.mxu0 %v3010
    %4493 = vmatpush1.bf16.msra.mxu0 %v3009
    %4494 = vmatprep.subr.bf16.mxu0 %v3014
    %4495 = vmatpush1.bf16.msra.mxu0 %v3013
    %4496 = vmatprep.subr.bf16.mxu0 %v3018
    %4497 = vmatpush1.bf16.msra.mxu0 %v3017
    %4498 = vmatprep.mubr.bf16.mxu0 %v784
    %4499 = vmatmul.mubr.bf16.gmra.mrb[0].mxu0 %v783
    %v4500 = vpop.f32.mrb[0].mxu0
    %v4501 = vadd.f32 %v4460, %v4500
    %v4502 = vpop.f32.mrb[0].mxu0
    %v4503 = vadd.f32 %v4462, %v4502
    %v4504 = vpop.f32.mrb[0].mxu0
    %v4505 = vpop.f32.mrb[0].mxu0
    %4506 = vdwg.mxu0
    %4507 = vmatprep.subr.bf16.mxu0 %v3022
    %4508 = vmatpush1.bf16.msra.mxu0 %v3021
    %4509 = vmatprep.subr.bf16.mxu0 %v3026
    %4510 = vmatpush1.bf16.msra.mxu0 %v3025
    %4511 = vmatprep.subr.bf16.mxu0 %v3030
    %4512 = vmatpush1.bf16.msra.mxu0 %v3029
    %4513 = vmatprep.subr.bf16.mxu0 %v3034
    %4514 = vmatpush1.bf16.msra.mxu0 %v3033
    %4515 = vmatprep.subr.bf16.mxu0 %v3038
    %4516 = vmatpush1.bf16.msra.mxu0 %v3037
    %4517 = vmatprep.subr.bf16.mxu0 %v3042
    %4518 = vmatpush1.bf16.msra.mxu0 %v3041
    %4519 = vmatprep.subr.bf16.mxu0 %v3046
    %4520 = vmatpush1.bf16.msra.mxu0 %v3045
    %4521 = vmatprep.subr.bf16.mxu0 %v3050
    %4522 = vmatpush1.bf16.msra.mxu0 %v3049
    %4523 = vmatprep.subr.bf16.mxu0 %v3054
    %4524 = vmatpush1.bf16.msra.mxu0 %v3053
    %4525 = vmatprep.subr.bf16.mxu0 %v3058
    %4526 = vmatpush1.bf16.msra.mxu0 %v3057
    %4527 = vmatprep.subr.bf16.mxu0 %v3062
    %4528 = vmatpush1.bf16.msra.mxu0 %v3061
    %4529 = vmatprep.subr.bf16.mxu0 %v3066
    %4530 = vmatpush1.bf16.msra.mxu0 %v3065
    %4531 = vmatprep.subr.bf16.mxu0 %v3070
    %4532 = vmatpush1.bf16.msra.mxu0 %v3069
    %4533 = vmatprep.subr.bf16.mxu0 %v3074
    %4534 = vmatpush1.bf16.msra.mxu0 %v3073
    %4535 = vmatprep.subr.bf16.mxu0 %v3078
    %4536 = vmatpush1.bf16.msra.mxu0 %v3077
    %4537 = vmatprep.subr.bf16.mxu0 %v3082
    %4538 = vmatpush1.bf16.msra.mxu0 %v3081
    %4539 = vmatprep.mubr.bf16.mxu0 %v786
    %4540 = vmatmul.mubr.bf16.gmra.mrb[0].mxu0 %v785
    %v4541 = vpop.f32.mrb[0].mxu0
    %v4542 = vadd.f32 %v4501, %v4541
    %v4543 = vpop.f32.mrb[0].mxu0
    %v4544 = vadd.f32 %v4503, %v4543
    %v4545 = vpop.f32.mrb[0].mxu0
    %v4546 = vpop.f32.mrb[0].mxu0
    %4547 = vdwg.mxu0
    %4548 = vmatprep.subr.bf16.mxu0 %v3086
    %4549 = vmatpush1.bf16.msra.mxu0 %v3085
    %4550 = vmatprep.subr.bf16.mxu0 %v3090
    %4551 = vmatpush1.bf16.msra.mxu0 %v3089
    %4552 = vmatprep.subr.bf16.mxu0 %v3094
    %4553 = vmatpush1.bf16.msra.mxu0 %v3093
    %4554 = vmatprep.subr.bf16.mxu0 %v3098
    %4555 = vmatpush1.bf16.msra.mxu0 %v3097
    %4556 = vmatprep.subr.bf16.mxu0 %v3102
    %4557 = vmatpush1.bf16.msra.mxu0 %v3101
    %4558 = vmatprep.subr.bf16.mxu0 %v3106
    %4559 = vmatpush1.bf16.msra.mxu0 %v3105
    %4560 = vmatprep.subr.bf16.mxu0 %v3110
    %4561 = vmatpush1.bf16.msra.mxu0 %v3109
    %4562 = vmatprep.subr.bf16.mxu0 %v3114
    %4563 = vmatpush1.bf16.msra.mxu0 %v3113
    %4564 = vmatprep.subr.bf16.mxu0 %v3118
    %4565 = vmatpush1.bf16.msra.mxu0 %v3117
    %4566 = vmatprep.subr.bf16.mxu0 %v3122
    %4567 = vmatpush1.bf16.msra.mxu0 %v3121
    %4568 = vmatprep.subr.bf16.mxu0 %v3126
    %4569 = vmatpush1.bf16.msra.mxu0 %v3125
    %4570 = vmatprep.subr.bf16.mxu0 %v3130
    %4571 = vmatpush1.bf16.msra.mxu0 %v3129
    %4572 = vmatprep.subr.bf16.mxu0 %v3134
    %4573 = vmatpush1.bf16.msra.mxu0 %v3133
    %4574 = vmatprep.subr.bf16.mxu0 %v3138
    %4575 = vmatpush1.bf16.msra.mxu0 %v3137
    %4576 = vmatprep.subr.bf16.mxu0 %v3142
    %4577 = vmatpush1.bf16.msra.mxu0 %v3141
    %4578 = vmatprep.subr.bf16.mxu0 %v3146
    %4579 = vmatpush1.bf16.msra.mxu0 %v3145
    %4580 = vmatprep.mubr.bf16.mxu0 %v788
    %4581 = vmatmul.mubr.bf16.gmra.mrb[0].mxu0 %v787
    %v4582 = vpop.f32.mrb[0].mxu0
    %v4583 = vadd.f32 %v4542, %v4582
    %v4584 = vpop.f32.mrb[0].mxu0
    %v4585 = vadd.f32 %v4544, %v4584
    %v4586 = vpop.f32.mrb[0].mxu0
    %v4587 = vpop.f32.mrb[0].mxu0
    %4588 = vdwg.mxu0
    %4589 = vmatprep.subr.bf16.mxu0 %v3150
    %4590 = vmatpush1.bf16.msra.mxu0 %v3149
    %4591 = vmatprep.subr.bf16.mxu0 %v3154
    %4592 = vmatpush1.bf16.msra.mxu0 %v3153
    %4593 = vmatprep.subr.bf16.mxu0 %v3158
    %4594 = vmatpush1.bf16.msra.mxu0 %v3157
    %4595 = vmatprep.subr.bf16.mxu0 %v3162
    %4596 = vmatpush1.bf16.msra.mxu0 %v3161
    %4597 = vmatprep.subr.bf16.mxu0 %v3166
    %4598 = vmatpush1.bf16.msra.mxu0 %v3165
    %4599 = vmatprep.subr.bf16.mxu0 %v3170
    %4600 = vmatpush1.bf16.msra.mxu0 %v3169
    %4601 = vmatprep.subr.bf16.mxu0 %v3174
    %4602 = vmatpush1.bf16.msra.mxu0 %v3173
    %4603 = vmatprep.subr.bf16.mxu0 %v3178
    %4604 = vmatpush1.bf16.msra.mxu0 %v3177
    %4605 = vmatprep.subr.bf16.mxu0 %v3182
    %4606 = vmatpush1.bf16.msra.mxu0 %v3181
    %4607 = vmatprep.subr.bf16.mxu0 %v3186
    %4608 = vmatpush1.bf16.msra.mxu0 %v3185
    %4609 = vmatprep.subr.bf16.mxu0 %v3190
    %4610 = vmatpush1.bf16.msra.mxu0 %v3189
    %4611 = vmatprep.subr.bf16.mxu0 %v3194
    %4612 = vmatpush1.bf16.msra.mxu0 %v3193
    %4613 = vmatprep.subr.bf16.mxu0 %v3198
    %4614 = vmatpush1.bf16.msra.mxu0 %v3197
    %4615 = vmatprep.subr.bf16.mxu0 %v3202
    %4616 = vmatpush1.bf16.msra.mxu0 %v3201
    %4617 = vmatprep.subr.bf16.mxu0 %v3206
    %4618 = vmatpush1.bf16.msra.mxu0 %v3205
    %4619 = vmatprep.subr.bf16.mxu0 %v3210
    %4620 = vmatpush1.bf16.msra.mxu0 %v3209
    %4621 = vmatprep.mubr.bf16.mxu0 %v790
    %4622 = vmatmul.mubr.bf16.gmra.mrb[0].mxu0 %v789
    %v4623 = vpop.f32.mrb[0].mxu0
    %v4624 = vadd.f32 %v4583, %v4623
    %v4625 = vpop.f32.mrb[0].mxu0
    %v4626 = vadd.f32 %v4585, %v4625
    %v4627 = vpop.f32.mrb[0].mxu0
    %v4628 = vpop.f32.mrb[0].mxu0
    %4629 = vdwg.mxu0
    %4630 = vmatprep.subr.bf16.mxu0 %v3214
    %4631 = vmatpush1.bf16.msra.mxu0 %v3213
    %4632 = vmatprep.subr.bf16.mxu0 %v3218
    %4633 = vmatpush1.bf16.msra.mxu0 %v3217
    %4634 = vmatprep.subr.bf16.mxu0 %v3222
    %4635 = vmatpush1.bf16.msra.mxu0 %v3221
    %4636 = vmatprep.subr.bf16.mxu0 %v3226
    %4637 = vmatpush1.bf16.msra.mxu0 %v3225
    %4638 = vmatprep.subr.bf16.mxu0 %v3230
    %4639 = vmatpush1.bf16.msra.mxu0 %v3229
    %4640 = vmatprep.subr.bf16.mxu0 %v3234
    %4641 = vmatpush1.bf16.msra.mxu0 %v3233
    %4642 = vmatprep.subr.bf16.mxu0 %v3238
    %4643 = vmatpush1.bf16.msra.mxu0 %v3237
    %4644 = vmatprep.subr.bf16.mxu0 %v3242
    %4645 = vmatpush1.bf16.msra.mxu0 %v3241
    %4646 = vmatprep.subr.bf16.mxu0 0
    %4647 = vmatpush1.bf16.msra.mxu0 0
    %4648 = vmatprep.subr.bf16.mxu0 0
    %4649 = vmatpush1.bf16.msra.mxu0 0
    %4650 = vmatprep.subr.bf16.mxu0 0
    %4651 = vmatpush1.bf16.msra.mxu0 0
    %4652 = vmatprep.subr.bf16.mxu0 0
    %4653 = vmatpush1.bf16.msra.mxu0 0
    %4654 = vmatprep.subr.bf16.mxu0 0
    %4655 = vmatpush1.bf16.msra.mxu0 0
    %4656 = vmatprep.subr.bf16.mxu0 0
    %4657 = vmatpush1.bf16.msra.mxu0 0
    %4658 = vmatprep.subr.bf16.mxu0 0
    %4659 = vmatpush1.bf16.msra.mxu0 0
    %4660 = vmatprep.subr.bf16.mxu0 0
    %4661 = vmatpush1.bf16.msra.mxu0 0
    %4662 = vmatprep.mubr.bf16.mxu0 0
    %4663 = vmatmul.mubr.bf16.gmra.mrb[0].mxu0 %v791
    %v4664 = vpop.f32.mrb[0].mxu0
    %v4665 = vadd.f32 %v4624, %v4664
    %v4666 = vpop.f32.mrb[0].mxu0
    %v4667 = vadd.f32 %v4626, %v4666
    %v4668 = vpop.f32.mrb[0].mxu0
    %v4669 = vpop.f32.mrb[0].mxu0
    %4670 = vdwg.mxu0
    %v4671 = vadd.f32 %v4255, 0.0
    %v4672 = vadd.f32 %v4257, 0.0
    %v4673 = vadd.f32 %v4665, 0.0
    %v4674 = vadd.f32 %v4667, 0.0
    %vm4675 = vcmp.gt.f32.partialorder %v4671, 0.2
    %vm4676 = vcmp.gt.f32.partialorder %v4672, 0.2
    %vm4677 = vcmp.gt.f32.partialorder %v4673, 0.2
    %vm4678 = vcmp.gt.f32.partialorder %v4674, 0.2
    %v4679 = vsel %vm4675, 1, 0
    %v4680 = vsel %vm4676, 1, 0
    %v4681 = vsel %vm4677, 1, 0
    %v4682 = vsel %vm4678, 1, 0
    %v4683 = vcvt.s32.f32 %v4679
    %v4684 = vcvt.s32.f32 %v4680
    %v4685 = vcvt.s32.f32 %v4681
    %v4686 = vcvt.s32.f32 %v4682
    %4687 = vst [vmem:[#allocation2] sm:$0x3] %v4683
    %4688 = vst [vmem:[#allocation2 + $0x8] sm:$0x3] %v4684
    %4689 = vst [vmem:[#allocation2 + $0x10] sm:$0x3] %v4685
    %4690 = vst [vmem:[#allocation2 + $0x18] sm:$0x3] %v4686
    %v4691 = vmul.f32 %v4671, 0.25
    %v4692 = vmul.f32 %v4672, 0.25
    %v4693 = vmul.f32 %v4673, 0.25
    %v4694 = vmul.f32 %v4674, 0.25
    %v4695 = vsub.f32 1.0, %v4683
    %v4696 = vsub.f32 1.0, %v4684
    %v4697 = vsub.f32 1.0, %v4685
    %v4698 = vsub.f32 1.0, %v4686
    %v4699 = vmul.f32 %v4691, %v4695
    %v4700 = vmul.f32 %v4692, %v4696
    %v4701 = vmul.f32 %v4693, %v4697
    %v4702 = vmul.f32 %v4694, %v4698
    %v4707 = vrot.slane %v4255, 2
    %v4708 = vrot.slane %v4257, 2
    %v4709 = vrot.slane %v4665, 2
    %v4710 = vrot.slane %v4667, 2
    %v4715 = vadd.f32 %v4699, %v4707
    %v4716 = vadd.f32 %v4700, %v4708
    %v4717 = vadd.f32 %v4701, %v4709
    %v4718 = vadd.f32 %v4702, %v4710
    %vm4719 = vcmp.gt.f32.partialorder %v4715, 0.2
    %vm4720 = vcmp.gt.f32.partialorder %v4716, 0.2
    %vm4721 = vcmp.gt.f32.partialorder %v4717, 0.2
    %vm4722 = vcmp.gt.f32.partialorder %v4718, 0.2
    %v4723 = vsel %vm4719, 1, 0
    %v4724 = vsel %vm4720, 1, 0
    %v4725 = vsel %vm4721, 1, 0
    %v4726 = vsel %vm4722, 1, 0
    %v4727 = vcvt.s32.f32 %v4723
    %v4728 = vcvt.s32.f32 %v4724
    %v4729 = vcvt.s32.f32 %v4725
    %v4730 = vcvt.s32.f32 %v4726
    %v4735 = vrot.slane %v4727, 6
    %v4736 = vrot.slane %v4728, 6
    %v4737 = vrot.slane %v4729, 6
    %v4738 = vrot.slane %v4730, 6
    %4743 = vst [vmem:[#allocation2] sm:$0xc] %v4735
    %4744 = vst [vmem:[#allocation2 + $0x8] sm:$0xc] %v4736
    %4745 = vst [vmem:[#allocation2 + $0x10] sm:$0xc] %v4737
    %4746 = vst [vmem:[#allocation2 + $0x18] sm:$0xc] %v4738
    %v4747 = vmul.f32 %v4715, 0.25
    %v4748 = vmul.f32 %v4716, 0.25
    %v4749 = vmul.f32 %v4717, 0.25
    %v4750 = vmul.f32 %v4718, 0.25
    %v4751 = vsub.f32 1.0, %v4727
    %v4752 = vsub.f32 1.0, %v4728
    %v4753 = vsub.f32 1.0, %v4729
    %v4754 = vsub.f32 1.0, %v4730
    %v4755 = vmul.f32 %v4747, %v4751
    %v4756 = vmul.f32 %v4748, %v4752
    %v4757 = vmul.f32 %v4749, %v4753
    %v4758 = vmul.f32 %v4750, %v4754
    %v4759 = vrot.slane %v4255, 4
    %v4760 = vrot.slane %v4257, 4
    %v4761 = vrot.slane %v4665, 4
    %v4762 = vrot.slane %v4667, 4
    %v4767 = vadd.f32 %v4755, %v4759
    %v4768 = vadd.f32 %v4756, %v4760
    %v4769 = vadd.f32 %v4757, %v4761
    %v4770 = vadd.f32 %v4758, %v4762
    %vm4771 = vcmp.gt.f32.partialorder %v4767, 0.2
    %vm4772 = vcmp.gt.f32.partialorder %v4768, 0.2
    %vm4773 = vcmp.gt.f32.partialorder %v4769, 0.2
    %vm4774 = vcmp.gt.f32.partialorder %v4770, 0.2
    %v4775 = vsel %vm4771, 1, 0
    %v4776 = vsel %vm4772, 1, 0
    %v4777 = vsel %vm4773, 1, 0
    %v4778 = vsel %vm4774, 1, 0
    %v4779 = vcvt.s32.f32 %v4775
    %v4780 = vcvt.s32.f32 %v4776
    %v4781 = vcvt.s32.f32 %v4777
    %v4782 = vcvt.s32.f32 %v4778
    %v4787 = vrot.slane %v4779, 4
    %v4788 = vrot.slane %v4780, 4
    %v4789 = vrot.slane %v4781, 4
    %v4790 = vrot.slane %v4782, 4
    %4795 = vst [vmem:[#allocation2] sm:$0x30] %v4787
    %4796 = vst [vmem:[#allocation2 + $0x8] sm:$0x30] %v4788
    %4797 = vst [vmem:[#allocation2 + $0x10] sm:$0x30] %v4789
    %4798 = vst [vmem:[#allocation2 + $0x18] sm:$0x30] %v4790
    %v4799 = vmul.f32 %v4767, 0.25
    %v4800 = vmul.f32 %v4768, 0.25
    %v4801 = vmul.f32 %v4769, 0.25
    %v4802 = vmul.f32 %v4770, 0.25
    %v4803 = vsub.f32 1.0, %v4779
    %v4804 = vsub.f32 1.0, %v4780
    %v4805 = vsub.f32 1.0, %v4781
    %v4806 = vsub.f32 1.0, %v4782
    %v4807 = vmul.f32 %v4799, %v4803
    %v4808 = vmul.f32 %v4800, %v4804
    %v4809 = vmul.f32 %v4801, %v4805
    %v4810 = vmul.f32 %v4802, %v4806
    %v4811 = vrot.slane %v4255, 6
    %v4812 = vrot.slane %v4257, 6
    %v4813 = vrot.slane %v4665, 6
    %v4814 = vrot.slane %v4667, 6
    %v4819 = vadd.f32 %v4807, %v4811
    %v4820 = vadd.f32 %v4808, %v4812
    %v4821 = vadd.f32 %v4809, %v4813
    %v4822 = vadd.f32 %v4810, %v4814
    %vm4823 = vcmp.gt.f32.partialorder %v4819, 0.2
    %vm4824 = vcmp.gt.f32.partialorder %v4820, 0.2
    %vm4825 = vcmp.gt.f32.partialorder %v4821, 0.2
    %vm4826 = vcmp.gt.f32.partialorder %v4822, 0.2
    %v4827 = vsel %vm4823, 1, 0
    %v4828 = vsel %vm4824, 1, 0
    %v4829 = vsel %vm4825, 1, 0
    %v4830 = vsel %vm4826, 1, 0
    %v4831 = vcvt.s32.f32 %v4827
    %v4832 = vcvt.s32.f32 %v4828
    %v4833 = vcvt.s32.f32 %v4829
    %v4834 = vcvt.s32.f32 %v4830
    %v4839 = vrot.slane %v4831, 2
    %v4840 = vrot.slane %v4832, 2
    %v4841 = vrot.slane %v4833, 2
    %v4842 = vrot.slane %v4834, 2
    %4847 = vst [vmem:[#allocation2] sm:$0xc0] %v4839
    %4848 = vst [vmem:[#allocation2 + $0x8] sm:$0xc0] %v4840
    %4849 = vst [vmem:[#allocation2 + $0x10] sm:$0xc0] %v4841
    %4850 = vst [vmem:[#allocation2 + $0x18] sm:$0xc0] %v4842
    %v4851 = vld [vmem:[#allocation2] sm:$0xff]
    %v4852 = vld [vmem:[#allocation2 + $0x8] sm:$0xff]
    %v4853 = vld [vmem:[#allocation2 + $0x10] sm:$0xff]
    %v4854 = vld [vmem:[#allocation2 + $0x18] sm:$0xff]
    %v4855 = vpack.c.bf16 %v4851, %v4851
    %v4856 = vpack.c.bf16 %v4852, %v4852
    %v4857 = vpack.c.bf16 %v4853, %v4853
    %v4858 = vpack.c.bf16 %v4854, %v4854
    %v4859 = vld [vmem:[#allocation9] sm:$0xff]
    %v4860 = vld [vmem:[#allocation9 + $0x8] sm:$0xff]
    %v4861 = vld [vmem:[#allocation9 + $0x10] sm:$0xff]
    %v4862 = vld [vmem:[#allocation9 + $0x18] sm:$0xff]
    %v4863 = vld [vmem:[#allocation9 + $0x20] sm:$0xff]
    %v4864 = vld [vmem:[#allocation9 + $0x28] sm:$0xff]
    %v4865 = vld [vmem:[#allocation9 + $0x30] sm:$0xff]
    %v4866 = vld [vmem:[#allocation9 + $0x38] sm:$0xff]
    %v4867 = vld [vmem:[#allocation9 + $0x40] sm:$0xff]
    %v4868 = vld [vmem:[#allocation9 + $0x48] sm:$0xff]
    %v4869 = vld [vmem:[#allocation9 + $0x50] sm:$0xff]
    %v4870 = vld [vmem:[#allocation9 + $0x58] sm:$0xff]
    %v4871 = vld [vmem:[#allocation9 + $0x60] sm:$0xff]
    %v4872 = vld [vmem:[#allocation9 + $0x68] sm:$0xff]
    %v4873 = vld [vmem:[#allocation9 + $0x70] sm:$0xff]
    %v4874 = vld [vmem:[#allocation9 + $0x78] sm:$0xff]
    %v4875 = vld [vmem:[#allocation9 + $0x80] sm:$0xff]
    %v4876 = vld [vmem:[#allocation9 + $0x88] sm:$0xff]
    %v4877 = vld [vmem:[#allocation9 + $0x90] sm:$0xff]
    %v4878 = vld [vmem:[#allocation9 + $0x98] sm:$0xff]
    %v4879 = vld [vmem:[#allocation9 + $0xa0] sm:$0xff]
    %v4880 = vld [vmem:[#allocation9 + $0xa8] sm:$0xff]
    %v4881 = vld [vmem:[#allocation9 + $0xb0] sm:$0xff]
    %v4882 = vld [vmem:[#allocation9 + $0xb8] sm:$0xff]
    %v4883 = vld [vmem:[#allocation9 + $0xc0] sm:$0xff]
    %v4884 = vld [vmem:[#allocation9 + $0xc8] sm:$0xff]
    %v4885 = vld [vmem:[#allocation9 + $0xd0] sm:$0xff]
    %v4886 = vld [vmem:[#allocation9 + $0xd8] sm:$0xff]
    %v4887 = vld [vmem:[#allocation9 + $0xe0] sm:$0xff]
    %v4888 = vld [vmem:[#allocation9 + $0xe8] sm:$0xff]
    %v4889 = vld [vmem:[#allocation9 + $0xf0] sm:$0xff]
    %v4890 = vld [vmem:[#allocation9 + $0xf8] sm:$0xff]
    %v4891 = vld [vmem:[#allocation9 + $0x100] sm:$0xff]
    %v4892 = vld [vmem:[#allocation9 + $0x108] sm:$0xff]
    %v4893 = vld [vmem:[#allocation9 + $0x110] sm:$0xff]
    %v4894 = vld [vmem:[#allocation9 + $0x118] sm:$0xff]
    %v4895 = vld [vmem:[#allocation9 + $0x120] sm:$0xff]
    %v4896 = vld [vmem:[#allocation9 + $0x128] sm:$0xff]
    %v4897 = vld [vmem:[#allocation9 + $0x130] sm:$0xff]
    %v4898 = vld [vmem:[#allocation9 + $0x138] sm:$0xff]
    %v4899 = vld [vmem:[#allocation9 + $0x140] sm:$0xff]
    %v4900 = vld [vmem:[#allocation9 + $0x148] sm:$0xff]
    %v4901 = vld [vmem:[#allocation9 + $0x150] sm:$0xff]
    %v4902 = vld [vmem:[#allocation9 + $0x158] sm:$0xff]
    %v4903 = vld [vmem:[#allocation9 + $0x160] sm:$0xff]
    %v4904 = vld [vmem:[#allocation9 + $0x168] sm:$0xff]
    %v4905 = vld [vmem:[#allocation9 + $0x170] sm:$0xff]
    %v4906 = vld [vmem:[#allocation9 + $0x178] sm:$0xff]
    %v4907 = vld [vmem:[#allocation9 + $0x180] sm:$0xff]
    %v4908 = vld [vmem:[#allocation9 + $0x188] sm:$0xff]
    %v4909 = vld [vmem:[#allocation9 + $0x190] sm:$0xff]
    %v4910 = vld [vmem:[#allocation9 + $0x198] sm:$0xff]
    %v4911 = vld [vmem:[#allocation9 + $0x1a0] sm:$0xff]
    %v4912 = vld [vmem:[#allocation9 + $0x1a8] sm:$0xff]
    %v4913 = vld [vmem:[#allocation9 + $0x1b0] sm:$0xff]
    %v4914 = vld [vmem:[#allocation9 + $0x1b8] sm:$0xff]
    %v4915 = vld [vmem:[#allocation9 + $0x1c0] sm:$0xff]
    %v4916 = vld [vmem:[#allocation9 + $0x1c8] sm:$0xff]
    %v4917 = vld [vmem:[#allocation9 + $0x1d0] sm:$0xff]
    %v4918 = vld [vmem:[#allocation9 + $0x1d8] sm:$0xff]
    %v4919 = vld [vmem:[#allocation9 + $0x1e0] sm:$0xff]
    %v4920 = vld [vmem:[#allocation9 + $0x1e8] sm:$0xff]
    %v4921 = vld [vmem:[#allocation9 + $0x1f0] sm:$0xff]
    %v4922 = vld [vmem:[#allocation9 + $0x1f8] sm:$0xff]
    %v4923 = vld [vmem:[#allocation9 + $0x200] sm:$0xff]
    %v4924 = vld [vmem:[#allocation9 + $0x208] sm:$0xff]
    %v4925 = vld [vmem:[#allocation9 + $0x210] sm:$0xff]
    %v4926 = vld [vmem:[#allocation9 + $0x218] sm:$0xff]
    %v4927 = vld [vmem:[#allocation9 + $0x220] sm:$0xff]
    %v4928 = vld [vmem:[#allocation9 + $0x228] sm:$0xff]
    %v4929 = vld [vmem:[#allocation9 + $0x230] sm:$0xff]
    %v4930 = vld [vmem:[#allocation9 + $0x238] sm:$0xff]
    %v4931 = vld [vmem:[#allocation9 + $0x240] sm:$0xff]
    %v4932 = vld [vmem:[#allocation9 + $0x248] sm:$0xff]
    %v4933 = vld [vmem:[#allocation9 + $0x250] sm:$0xff]
    %v4934 = vld [vmem:[#allocation9 + $0x258] sm:$0xff]
    %v4935 = vld [vmem:[#allocation9 + $0x260] sm:$0xff]
    %v4936 = vld [vmem:[#allocation9 + $0x268] sm:$0xff]
    %v4937 = vld [vmem:[#allocation9 + $0x270] sm:$0xff]
    %v4938 = vld [vmem:[#allocation9 + $0x278] sm:$0xff]
    %v4939 = vld [vmem:[#allocation9 + $0x280] sm:$0xff]
    %v4940 = vld [vmem:[#allocation9 + $0x288] sm:$0xff]
    %v4941 = vld [vmem:[#allocation9 + $0x290] sm:$0xff]
    %v4942 = vld [vmem:[#allocation9 + $0x298] sm:$0xff]
    %v4943 = vld [vmem:[#allocation9 + $0x2a0] sm:$0xff]
    %v4944 = vld [vmem:[#allocation9 + $0x2a8] sm:$0xff]
    %v4945 = vld [vmem:[#allocation9 + $0x2b0] sm:$0xff]
    %v4946 = vld [vmem:[#allocation9 + $0x2b8] sm:$0xff]
    %v4947 = vld [vmem:[#allocation9 + $0x2c0] sm:$0xff]
    %v4948 = vld [vmem:[#allocation9 + $0x2c8] sm:$0xff]
    %v4949 = vld [vmem:[#allocation9 + $0x2d0] sm:$0xff]
    %v4950 = vld [vmem:[#allocation9 + $0x2d8] sm:$0xff]
    %v4951 = vld [vmem:[#allocation9 + $0x2e0] sm:$0xff]
    %v4952 = vld [vmem:[#allocation9 + $0x2e8] sm:$0xff]
    %v4953 = vld [vmem:[#allocation9 + $0x2f0] sm:$0xff]
    %v4954 = vld [vmem:[#allocation9 + $0x2f8] sm:$0xff]
    %v4955 = vld [vmem:[#allocation9 + $0x300] sm:$0xff]
    %v4956 = vld [vmem:[#allocation9 + $0x308] sm:$0xff]
    %v4957 = vld [vmem:[#allocation9 + $0x310] sm:$0xff]
    %v4958 = vld [vmem:[#allocation9 + $0x318] sm:$0xff]
    %v4959 = vld [vmem:[#allocation9 + $0x320] sm:$0xff]
    %v4960 = vld [vmem:[#allocation9 + $0x328] sm:$0xff]
    %v4961 = vld [vmem:[#allocation9 + $0x330] sm:$0xff]
    %v4962 = vld [vmem:[#allocation9 + $0x338] sm:$0xff]
    %v4963 = vld [vmem:[#allocation9 + $0x340] sm:$0xff]
    %v4964 = vld [vmem:[#allocation9 + $0x348] sm:$0xff]
    %v4965 = vld [vmem:[#allocation9 + $0x350] sm:$0xff]
    %v4966 = vld [vmem:[#allocation9 + $0x358] sm:$0xff]
    %v4967 = vld [vmem:[#allocation9 + $0x360] sm:$0xff]
    %v4968 = vld [vmem:[#allocation9 + $0x368] sm:$0xff]
    %v4969 = vld [vmem:[#allocation9 + $0x370] sm:$0xff]
    %v4970 = vld [vmem:[#allocation9 + $0x378] sm:$0xff]
    %v4971 = vld [vmem:[#allocation9 + $0x380] sm:$0xff]
    %v4972 = vld [vmem:[#allocation9 + $0x388] sm:$0xff]
    %v4973 = vld [vmem:[#allocation9 + $0x390] sm:$0xff]
    %v4974 = vld [vmem:[#allocation9 + $0x398] sm:$0xff]
    %v4975 = vld [vmem:[#allocation9 + $0x3a0] sm:$0xff]
    %v4976 = vld [vmem:[#allocation9 + $0x3a8] sm:$0xff]
    %v4977 = vld [vmem:[#allocation9 + $0x3b0] sm:$0xff]
    %v4978 = vld [vmem:[#allocation9 + $0x3b8] sm:$0xff]
    %v4979 = vld [vmem:[#allocation9 + $0x3c0] sm:$0xff]
    %v4980 = vld [vmem:[#allocation9 + $0x3c8] sm:$0xff]
    %v4981 = vld [vmem:[#allocation9 + $0x3d0] sm:$0xff]
    %v4982 = vld [vmem:[#allocation9 + $0x3d8] sm:$0xff]
    %v4983 = vld [vmem:[#allocation9 + $0x3e0] sm:$0xff]
    %v4984 = vld [vmem:[#allocation9 + $0x3e8] sm:$0xff]
    %v4985 = vld [vmem:[#allocation9 + $0x3f0] sm:$0xff]
    %v4986 = vld [vmem:[#allocation9 + $0x3f8] sm:$0xff]
    %v4987 = vld [vmem:[#allocation10] sm:$0xf]
    %v4989 = vlaneseq
    %v4990 = vshrl.u32 %v4989, 7
    %v4991 = vsub.s32 0, %v4990
    %v4992 = vrot.slane %v4987, %v4991
    %v4993 = vlaneseq
    %v4994 = vshrl.u32 %v4993, 7
    %v4995 = vsub.s32 1, %v4994
    %v4996 = vrot.slane %v4987, %v4995
    %v4997 = vlaneseq
    %v4998 = vshrl.u32 %v4997, 7
    %v4999 = vsub.s32 2, %v4998
    %v5000 = vrot.slane %v4987, %v4999
    %v5001 = vlaneseq
    %v5002 = vshrl.u32 %v5001, 7
    %v5003 = vsub.s32 3, %v5002
    %v5004 = vrot.slane %v4987, %v5003
    %v5137 = vunpack.c.l.b16 %v4859
    %v5138 = vunpack.c.h.b16 %v4859
    %v5139 = vunpack.c.l.b16 %v4860
    %v5140 = vunpack.c.h.b16 %v4860
    %v5141 = vunpack.c.l.b16 %v4861
    %v5142 = vunpack.c.h.b16 %v4861
    %v5143 = vunpack.c.l.b16 %v4862
    %v5144 = vunpack.c.h.b16 %v4862
    %v5145 = vunpack.c.l.b16 %v4863
    %v5146 = vunpack.c.h.b16 %v4863
    %v5147 = vunpack.c.l.b16 %v4864
    %v5148 = vunpack.c.h.b16 %v4864
    %v5149 = vunpack.c.l.b16 %v4865
    %v5150 = vunpack.c.h.b16 %v4865
    %v5151 = vunpack.c.l.b16 %v4866
    %v5152 = vunpack.c.h.b16 %v4866
    %v5153 = vunpack.c.l.b16 %v4867
    %v5154 = vunpack.c.h.b16 %v4867
    %v5155 = vunpack.c.l.b16 %v4868
    %v5156 = vunpack.c.h.b16 %v4868
    %v5157 = vunpack.c.l.b16 %v4869
    %v5158 = vunpack.c.h.b16 %v4869
    %v5159 = vunpack.c.l.b16 %v4870
    %v5160 = vunpack.c.h.b16 %v4870
    %v5161 = vunpack.c.l.b16 %v4871
    %v5162 = vunpack.c.h.b16 %v4871
    %v5163 = vunpack.c.l.b16 %v4872
    %v5164 = vunpack.c.h.b16 %v4872
    %v5165 = vunpack.c.l.b16 %v4873
    %v5166 = vunpack.c.h.b16 %v4873
    %v5167 = vunpack.c.l.b16 %v4874
    %v5168 = vunpack.c.h.b16 %v4874
    %v5169 = vunpack.c.l.b16 %v4875
    %v5170 = vunpack.c.h.b16 %v4875
    %v5171 = vunpack.c.l.b16 %v4876
    %v5172 = vunpack.c.h.b16 %v4876
    %v5173 = vunpack.c.l.b16 %v4877
    %v5174 = vunpack.c.h.b16 %v4877
    %v5175 = vunpack.c.l.b16 %v4878
    %v5176 = vunpack.c.h.b16 %v4878
    %v5177 = vunpack.c.l.b16 %v4879
    %v5178 = vunpack.c.h.b16 %v4879
    %v5179 = vunpack.c.l.b16 %v4880
    %v5180 = vunpack.c.h.b16 %v4880
    %v5181 = vunpack.c.l.b16 %v4881
    %v5182 = vunpack.c.h.b16 %v4881
    %v5183 = vunpack.c.l.b16 %v4882
    %v5184 = vunpack.c.h.b16 %v4882
    %v5185 = vunpack.c.l.b16 %v4883
    %v5186 = vunpack.c.h.b16 %v4883
    %v5187 = vunpack.c.l.b16 %v4884
    %v5188 = vunpack.c.h.b16 %v4884
    %v5189 = vunpack.c.l.b16 %v4885
    %v5190 = vunpack.c.h.b16 %v4885
    %v5191 = vunpack.c.l.b16 %v4886
    %v5192 = vunpack.c.h.b16 %v4886
    %v5193 = vunpack.c.l.b16 %v4887
    %v5194 = vunpack.c.h.b16 %v4887
    %v5195 = vunpack.c.l.b16 %v4888
    %v5196 = vunpack.c.h.b16 %v4888
    %v5197 = vunpack.c.l.b16 %v4889
    %v5198 = vunpack.c.h.b16 %v4889
    %v5199 = vunpack.c.l.b16 %v4890
    %v5200 = vunpack.c.h.b16 %v4890
    %v5201 = vunpack.c.l.b16 %v4891
    %v5202 = vunpack.c.h.b16 %v4891
    %v5203 = vunpack.c.l.b16 %v4892
    %v5204 = vunpack.c.h.b16 %v4892
    %v5205 = vunpack.c.l.b16 %v4893
    %v5206 = vunpack.c.h.b16 %v4893
    %v5207 = vunpack.c.l.b16 %v4894
    %v5208 = vunpack.c.h.b16 %v4894
    %v5209 = vunpack.c.l.b16 %v4895
    %v5210 = vunpack.c.h.b16 %v4895
    %v5211 = vunpack.c.l.b16 %v4896
    %v5212 = vunpack.c.h.b16 %v4896
    %v5213 = vunpack.c.l.b16 %v4897
    %v5214 = vunpack.c.h.b16 %v4897
    %v5215 = vunpack.c.l.b16 %v4898
    %v5216 = vunpack.c.h.b16 %v4898
    %v5217 = vunpack.c.l.b16 %v4899
    %v5218 = vunpack.c.h.b16 %v4899
    %v5219 = vunpack.c.l.b16 %v4900
    %v5220 = vunpack.c.h.b16 %v4900
    %v5221 = vunpack.c.l.b16 %v4901
    %v5222 = vunpack.c.h.b16 %v4901
    %v5223 = vunpack.c.l.b16 %v4902
    %v5224 = vunpack.c.h.b16 %v4902
    %v5225 = vunpack.c.l.b16 %v4903
    %v5226 = vunpack.c.h.b16 %v4903
    %v5227 = vunpack.c.l.b16 %v4904
    %v5228 = vunpack.c.h.b16 %v4904
    %v5229 = vunpack.c.l.b16 %v4905
    %v5230 = vunpack.c.h.b16 %v4905
    %v5231 = vunpack.c.l.b16 %v4906
    %v5232 = vunpack.c.h.b16 %v4906
    %v5233 = vunpack.c.l.b16 %v4907
    %v5234 = vunpack.c.h.b16 %v4907
    %v5235 = vunpack.c.l.b16 %v4908
    %v5236 = vunpack.c.h.b16 %v4908
    %v5237 = vunpack.c.l.b16 %v4909
    %v5238 = vunpack.c.h.b16 %v4909
    %v5239 = vunpack.c.l.b16 %v4910
    %v5240 = vunpack.c.h.b16 %v4910
    %v5241 = vunpack.c.l.b16 %v4911
    %v5242 = vunpack.c.h.b16 %v4911
    %v5243 = vunpack.c.l.b16 %v4912
    %v5244 = vunpack.c.h.b16 %v4912
    %v5245 = vunpack.c.l.b16 %v4913
    %v5246 = vunpack.c.h.b16 %v4913
    %v5247 = vunpack.c.l.b16 %v4914
    %v5248 = vunpack.c.h.b16 %v4914
    %v5249 = vunpack.c.l.b16 %v4915
    %v5250 = vunpack.c.h.b16 %v4915
    %v5251 = vunpack.c.l.b16 %v4916
    %v5252 = vunpack.c.h.b16 %v4916
    %v5253 = vunpack.c.l.b16 %v4917
    %v5254 = vunpack.c.h.b16 %v4917
    %v5255 = vunpack.c.l.b16 %v4918
    %v5256 = vunpack.c.h.b16 %v4918
    %v5257 = vunpack.c.l.b16 %v4919
    %v5258 = vunpack.c.h.b16 %v4919
    %v5259 = vunpack.c.l.b16 %v4920
    %v5260 = vunpack.c.h.b16 %v4920
    %v5261 = vunpack.c.l.b16 %v4921
    %v5262 = vunpack.c.h.b16 %v4921
    %v5263 = vunpack.c.l.b16 %v4922
    %v5264 = vunpack.c.h.b16 %v4922
    %v5265 = vunpack.c.l.b16 %v4923
    %v5266 = vunpack.c.h.b16 %v4923
    %v5267 = vunpack.c.l.b16 %v4924
    %v5268 = vunpack.c.h.b16 %v4924
    %v5269 = vunpack.c.l.b16 %v4925
    %v5270 = vunpack.c.h.b16 %v4925
    %v5271 = vunpack.c.l.b16 %v4926
    %v5272 = vunpack.c.h.b16 %v4926
    %v5273 = vunpack.c.l.b16 %v4927
    %v5274 = vunpack.c.h.b16 %v4927
    %v5275 = vunpack.c.l.b16 %v4928
    %v5276 = vunpack.c.h.b16 %v4928
    %v5277 = vunpack.c.l.b16 %v4929
    %v5278 = vunpack.c.h.b16 %v4929
    %v5279 = vunpack.c.l.b16 %v4930
    %v5280 = vunpack.c.h.b16 %v4930
    %v5281 = vunpack.c.l.b16 %v4931
    %v5282 = vunpack.c.h.b16 %v4931
    %v5283 = vunpack.c.l.b16 %v4932
    %v5284 = vunpack.c.h.b16 %v4932
    %v5285 = vunpack.c.l.b16 %v4933
    %v5286 = vunpack.c.h.b16 %v4933
    %v5287 = vunpack.c.l.b16 %v4934
    %v5288 = vunpack.c.h.b16 %v4934
    %v5289 = vunpack.c.l.b16 %v4935
    %v5290 = vunpack.c.h.b16 %v4935
    %v5291 = vunpack.c.l.b16 %v4936
    %v5292 = vunpack.c.h.b16 %v4936
    %v5293 = vunpack.c.l.b16 %v4937
    %v5294 = vunpack.c.h.b16 %v4937
    %v5295 = vunpack.c.l.b16 %v4938
    %v5296 = vunpack.c.h.b16 %v4938
    %v5297 = vunpack.c.l.b16 %v4939
    %v5298 = vunpack.c.h.b16 %v4939
    %v5299 = vunpack.c.l.b16 %v4940
    %v5300 = vunpack.c.h.b16 %v4940
    %v5301 = vunpack.c.l.b16 %v4941
    %v5302 = vunpack.c.h.b16 %v4941
    %v5303 = vunpack.c.l.b16 %v4942
    %v5304 = vunpack.c.h.b16 %v4942
    %v5305 = vunpack.c.l.b16 %v4943
    %v5306 = vunpack.c.h.b16 %v4943
    %v5307 = vunpack.c.l.b16 %v4944
    %v5308 = vunpack.c.h.b16 %v4944
    %v5309 = vunpack.c.l.b16 %v4945
    %v5310 = vunpack.c.h.b16 %v4945
    %v5311 = vunpack.c.l.b16 %v4946
    %v5312 = vunpack.c.h.b16 %v4946
    %v5313 = vunpack.c.l.b16 %v4947
    %v5314 = vunpack.c.h.b16 %v4947
    %v5315 = vunpack.c.l.b16 %v4948
    %v5316 = vunpack.c.h.b16 %v4948
    %v5317 = vunpack.c.l.b16 %v4949
    %v5318 = vunpack.c.h.b16 %v4949
    %v5319 = vunpack.c.l.b16 %v4950
    %v5320 = vunpack.c.h.b16 %v4950
    %v5321 = vunpack.c.l.b16 %v4951
    %v5322 = vunpack.c.h.b16 %v4951
    %v5323 = vunpack.c.l.b16 %v4952
    %v5324 = vunpack.c.h.b16 %v4952
    %v5325 = vunpack.c.l.b16 %v4953
    %v5326 = vunpack.c.h.b16 %v4953
    %v5327 = vunpack.c.l.b16 %v4954
    %v5328 = vunpack.c.h.b16 %v4954
    %v5329 = vunpack.c.l.b16 %v4955
    %v5330 = vunpack.c.h.b16 %v4955
    %v5331 = vunpack.c.l.b16 %v4956
    %v5332 = vunpack.c.h.b16 %v4956
    %v5333 = vunpack.c.l.b16 %v4957
    %v5334 = vunpack.c.h.b16 %v4957
    %v5335 = vunpack.c.l.b16 %v4958
    %v5336 = vunpack.c.h.b16 %v4958
    %v5337 = vunpack.c.l.b16 %v4959
    %v5338 = vunpack.c.h.b16 %v4959
    %v5339 = vunpack.c.l.b16 %v4960
    %v5340 = vunpack.c.h.b16 %v4960
    %v5341 = vunpack.c.l.b16 %v4961
    %v5342 = vunpack.c.h.b16 %v4961
    %v5343 = vunpack.c.l.b16 %v4962
    %v5344 = vunpack.c.h.b16 %v4962
    %v5345 = vunpack.c.l.b16 %v4963
    %v5346 = vunpack.c.h.b16 %v4963
    %v5347 = vunpack.c.l.b16 %v4964
    %v5348 = vunpack.c.h.b16 %v4964
    %v5349 = vunpack.c.l.b16 %v4965
    %v5350 = vunpack.c.h.b16 %v4965
    %v5351 = vunpack.c.l.b16 %v4966
    %v5352 = vunpack.c.h.b16 %v4966
    %v5353 = vunpack.c.l.b16 %v4967
    %v5354 = vunpack.c.h.b16 %v4967
    %v5355 = vunpack.c.l.b16 %v4968
    %v5356 = vunpack.c.h.b16 %v4968
    %v5357 = vunpack.c.l.b16 %v4969
    %v5358 = vunpack.c.h.b16 %v4969
    %v5359 = vunpack.c.l.b16 %v4970
    %v5360 = vunpack.c.h.b16 %v4970
    %v5361 = vunpack.c.l.b16 %v4971
    %v5362 = vunpack.c.h.b16 %v4971
    %v5363 = vunpack.c.l.b16 %v4972
    %v5364 = vunpack.c.h.b16 %v4972
    %v5365 = vunpack.c.l.b16 %v4973
    %v5366 = vunpack.c.h.b16 %v4973
    %v5367 = vunpack.c.l.b16 %v4974
    %v5368 = vunpack.c.h.b16 %v4974
    %v5369 = vunpack.c.l.b16 %v4975
    %v5370 = vunpack.c.h.b16 %v4975
    %v5371 = vunpack.c.l.b16 %v4976
    %v5372 = vunpack.c.h.b16 %v4976
    %v5373 = vunpack.c.l.b16 %v4977
    %v5374 = vunpack.c.h.b16 %v4977
    %v5375 = vunpack.c.l.b16 %v4978
    %v5376 = vunpack.c.h.b16 %v4978
    %v5377 = vunpack.c.l.b16 %v4979
    %v5378 = vunpack.c.h.b16 %v4979
    %v5379 = vunpack.c.l.b16 %v4980
    %v5380 = vunpack.c.h.b16 %v4980
    %v5381 = vunpack.c.l.b16 %v4981
    %v5382 = vunpack.c.h.b16 %v4981
    %v5383 = vunpack.c.l.b16 %v4982
    %v5384 = vunpack.c.h.b16 %v4982
    %v5385 = vunpack.c.l.b16 %v4983
    %v5386 = vunpack.c.h.b16 %v4983
    %v5387 = vunpack.c.l.b16 %v4984
    %v5388 = vunpack.c.h.b16 %v4984
    %v5389 = vunpack.c.l.b16 %v4985
    %v5390 = vunpack.c.h.b16 %v4985
    %v5391 = vunpack.c.l.b16 %v4986
    %v5392 = vunpack.c.h.b16 %v4986
    %v5393 = vpack.c.b16 %v5141, %v5137
    %v5394 = vpack.c.b16 %v5142, %v5138
    %v5395 = vpack.c.b16 %v5143, %v5139
    %v5396 = vpack.c.b16 %v5144, %v5140
    %v5397 = vpack.c.b16 %v5149, %v5145
    %v5398 = vpack.c.b16 %v5150, %v5146
    %v5399 = vpack.c.b16 %v5151, %v5147
    %v5400 = vpack.c.b16 %v5152, %v5148
    %v5401 = vpack.c.b16 %v5157, %v5153
    %v5402 = vpack.c.b16 %v5158, %v5154
    %v5403 = vpack.c.b16 %v5159, %v5155
    %v5404 = vpack.c.b16 %v5160, %v5156
    %v5405 = vpack.c.b16 %v5165, %v5161
    %v5406 = vpack.c.b16 %v5166, %v5162
    %v5407 = vpack.c.b16 %v5167, %v5163
    %v5408 = vpack.c.b16 %v5168, %v5164
    %v5409 = vpack.c.b16 %v5173, %v5169
    %v5410 = vpack.c.b16 %v5174, %v5170
    %v5411 = vpack.c.b16 %v5175, %v5171
    %v5412 = vpack.c.b16 %v5176, %v5172
    %v5413 = vpack.c.b16 %v5181, %v5177
    %v5414 = vpack.c.b16 %v5182, %v5178
    %v5415 = vpack.c.b16 %v5183, %v5179
    %v5416 = vpack.c.b16 %v5184, %v5180
    %v5417 = vpack.c.b16 %v5189, %v5185
    %v5418 = vpack.c.b16 %v5190, %v5186
    %v5419 = vpack.c.b16 %v5191, %v5187
    %v5420 = vpack.c.b16 %v5192, %v5188
    %v5421 = vpack.c.b16 %v5197, %v5193
    %v5422 = vpack.c.b16 %v5198, %v5194
    %v5423 = vpack.c.b16 %v5199, %v5195
    %v5424 = vpack.c.b16 %v5200, %v5196
    %v5425 = vpack.c.b16 %v5205, %v5201
    %v5426 = vpack.c.b16 %v5206, %v5202
    %v5427 = vpack.c.b16 %v5207, %v5203
    %v5428 = vpack.c.b16 %v5208, %v5204
    %v5429 = vpack.c.b16 %v5213, %v5209
    %v5430 = vpack.c.b16 %v5214, %v5210
    %v5431 = vpack.c.b16 %v5215, %v5211
    %v5432 = vpack.c.b16 %v5216, %v5212
    %v5433 = vpack.c.b16 %v5221, %v5217
    %v5434 = vpack.c.b16 %v5222, %v5218
    %v5435 = vpack.c.b16 %v5223, %v5219
    %v5436 = vpack.c.b16 %v5224, %v5220
    %v5437 = vpack.c.b16 %v5229, %v5225
    %v5438 = vpack.c.b16 %v5230, %v5226
    %v5439 = vpack.c.b16 %v5231, %v5227
    %v5440 = vpack.c.b16 %v5232, %v5228
    %v5441 = vpack.c.b16 %v5237, %v5233
    %v5442 = vpack.c.b16 %v5238, %v5234
    %v5443 = vpack.c.b16 %v5239, %v5235
    %v5444 = vpack.c.b16 %v5240, %v5236
    %v5445 = vpack.c.b16 %v5245, %v5241
    %v5446 = vpack.c.b16 %v5246, %v5242
    %v5447 = vpack.c.b16 %v5247, %v5243
    %v5448 = vpack.c.b16 %v5248, %v5244
    %v5449 = vpack.c.b16 %v5253, %v5249
    %v5450 = vpack.c.b16 %v5254, %v5250
    %v5451 = vpack.c.b16 %v5255, %v5251
    %v5452 = vpack.c.b16 %v5256, %v5252
    %v5453 = vpack.c.b16 %v5261, %v5257
    %v5454 = vpack.c.b16 %v5262, %v5258
    %v5455 = vpack.c.b16 %v5263, %v5259
    %v5456 = vpack.c.b16 %v5264, %v5260
    %v5457 = vpack.c.b16 %v5269, %v5265
    %v5458 = vpack.c.b16 %v5270, %v5266
    %v5459 = vpack.c.b16 %v5271, %v5267
    %v5460 = vpack.c.b16 %v5272, %v5268
    %v5461 = vpack.c.b16 %v5277, %v5273
    %v5462 = vpack.c.b16 %v5278, %v5274
    %v5463 = vpack.c.b16 %v5279, %v5275
    %v5464 = vpack.c.b16 %v5280, %v5276
    %v5465 = vpack.c.b16 %v5285, %v5281
    %v5466 = vpack.c.b16 %v5286, %v5282
    %v5467 = vpack.c.b16 %v5287, %v5283
    %v5468 = vpack.c.b16 %v5288, %v5284
    %v5469 = vpack.c.b16 %v5293, %v5289
    %v5470 = vpack.c.b16 %v5294, %v5290
    %v5471 = vpack.c.b16 %v5295, %v5291
    %v5472 = vpack.c.b16 %v5296, %v5292
    %v5473 = vpack.c.b16 %v5301, %v5297
    %v5474 = vpack.c.b16 %v5302, %v5298
    %v5475 = vpack.c.b16 %v5303, %v5299
    %v5476 = vpack.c.b16 %v5304, %v5300
    %v5477 = vpack.c.b16 %v5309, %v5305
    %v5478 = vpack.c.b16 %v5310, %v5306
    %v5479 = vpack.c.b16 %v5311, %v5307
    %v5480 = vpack.c.b16 %v5312, %v5308
    %v5481 = vpack.c.b16 %v5317, %v5313
    %v5482 = vpack.c.b16 %v5318, %v5314
    %v5483 = vpack.c.b16 %v5319, %v5315
    %v5484 = vpack.c.b16 %v5320, %v5316
    %v5485 = vpack.c.b16 %v5325, %v5321
    %v5486 = vpack.c.b16 %v5326, %v5322
    %v5487 = vpack.c.b16 %v5327, %v5323
    %v5488 = vpack.c.b16 %v5328, %v5324
    %v5489 = vpack.c.b16 %v5333, %v5329
    %v5490 = vpack.c.b16 %v5334, %v5330
    %v5491 = vpack.c.b16 %v5335, %v5331
    %v5492 = vpack.c.b16 %v5336, %v5332
    %v5493 = vpack.c.b16 %v5341, %v5337
    %v5494 = vpack.c.b16 %v5342, %v5338
    %v5495 = vpack.c.b16 %v5343, %v5339
    %v5496 = vpack.c.b16 %v5344, %v5340
    %v5497 = vpack.c.b16 %v5349, %v5345
    %v5498 = vpack.c.b16 %v5350, %v5346
    %v5499 = vpack.c.b16 %v5351, %v5347
    %v5500 = vpack.c.b16 %v5352, %v5348
    %v5501 = vpack.c.b16 %v5357, %v5353
    %v5502 = vpack.c.b16 %v5358, %v5354
    %v5503 = vpack.c.b16 %v5359, %v5355
    %v5504 = vpack.c.b16 %v5360, %v5356
    %v5505 = vpack.c.b16 %v5365, %v5361
    %v5506 = vpack.c.b16 %v5366, %v5362
    %v5507 = vpack.c.b16 %v5367, %v5363
    %v5508 = vpack.c.b16 %v5368, %v5364
    %v5509 = vpack.c.b16 %v5373, %v5369
    %v5510 = vpack.c.b16 %v5374, %v5370
    %v5511 = vpack.c.b16 %v5375, %v5371
    %v5512 = vpack.c.b16 %v5376, %v5372
    %v5513 = vpack.c.b16 %v5381, %v5377
    %v5514 = vpack.c.b16 %v5382, %v5378
    %v5515 = vpack.c.b16 %v5383, %v5379
    %v5516 = vpack.c.b16 %v5384, %v5380
    %v5517 = vpack.c.b16 %v5389, %v5385
    %v5518 = vpack.c.b16 %v5390, %v5386
    %v5519 = vpack.c.b16 %v5391, %v5387
    %v5520 = vpack.c.b16 %v5392, %v5388
    %5649 = vmatprep.subr.bf16.mxu0 %v5394
    %5650 = vmatpush1.bf16.msra.mxu0 %v5393
    %5651 = vmatprep.subr.bf16.mxu0 %v5398
    %5652 = vmatpush1.bf16.msra.mxu0 %v5397
    %5653 = vmatprep.subr.bf16.mxu0 %v5402
    %5654 = vmatpush1.bf16.msra.mxu0 %v5401
    %5655 = vmatprep.subr.bf16.mxu0 %v5406
    %5656 = vmatpush1.bf16.msra.mxu0 %v5405
    %5657 = vmatprep.subr.bf16.mxu0 %v5410
    %5658 = vmatpush1.bf16.msra.mxu0 %v5409
    %5659 = vmatprep.subr.bf16.mxu0 %v5414
    %5660 = vmatpush1.bf16.msra.mxu0 %v5413
    %5661 = vmatprep.subr.bf16.mxu0 %v5418
    %5662 = vmatpush1.bf16.msra.mxu0 %v5417
    %5663 = vmatprep.subr.bf16.mxu0 %v5422
    %5664 = vmatpush1.bf16.msra.mxu0 %v5421
    %5665 = vmatprep.subr.bf16.mxu0 %v5426
    %5666 = vmatpush1.bf16.msra.mxu0 %v5425
    %5667 = vmatprep.subr.bf16.mxu0 %v5430
    %5668 = vmatpush1.bf16.msra.mxu0 %v5429
    %5669 = vmatprep.subr.bf16.mxu0 %v5434
    %5670 = vmatpush1.bf16.msra.mxu0 %v5433
    %5671 = vmatprep.subr.bf16.mxu0 %v5438
    %5672 = vmatpush1.bf16.msra.mxu0 %v5437
    %5673 = vmatprep.subr.bf16.mxu0 %v5442
    %5674 = vmatpush1.bf16.msra.mxu0 %v5441
    %5675 = vmatprep.subr.bf16.mxu0 %v5446
    %5676 = vmatpush1.bf16.msra.mxu0 %v5445
    %5677 = vmatprep.subr.bf16.mxu0 %v5450
    %5678 = vmatpush1.bf16.msra.mxu0 %v5449
    %5679 = vmatprep.subr.bf16.mxu0 %v5454
    %5680 = vmatpush1.bf16.msra.mxu0 %v5453
    %5681 = vmatprep.mubr.bf16.mxu0 %v4856
    %5682 = vmatmul.mubr.bf16.gmra.mrb[0].mxu0 %v4855
    %v5683 = vpop.f32.mrb[0].mxu0
    %v5684 = vadd.f32 %v4992, %v5683
    %v5685 = vpop.f32.mrb[0].mxu0
    %v5686 = vadd.f32 %v4996, %v5685
    %v5687 = vpop.f32.mrb[0].mxu0
    %v5688 = vpop.f32.mrb[0].mxu0
    %5689 = vdwg.mxu0
    %5690 = vmatprep.subr.bf16.mxu0 %v5458
    %5691 = vmatpush1.bf16.msra.mxu0 %v5457
    %5692 = vmatprep.subr.bf16.mxu0 %v5462
    %5693 = vmatpush1.bf16.msra.mxu0 %v5461
    %5694 = vmatprep.subr.bf16.mxu0 %v5466
    %5695 = vmatpush1.bf16.msra.mxu0 %v5465
    %5696 = vmatprep.subr.bf16.mxu0 %v5470
    %5697 = vmatpush1.bf16.msra.mxu0 %v5469
    %5698 = vmatprep.subr.bf16.mxu0 %v5474
    %5699 = vmatpush1.bf16.msra.mxu0 %v5473
    %5700 = vmatprep.subr.bf16.mxu0 %v5478
    %5701 = vmatpush1.bf16.msra.mxu0 %v5477
    %5702 = vmatprep.subr.bf16.mxu0 %v5482
    %5703 = vmatpush1.bf16.msra.mxu0 %v5481
    %5704 = vmatprep.subr.bf16.mxu0 %v5486
    %5705 = vmatpush1.bf16.msra.mxu0 %v5485
    %5706 = vmatprep.subr.bf16.mxu0 %v5490
    %5707 = vmatpush1.bf16.msra.mxu0 %v5489
    %5708 = vmatprep.subr.bf16.mxu0 %v5494
    %5709 = vmatpush1.bf16.msra.mxu0 %v5493
    %5710 = vmatprep.subr.bf16.mxu0 %v5498
    %5711 = vmatpush1.bf16.msra.mxu0 %v5497
    %5712 = vmatprep.subr.bf16.mxu0 %v5502
    %5713 = vmatpush1.bf16.msra.mxu0 %v5501
    %5714 = vmatprep.subr.bf16.mxu0 %v5506
    %5715 = vmatpush1.bf16.msra.mxu0 %v5505
    %5716 = vmatprep.subr.bf16.mxu0 %v5510
    %5717 = vmatpush1.bf16.msra.mxu0 %v5509
    %5718 = vmatprep.subr.bf16.mxu0 %v5514
    %5719 = vmatpush1.bf16.msra.mxu0 %v5513
    %5720 = vmatprep.subr.bf16.mxu0 %v5518
    %5721 = vmatpush1.bf16.msra.mxu0 %v5517
    %5722 = vmatprep.mubr.bf16.mxu0 %v4858
    %5723 = vmatmul.mubr.bf16.gmra.mrb[0].mxu0 %v4857
    %v5724 = vpop.f32.mrb[0].mxu0
    %v5725 = vadd.f32 %v5684, %v5724
    %v5726 = vpop.f32.mrb[0].mxu0
    %v5727 = vadd.f32 %v5686, %v5726
    %v5728 = vpop.f32.mrb[0].mxu0
    %v5729 = vpop.f32.mrb[0].mxu0
    %5730 = vdwg.mxu0
    %5731 = vmatprep.subr.bf16.mxu0 %v5396
    %5732 = vmatpush1.bf16.msra.mxu0 %v5395
    %5733 = vmatprep.subr.bf16.mxu0 %v5400
    %5734 = vmatpush1.bf16.msra.mxu0 %v5399
    %5735 = vmatprep.subr.bf16.mxu0 %v5404
    %5736 = vmatpush1.bf16.msra.mxu0 %v5403
    %5737 = vmatprep.subr.bf16.mxu0 %v5408
    %5738 = vmatpush1.bf16.msra.mxu0 %v5407
    %5739 = vmatprep.subr.bf16.mxu0 %v5412
    %5740 = vmatpush1.bf16.msra.mxu0 %v5411
    %5741 = vmatprep.subr.bf16.mxu0 %v5416
    %5742 = vmatpush1.bf16.msra.mxu0 %v5415
    %5743 = vmatprep.subr.bf16.mxu0 %v5420
    %5744 = vmatpush1.bf16.msra.mxu0 %v5419
    %5745 = vmatprep.subr.bf16.mxu0 %v5424
    %5746 = vmatpush1.bf16.msra.mxu0 %v5423
    %5747 = vmatprep.subr.bf16.mxu0 %v5428
    %5748 = vmatpush1.bf16.msra.mxu0 %v5427
    %5749 = vmatprep.subr.bf16.mxu0 %v5432
    %5750 = vmatpush1.bf16.msra.mxu0 %v5431
    %5751 = vmatprep.subr.bf16.mxu0 %v5436
    %5752 = vmatpush1.bf16.msra.mxu0 %v5435
    %5753 = vmatprep.subr.bf16.mxu0 %v5440
    %5754 = vmatpush1.bf16.msra.mxu0 %v5439
    %5755 = vmatprep.subr.bf16.mxu0 %v5444
    %5756 = vmatpush1.bf16.msra.mxu0 %v5443
    %5757 = vmatprep.subr.bf16.mxu0 %v5448
    %5758 = vmatpush1.bf16.msra.mxu0 %v5447
    %5759 = vmatprep.subr.bf16.mxu0 %v5452
    %5760 = vmatpush1.bf16.msra.mxu0 %v5451
    %5761 = vmatprep.subr.bf16.mxu0 %v5456
    %5762 = vmatpush1.bf16.msra.mxu0 %v5455
    %5763 = vmatprep.mubr.bf16.mxu0 %v4856
    %5764 = vmatmul.mubr.bf16.gmra.mrb[0].mxu0 %v4855
    %v5765 = vpop.f32.mrb[0].mxu0
    %v5766 = vadd.f32 %v5000, %v5765
    %v5767 = vpop.f32.mrb[0].mxu0
    %v5768 = vadd.f32 %v5004, %v5767
    %v5769 = vpop.f32.mrb[0].mxu0
    %v5770 = vpop.f32.mrb[0].mxu0
    %5771 = vdwg.mxu0
    %5772 = vmatprep.subr.bf16.mxu0 %v5460
    %5773 = vmatpush1.bf16.msra.mxu0 %v5459
    %5774 = vmatprep.subr.bf16.mxu0 %v5464
    %5775 = vmatpush1.bf16.msra.mxu0 %v5463
    %5776 = vmatprep.subr.bf16.mxu0 %v5468
    %5777 = vmatpush1.bf16.msra.mxu0 %v5467
    %5778 = vmatprep.subr.bf16.mxu0 %v5472
    %5779 = vmatpush1.bf16.msra.mxu0 %v5471
    %5780 = vmatprep.subr.bf16.mxu0 %v5476
    %5781 = vmatpush1.bf16.msra.mxu0 %v5475
    %5782 = vmatprep.subr.bf16.mxu0 %v5480
    %5783 = vmatpush1.bf16.msra.mxu0 %v5479
    %5784 = vmatprep.subr.bf16.mxu0 %v5484
    %5785 = vmatpush1.bf16.msra.mxu0 %v5483
    %5786 = vmatprep.subr.bf16.mxu0 %v5488
    %5787 = vmatpush1.bf16.msra.mxu0 %v5487
    %5788 = vmatprep.subr.bf16.mxu0 %v5492
    %5789 = vmatpush1.bf16.msra.mxu0 %v5491
    %5790 = vmatprep.subr.bf16.mxu0 %v5496
    %5791 = vmatpush1.bf16.msra.mxu0 %v5495
    %5792 = vmatprep.subr.bf16.mxu0 %v5500
    %5793 = vmatpush1.bf16.msra.mxu0 %v5499
    %5794 = vmatprep.subr.bf16.mxu0 %v5504
    %5795 = vmatpush1.bf16.msra.mxu0 %v5503
    %5796 = vmatprep.subr.bf16.mxu0 %v5508
    %5797 = vmatpush1.bf16.msra.mxu0 %v5507
    %5798 = vmatprep.subr.bf16.mxu0 %v5512
    %5799 = vmatpush1.bf16.msra.mxu0 %v5511
    %5800 = vmatprep.subr.bf16.mxu0 %v5516
    %5801 = vmatpush1.bf16.msra.mxu0 %v5515
    %5802 = vmatprep.subr.bf16.mxu0 %v5520
    %5803 = vmatpush1.bf16.msra.mxu0 %v5519
    %5804 = vmatprep.mubr.bf16.mxu0 %v4858
    %5805 = vmatmul.mubr.bf16.gmra.mrb[0].mxu0 %v4857
    %v5806 = vpop.f32.mrb[0].mxu0
    %v5807 = vadd.f32 %v5766, %v5806
    %v5808 = vpop.f32.mrb[0].mxu0
    %v5809 = vadd.f32 %v5768, %v5808
    %v5810 = vpop.f32.mrb[0].mxu0
    %v5811 = vpop.f32.mrb[0].mxu0
    %5812 = vdwg.mxu0
    %v5813 = vadd.f32 %v5725, 0.0
    %v5814 = vadd.f32 %v5727, 0.0
    %v5815 = vadd.f32 %v5807, 0.0
    %v5816 = vadd.f32 %v5809, 0.0
    %vm5817 = vcmp.gt.f32.partialorder %v5813, 0.2
    %vm5818 = vcmp.gt.f32.partialorder %v5814, 0.2
    %vm5819 = vcmp.gt.f32.partialorder %v5815, 0.2
    %vm5820 = vcmp.gt.f32.partialorder %v5816, 0.2
    %v5821 = vsel %vm5817, 1, 0
    %v5822 = vsel %vm5818, 1, 0
    %v5823 = vsel %vm5819, 1, 0
    %v5824 = vsel %vm5820, 1, 0
    %v5825 = vcvt.s32.f32 %v5821
    %v5826 = vcvt.s32.f32 %v5822
    %v5827 = vcvt.s32.f32 %v5823
    %v5828 = vcvt.s32.f32 %v5824
    %5829 = vst [vmem:[#allocation3] sm:$0x3] %v5825
    %5830 = vst [vmem:[#allocation3 + $0x8] sm:$0x3] %v5826
    %5831 = vst [vmem:[#allocation3 + $0x10] sm:$0x3] %v5827
    %5832 = vst [vmem:[#allocation3 + $0x18] sm:$0x3] %v5828
    %v5833 = vmul.f32 %v5813, 0.25
    %v5834 = vmul.f32 %v5814, 0.25
    %v5835 = vmul.f32 %v5815, 0.25
    %v5836 = vmul.f32 %v5816, 0.25
    %v5837 = vsub.f32 1.0, %v5825
    %v5838 = vsub.f32 1.0, %v5826
    %v5839 = vsub.f32 1.0, %v5827
    %v5840 = vsub.f32 1.0, %v5828
    %v5841 = vmul.f32 %v5833, %v5837
    %v5842 = vmul.f32 %v5834, %v5838
    %v5843 = vmul.f32 %v5835, %v5839
    %v5844 = vmul.f32 %v5836, %v5840
    %v5849 = vrot.slane %v5725, 2
    %v5850 = vrot.slane %v5727, 2
    %v5851 = vrot.slane %v5807, 2
    %v5852 = vrot.slane %v5809, 2
    %v5857 = vadd.f32 %v5841, %v5849
    %v5858 = vadd.f32 %v5842, %v5850
    %v5859 = vadd.f32 %v5843, %v5851
    %v5860 = vadd.f32 %v5844, %v5852
    %vm5861 = vcmp.gt.f32.partialorder %v5857, 0.2
    %vm5862 = vcmp.gt.f32.partialorder %v5858, 0.2
    %vm5863 = vcmp.gt.f32.partialorder %v5859, 0.2
    %vm5864 = vcmp.gt.f32.partialorder %v5860, 0.2
    %v5865 = vsel %vm5861, 1, 0
    %v5866 = vsel %vm5862, 1, 0
    %v5867 = vsel %vm5863, 1, 0
    %v5868 = vsel %vm5864, 1, 0
    %v5869 = vcvt.s32.f32 %v5865
    %v5870 = vcvt.s32.f32 %v5866
    %v5871 = vcvt.s32.f32 %v5867
    %v5872 = vcvt.s32.f32 %v5868
    %v5877 = vrot.slane %v5869, 6
    %v5878 = vrot.slane %v5870, 6
    %v5879 = vrot.slane %v5871, 6
    %v5880 = vrot.slane %v5872, 6
    %5885 = vst [vmem:[#allocation3] sm:$0xc] %v5877
    %5886 = vst [vmem:[#allocation3 + $0x8] sm:$0xc] %v5878
    %5887 = vst [vmem:[#allocation3 + $0x10] sm:$0xc] %v5879
    %5888 = vst [vmem:[#allocation3 + $0x18] sm:$0xc] %v5880
    %v5889 = vmul.f32 %v5857, 0.25
    %v5890 = vmul.f32 %v5858, 0.25
    %v5891 = vmul.f32 %v5859, 0.25
    %v5892 = vmul.f32 %v5860, 0.25
    %v5893 = vsub.f32 1.0, %v5869
    %v5894 = vsub.f32 1.0, %v5870
    %v5895 = vsub.f32 1.0, %v5871
    %v5896 = vsub.f32 1.0, %v5872
    %v5897 = vmul.f32 %v5889, %v5893
    %v5898 = vmul.f32 %v5890, %v5894
    %v5899 = vmul.f32 %v5891, %v5895
    %v5900 = vmul.f32 %v5892, %v5896
    %v5901 = vrot.slane %v5725, 4
    %v5902 = vrot.slane %v5727, 4
    %v5903 = vrot.slane %v5807, 4
    %v5904 = vrot.slane %v5809, 4
    %v5909 = vadd.f32 %v5897, %v5901
    %v5910 = vadd.f32 %v5898, %v5902
    %v5911 = vadd.f32 %v5899, %v5903
    %v5912 = vadd.f32 %v5900, %v5904
    %vm5913 = vcmp.gt.f32.partialorder %v5909, 0.2
    %vm5914 = vcmp.gt.f32.partialorder %v5910, 0.2
    %vm5915 = vcmp.gt.f32.partialorder %v5911, 0.2
    %vm5916 = vcmp.gt.f32.partialorder %v5912, 0.2
    %v5917 = vsel %vm5913, 1, 0
    %v5918 = vsel %vm5914, 1, 0
    %v5919 = vsel %vm5915, 1, 0
    %v5920 = vsel %vm5916, 1, 0
    %v5921 = vcvt.s32.f32 %v5917
    %v5922 = vcvt.s32.f32 %v5918
    %v5923 = vcvt.s32.f32 %v5919
    %v5924 = vcvt.s32.f32 %v5920
    %v5929 = vrot.slane %v5921, 4
    %v5930 = vrot.slane %v5922, 4
    %v5931 = vrot.slane %v5923, 4
    %v5932 = vrot.slane %v5924, 4
    %5937 = vst [vmem:[#allocation3] sm:$0x30] %v5929
    %5938 = vst [vmem:[#allocation3 + $0x8] sm:$0x30] %v5930
    %5939 = vst [vmem:[#allocation3 + $0x10] sm:$0x30] %v5931
    %5940 = vst [vmem:[#allocation3 + $0x18] sm:$0x30] %v5932
    %v5941 = vmul.f32 %v5909, 0.25
    %v5942 = vmul.f32 %v5910, 0.25
    %v5943 = vmul.f32 %v5911, 0.25
    %v5944 = vmul.f32 %v5912, 0.25
    %v5945 = vsub.f32 1.0, %v5921
    %v5946 = vsub.f32 1.0, %v5922
    %v5947 = vsub.f32 1.0, %v5923
    %v5948 = vsub.f32 1.0, %v5924
    %v5949 = vmul.f32 %v5941, %v5945
    %v5950 = vmul.f32 %v5942, %v5946
    %v5951 = vmul.f32 %v5943, %v5947
    %v5952 = vmul.f32 %v5944, %v5948
    %v5953 = vrot.slane %v5725, 6
    %v5954 = vrot.slane %v5727, 6
    %v5955 = vrot.slane %v5807, 6
    %v5956 = vrot.slane %v5809, 6
    %v5961 = vadd.f32 %v5949, %v5953
    %v5962 = vadd.f32 %v5950, %v5954
    %v5963 = vadd.f32 %v5951, %v5955
    %v5964 = vadd.f32 %v5952, %v5956
    %vm5965 = vcmp.gt.f32.partialorder %v5961, 0.2
    %vm5966 = vcmp.gt.f32.partialorder %v5962, 0.2
    %vm5967 = vcmp.gt.f32.partialorder %v5963, 0.2
    %vm5968 = vcmp.gt.f32.partialorder %v5964, 0.2
    %v5969 = vsel %vm5965, 1, 0
    %v5970 = vsel %vm5966, 1, 0
    %v5971 = vsel %vm5967, 1, 0
    %v5972 = vsel %vm5968, 1, 0
    %v5973 = vcvt.s32.f32 %v5969
    %v5974 = vcvt.s32.f32 %v5970
    %v5975 = vcvt.s32.f32 %v5971
    %v5976 = vcvt.s32.f32 %v5972
    %v5981 = vrot.slane %v5973, 2
    %v5982 = vrot.slane %v5974, 2
    %v5983 = vrot.slane %v5975, 2
    %v5984 = vrot.slane %v5976, 2
    %5989 = vst [vmem:[#allocation3] sm:$0xc0] %v5981
    %5990 = vst [vmem:[#allocation3 + $0x8] sm:$0xc0] %v5982
    %5991 = vst [vmem:[#allocation3 + $0x10] sm:$0xc0] %v5983
    %5992 = vst [vmem:[#allocation3 + $0x18] sm:$0xc0] %v5984
    %v5993 = vld [vmem:[#allocation3] sm:$0xff]
    %v5994 = vld [vmem:[#allocation3 + $0x8] sm:$0xff]
    %v5995 = vld [vmem:[#allocation3 + $0x10] sm:$0xff]
    %v5996 = vld [vmem:[#allocation3 + $0x18] sm:$0xff]
    %v5997 = vpack.c.bf16 %v5993, %v5993
    %v5998 = vpack.c.bf16 %v5994, %v5994
    %v5999 = vpack.c.bf16 %v5995, %v5995
    %v6000 = vpack.c.bf16 %v5996, %v5996
    %v6001 = vld [vmem:[#allocation12] sm:$0xf]
    %v6002 = vld [vmem:[#allocation12 + $0x4] sm:$0xf]
    %v6003 = vld [vmem:[#allocation12 + $0x8] sm:$0xf]
    %v6004 = vld [vmem:[#allocation12 + $0xc] sm:$0xf]
    %v6005 = vld [vmem:[#allocation12 + $0x10] sm:$0xf]
    %v6006 = vld [vmem:[#allocation12 + $0x14] sm:$0xf]
    %v6007 = vld [vmem:[#allocation12 + $0x18] sm:$0xf]
    %v6008 = vld [vmem:[#allocation12 + $0x1c] sm:$0xf]
    %v6009 = vld [vmem:[#allocation12 + $0x20] sm:$0xf]
    %v6010 = vld [vmem:[#allocation12 + $0x24] sm:$0xf]
    %v6011 = vld [vmem:[#allocation12 + $0x28] sm:$0xf]
    %v6012 = vld [vmem:[#allocation12 + $0x2c] sm:$0xf]
    %v6013 = vld [vmem:[#allocation12 + $0x30] sm:$0xf]
    %v6014 = vld [vmem:[#allocation12 + $0x34] sm:$0xf]
    %v6015 = vld [vmem:[#allocation12 + $0x38] sm:$0xf]
    %v6016 = vld [vmem:[#allocation12 + $0x3c] sm:$0xf]
    %v6017 = vld [vmem:[#allocation12 + $0x40] sm:$0xf]
    %v6018 = vld [vmem:[#allocation12 + $0x44] sm:$0xf]
    %v6019 = vld [vmem:[#allocation12 + $0x48] sm:$0xf]
    %v6020 = vld [vmem:[#allocation12 + $0x4c] sm:$0xf]
    %v6021 = vld [vmem:[#allocation12 + $0x50] sm:$0xf]
    %v6022 = vld [vmem:[#allocation12 + $0x54] sm:$0xf]
    %v6023 = vld [vmem:[#allocation12 + $0x58] sm:$0xf]
    %v6024 = vld [vmem:[#allocation12 + $0x5c] sm:$0xf]
    %v6025 = vld [vmem:[#allocation12 + $0x60] sm:$0xf]
    %v6026 = vld [vmem:[#allocation12 + $0x64] sm:$0xf]
    %v6027 = vld [vmem:[#allocation12 + $0x68] sm:$0xf]
    %v6028 = vld [vmem:[#allocation12 + $0x6c] sm:$0xf]
    %v6029 = vld [vmem:[#allocation12 + $0x70] sm:$0xf]
    %v6030 = vld [vmem:[#allocation12 + $0x74] sm:$0xf]
    %v6031 = vld [vmem:[#allocation12 + $0x78] sm:$0xf]
    %v6032 = vld [vmem:[#allocation12 + $0x7c] sm:$0xf]
    %v6033 = vld [vmem:[#allocation12 + $0x80] sm:$0xf]
    %v6034 = vld [vmem:[#allocation12 + $0x84] sm:$0xf]
    %v6035 = vld [vmem:[#allocation12 + $0x88] sm:$0xf]
    %v6036 = vld [vmem:[#allocation12 + $0x8c] sm:$0xf]
    %v6037 = vld [vmem:[#allocation12 + $0x90] sm:$0xf]
    %v6038 = vld [vmem:[#allocation12 + $0x94] sm:$0xf]
    %v6039 = vld [vmem:[#allocation12 + $0x98] sm:$0xf]
    %v6040 = vld [vmem:[#allocation12 + $0x9c] sm:$0xf]
    %v6041 = vld [vmem:[#allocation12 + $0xa0] sm:$0xf]
    %v6042 = vld [vmem:[#allocation12 + $0xa4] sm:$0xf]
    %v6043 = vld [vmem:[#allocation12 + $0xa8] sm:$0xf]
    %v6044 = vld [vmem:[#allocation12 + $0xac] sm:$0xf]
    %v6045 = vld [vmem:[#allocation12 + $0xb0] sm:$0xf]
    %v6046 = vld [vmem:[#allocation12 + $0xb4] sm:$0xf]
    %v6047 = vld [vmem:[#allocation12 + $0xb8] sm:$0xf]
    %v6048 = vld [vmem:[#allocation12 + $0xbc] sm:$0xf]
    %v6049 = vld [vmem:[#allocation12 + $0xc0] sm:$0xf]
    %v6050 = vld [vmem:[#allocation12 + $0xc4] sm:$0xf]
    %v6051 = vld [vmem:[#allocation12 + $0xc8] sm:$0xf]
    %v6052 = vld [vmem:[#allocation12 + $0xcc] sm:$0xf]
    %v6053 = vld [vmem:[#allocation12 + $0xd0] sm:$0xf]
    %v6054 = vld [vmem:[#allocation12 + $0xd4] sm:$0xf]
    %v6055 = vld [vmem:[#allocation12 + $0xd8] sm:$0xf]
    %v6056 = vld [vmem:[#allocation12 + $0xdc] sm:$0xf]
    %v6057 = vld [vmem:[#allocation12 + $0xe0] sm:$0xf]
    %v6058 = vld [vmem:[#allocation12 + $0xe4] sm:$0xf]
    %v6059 = vld [vmem:[#allocation12 + $0xe8] sm:$0xf]
    %v6060 = vld [vmem:[#allocation12 + $0xec] sm:$0xf]
    %v6061 = vld [vmem:[#allocation12 + $0xf0] sm:$0xf]
    %v6062 = vld [vmem:[#allocation12 + $0xf4] sm:$0xf]
    %v6063 = vld [vmem:[#allocation12 + $0xf8] sm:$0xf]
    %v6064 = vld [vmem:[#allocation12 + $0xfc] sm:$0xf]
    %v6065 = vld [vmem:[#allocation13] sm:$0x1]
    %v6067 = vlaneseq
    %v6068 = vshrl.u32 %v6067, 7
    %v6069 = vsub.s32 0, %v6068
    %v6070 = vrot.slane %v6065, %v6069
    %v6136 = vunpack.c.l.b16 %v6001
    %v6137 = vunpack.c.l.b16 %v6002
    %v6138 = vunpack.c.l.b16 %v6003
    %v6139 = vunpack.c.l.b16 %v6004
    %v6140 = vunpack.c.l.b16 %v6005
    %v6141 = vunpack.c.l.b16 %v6006
    %v6142 = vunpack.c.l.b16 %v6007
    %v6143 = vunpack.c.l.b16 %v6008
    %v6144 = vunpack.c.l.b16 %v6009
    %v6145 = vunpack.c.l.b16 %v6010
    %v6146 = vunpack.c.l.b16 %v6011
    %v6147 = vunpack.c.l.b16 %v6012
    %v6148 = vunpack.c.l.b16 %v6013
    %v6149 = vunpack.c.l.b16 %v6014
    %v6150 = vunpack.c.l.b16 %v6015
    %v6151 = vunpack.c.l.b16 %v6016
    %v6152 = vunpack.c.l.b16 %v6017
    %v6153 = vunpack.c.l.b16 %v6018
    %v6154 = vunpack.c.l.b16 %v6019
    %v6155 = vunpack.c.l.b16 %v6020
    %v6156 = vunpack.c.l.b16 %v6021
    %v6157 = vunpack.c.l.b16 %v6022
    %v6158 = vunpack.c.l.b16 %v6023
    %v6159 = vunpack.c.l.b16 %v6024
    %v6160 = vunpack.c.l.b16 %v6025
    %v6161 = vunpack.c.l.b16 %v6026
    %v6162 = vunpack.c.l.b16 %v6027
    %v6163 = vunpack.c.l.b16 %v6028
    %v6164 = vunpack.c.l.b16 %v6029
    %v6165 = vunpack.c.l.b16 %v6030
    %v6166 = vunpack.c.l.b16 %v6031
    %v6167 = vunpack.c.l.b16 %v6032
    %v6168 = vunpack.c.l.b16 %v6033
    %v6169 = vunpack.c.l.b16 %v6034
    %v6170 = vunpack.c.l.b16 %v6035
    %v6171 = vunpack.c.l.b16 %v6036
    %v6172 = vunpack.c.l.b16 %v6037
    %v6173 = vunpack.c.l.b16 %v6038
    %v6174 = vunpack.c.l.b16 %v6039
    %v6175 = vunpack.c.l.b16 %v6040
    %v6176 = vunpack.c.l.b16 %v6041
    %v6177 = vunpack.c.l.b16 %v6042
    %v6178 = vunpack.c.l.b16 %v6043
    %v6179 = vunpack.c.l.b16 %v6044
    %v6180 = vunpack.c.l.b16 %v6045
    %v6181 = vunpack.c.l.b16 %v6046
    %v6182 = vunpack.c.l.b16 %v6047
    %v6183 = vunpack.c.l.b16 %v6048
    %v6184 = vunpack.c.l.b16 %v6049
    %v6185 = vunpack.c.l.b16 %v6050
    %v6186 = vunpack.c.l.b16 %v6051
    %v6187 = vunpack.c.l.b16 %v6052
    %v6188 = vunpack.c.l.b16 %v6053
    %v6189 = vunpack.c.l.b16 %v6054
    %v6190 = vunpack.c.l.b16 %v6055
    %v6191 = vunpack.c.l.b16 %v6056
    %v6192 = vunpack.c.l.b16 %v6057
    %v6193 = vunpack.c.l.b16 %v6058
    %v6194 = vunpack.c.l.b16 %v6059
    %v6195 = vunpack.c.l.b16 %v6060
    %v6196 = vunpack.c.l.b16 %v6061
    %v6197 = vunpack.c.l.b16 %v6062
    %v6198 = vunpack.c.l.b16 %v6063
    %v6199 = vunpack.c.l.b16 %v6064
    %v6200 = vpack.c.b16 %v6137, %v6136
    %v6201 = vpack.c.b16 %v6139, %v6138
    %v6202 = vpack.c.b16 %v6141, %v6140
    %v6203 = vpack.c.b16 %v6143, %v6142
    %v6204 = vpack.c.b16 %v6145, %v6144
    %v6205 = vpack.c.b16 %v6147, %v6146
    %v6206 = vpack.c.b16 %v6149, %v6148
    %v6207 = vpack.c.b16 %v6151, %v6150
    %v6208 = vpack.c.b16 %v6153, %v6152
    %v6209 = vpack.c.b16 %v6155, %v6154
    %v6210 = vpack.c.b16 %v6157, %v6156
    %v6211 = vpack.c.b16 %v6159, %v6158
    %v6212 = vpack.c.b16 %v6161, %v6160
    %v6213 = vpack.c.b16 %v6163, %v6162
    %v6214 = vpack.c.b16 %v6165, %v6164
    %v6215 = vpack.c.b16 %v6167, %v6166
    %v6216 = vpack.c.b16 %v6169, %v6168
    %v6217 = vpack.c.b16 %v6171, %v6170
    %v6218 = vpack.c.b16 %v6173, %v6172
    %v6219 = vpack.c.b16 %v6175, %v6174
    %v6220 = vpack.c.b16 %v6177, %v6176
    %v6221 = vpack.c.b16 %v6179, %v6178
    %v6222 = vpack.c.b16 %v6181, %v6180
    %v6223 = vpack.c.b16 %v6183, %v6182
    %v6224 = vpack.c.b16 %v6185, %v6184
    %v6225 = vpack.c.b16 %v6187, %v6186
    %v6226 = vpack.c.b16 %v6189, %v6188
    %v6227 = vpack.c.b16 %v6191, %v6190
    %v6228 = vpack.c.b16 %v6193, %v6192
    %v6229 = vpack.c.b16 %v6195, %v6194
    %v6230 = vpack.c.b16 %v6197, %v6196
    %v6231 = vpack.c.b16 %v6199, %v6198
    %6264 = vmatprep.subr.bf16.mxu0 0
    %6265 = vmatpush1.bf16.msra.mxu0 %v6200
    %6266 = vmatprep.subr.bf16.mxu0 0
    %6267 = vmatpush1.bf16.msra.mxu0 %v6201
    %6268 = vmatprep.subr.bf16.mxu0 0
    %6269 = vmatpush1.bf16.msra.mxu0 %v6202
    %6270 = vmatprep.subr.bf16.mxu0 0
    %6271 = vmatpush1.bf16.msra.mxu0 %v6203
    %6272 = vmatprep.subr.bf16.mxu0 0
    %6273 = vmatpush1.bf16.msra.mxu0 %v6204
    %6274 = vmatprep.subr.bf16.mxu0 0
    %6275 = vmatpush1.bf16.msra.mxu0 %v6205
    %6276 = vmatprep.subr.bf16.mxu0 0
    %6277 = vmatpush1.bf16.msra.mxu0 %v6206
    %6278 = vmatprep.subr.bf16.mxu0 0
    %6279 = vmatpush1.bf16.msra.mxu0 %v6207
    %6280 = vmatprep.subr.bf16.mxu0 0
    %6281 = vmatpush1.bf16.msra.mxu0 %v6208
    %6282 = vmatprep.subr.bf16.mxu0 0
    %6283 = vmatpush1.bf16.msra.mxu0 %v6209
    %6284 = vmatprep.subr.bf16.mxu0 0
    %6285 = vmatpush1.bf16.msra.mxu0 %v6210
    %6286 = vmatprep.subr.bf16.mxu0 0
    %6287 = vmatpush1.bf16.msra.mxu0 %v6211
    %6288 = vmatprep.subr.bf16.mxu0 0
    %6289 = vmatpush1.bf16.msra.mxu0 %v6212
    %6290 = vmatprep.subr.bf16.mxu0 0
    %6291 = vmatpush1.bf16.msra.mxu0 %v6213
    %6292 = vmatprep.subr.bf16.mxu0 0
    %6293 = vmatpush1.bf16.msra.mxu0 %v6214
    %6294 = vmatprep.subr.bf16.mxu0 0
    %6295 = vmatpush1.bf16.msra.mxu0 %v6215
    %6296 = vmatprep.mubr.bf16.mxu0 %v5998
    %6297 = vmatmul.mubr.bf16.gmra.mrb[0].mxu0 %v5997
    %v6298 = vpop.f32.mrb[0].mxu0
    %v6299 = vadd.f32 %v6070, %v6298
    %v6300 = vpop.f32.mrb[0].mxu0
    %v6301 = vpop.f32.mrb[0].mxu0
    %v6302 = vpop.f32.mrb[0].mxu0
    %6303 = vdwg.mxu0
    %6304 = vmatprep.subr.bf16.mxu0 0
    %6305 = vmatpush1.bf16.msra.mxu0 %v6216
    %6306 = vmatprep.subr.bf16.mxu0 0
    %6307 = vmatpush1.bf16.msra.mxu0 %v6217
    %6308 = vmatprep.subr.bf16.mxu0 0
    %6309 = vmatpush1.bf16.msra.mxu0 %v6218
    %6310 = vmatprep.subr.bf16.mxu0 0
    %6311 = vmatpush1.bf16.msra.mxu0 %v6219
    %6312 = vmatprep.subr.bf16.mxu0 0
    %6313 = vmatpush1.bf16.msra.mxu0 %v6220
    %6314 = vmatprep.subr.bf16.mxu0 0
    %6315 = vmatpush1.bf16.msra.mxu0 %v6221
    %6316 = vmatprep.subr.bf16.mxu0 0
    %6317 = vmatpush1.bf16.msra.mxu0 %v6222
    %6318 = vmatprep.subr.bf16.mxu0 0
    %6319 = vmatpush1.bf16.msra.mxu0 %v6223
    %6320 = vmatprep.subr.bf16.mxu0 0
    %6321 = vmatpush1.bf16.msra.mxu0 %v6224
    %6322 = vmatprep.subr.bf16.mxu0 0
    %6323 = vmatpush1.bf16.msra.mxu0 %v6225
    %6324 = vmatprep.subr.bf16.mxu0 0
    %6325 = vmatpush1.bf16.msra.mxu0 %v6226
    %6326 = vmatprep.subr.bf16.mxu0 0
    %6327 = vmatpush1.bf16.msra.mxu0 %v6227
    %6328 = vmatprep.subr.bf16.mxu0 0
    %6329 = vmatpush1.bf16.msra.mxu0 %v6228
    %6330 = vmatprep.subr.bf16.mxu0 0
    %6331 = vmatpush1.bf16.msra.mxu0 %v6229
    %6332 = vmatprep.subr.bf16.mxu0 0
    %6333 = vmatpush1.bf16.msra.mxu0 %v6230
    %6334 = vmatprep.subr.bf16.mxu0 0
    %6335 = vmatpush1.bf16.msra.mxu0 %v6231
    %6336 = vmatprep.mubr.bf16.mxu0 %v6000
    %6337 = vmatmul.mubr.bf16.gmra.mrb[0].mxu0 %v5999
    %v6338 = vpop.f32.mrb[0].mxu0
    %v6339 = vadd.f32 %v6299, %v6338
    %v6340 = vpop.f32.mrb[0].mxu0
    %v6341 = vpop.f32.mrb[0].mxu0
    %v6342 = vpop.f32.mrb[0].mxu0
    %6343 = vdwg.mxu0
    %v6344 = vadd.f32 %v6339, 0.0
    %vm6345 = vcmp.gt.f32.partialorder %v6344, 0.2
    %v6346 = vsel %vm6345, 1, 0
    %v6347 = vcvt.s32.f32 %v6346
    %v6348 = vadd.f32 %v6347, 0.0
    %v6349 = vmul.f32 %v6344, 0.25
    %v6350 = vsub.f32 1.0, %v6347
    %v6351 = vmul.f32 %v6349, %v6350
    %v6353 = vrot.slane %v6339, 2
    %v6355 = vadd.f32 %v6351, %v6353
    %vm6356 = vcmp.gt.f32.partialorder %v6355, 0.2
    %v6357 = vsel %vm6356, 1, 0
    %v6358 = vcvt.s32.f32 %v6357
    %v6359 = vadd.f32 %v6348, %v6358
    %v6360 = vmul.f32 %v6355, 0.25
    %v6361 = vsub.f32 1.0, %v6358
    %v6362 = vmul.f32 %v6360, %v6361
    %v6363 = vrot.slane %v6339, 4
    %v6365 = vadd.f32 %v6362, %v6363
    %vm6366 = vcmp.gt.f32.partialorder %v6365, 0.2
    %v6367 = vsel %vm6366, 1, 0
    %v6368 = vcvt.s32.f32 %v6367
    %v6369 = vadd.f32 %v6359, %v6368
    %v6370 = vmul.f32 %v6365, 0.25
    %v6371 = vsub.f32 1.0, %v6368
    %v6372 = vmul.f32 %v6370, %v6371
    %v6373 = vrot.slane %v6339, 6
    %v6375 = vadd.f32 %v6372, %v6373
    %vm6376 = vcmp.gt.f32.partialorder %v6375, 0.2
    %v6377 = vsel %vm6376, 1, 0
    %v6378 = vcvt.s32.f32 %v6377
    %v6379 = vadd.f32 %v6369, %v6378
    %v6380 = vmul.f32 %v6379, 0.25
    %6381 = vst [vmem:[#allocation15] sm:$0x3] %v6380
    // Predicated region
    $region54: #{nmnist_mlp_forward.1} parent=1 // pred_check
      _
    $region55: #{nmnist_mlp_forward.1} parent=1 // pred_check_branch
      %6383 = sbr.rel (0) target = $region57
    $region56: #{nmnist_mlp_forward.1} parent=1 // pred_region
      %s6385 = ssub.s32 32, 32
      %6386 = vsyncadd [#allocation6], %s6385
      %s6388 = sshll.u32 [#allocation15], 4
      %s6389 = int_to_ptr.vmem [resolvable:$true] %s6388
      %6391 = dma.vmem_to_hbm [thread:$0]  %s6389, 32, %s7, [#allocation6]
    $region57: #{nmnist_mlp_forward.1} parent=1 // pred_fallthru
      _
    // Predicated region
    $region58: #{nmnist_mlp_forward.1} parent=1 // pred_check
      _
    $region59: #{nmnist_mlp_forward.1} parent=1 // pred_check_branch
      %6393 = sbr.rel (0) target = $region61
    $region60: #{nmnist_mlp_forward.1} parent=1 // pred_region
      %6394 = dma.done [#allocation6], 32
    $region61: #{nmnist_mlp_forward.1} parent=1 // pred_fallthru
      _
    %6395 = vsyncpa [#allocation5], 1
    %6396 = vsyncpa [#allocation8], 1
    %6397 = vsyncpa [#allocation11], 1
    %6398 = vsyncpa [#allocation14], 1
    %6399 = vsyncpa [#allocation6], 1

</llo_original>
